<compile_context>
chip_gen: v7x
topology: tpu7x:2x2x1
jax: 0.10.0
libtpu: 0.0.40
codegen_flags: <defaults>
</compile_context>

<pallas_src>
import functools

import jax
import jax.numpy as jnp
from jax.experimental import pallas as pl
from jax.experimental.pallas import tpu as pltpu


# ----------------------------------------------------------------------------
# Fused Pallas kernel: sLSTM recurrence + MLP head + log_softmax
# ----------------------------------------------------------------------------
def _classifier_kernel(T, B, HP, w,
                       x_ref, mask_ref, invlen_ref, wm_ref,
                       Wx_ref, bw_ref, Wrec_ref, Ws_ref, bs_ref,
                       W1_ref, b1_ref, W2_ref, b2_ref,
                       out_ref):
    f32, bf16 = jnp.float32, jnp.bfloat16
    TBp = x_ref.shape[0]               # (padded) T * B rows, time-major
    GS = Ws_ref.shape[1]               # 2 * HP

    # ---- loop-invariant loads & hoisted broadcasts ----
    maskH = jnp.broadcast_to(mask_ref[...], (TBp, HP))
    invlen2H = jnp.broadcast_to(invlen_ref[...], (TBp, 2 * HP))
    bsB = jnp.broadcast_to(bs_ref[...], (TBp, GS))

    # hoisted input projection: one lane-dense (TBp, 6*HP) matmul + bias for ALL timesteps
    xa = jnp.dot(x_ref[...], Wx_ref[...], preferred_element_type=f32) + bw_ref[...]

    # ---- static window machinery (masks precomputed in the wrapper, 1/window folded in) ----
    dlist = [d for d in range(-w, w + 1) if d != 0]
    shifts = [(d * B) % TBp for d in dlist]
    wm_self = wm_ref[0]                              # (TBp, HP) = invwin broadcast
    wm_shift = [wm_ref[1 + j] for j in range(len(dlist))]

    def win_ctx(h):                                  # window-averaged word context
        acc = h * wm_self
        for s, m in zip(shifts, wm_shift):
            acc = acc + pltpu.roll(h, shift=s, axis=0) * m
        return acc

    # ---- replicated per-batch time reduction: exact log-depth wrap-around roll tree ----
    # (time dim is padded to a power of two in the wrapper, so this is always log-depth)
    red_shifts = []
    s = B
    while s < TBp:
        red_shifts.append(s)
        s *= 2

    def reduce_rep(y):
        acc = y
        for sh in red_shifts:
            acc = acc + pltpu.roll(acc, shift=sh, axis=0)
        return acc

    # ---- recurrence ----
    def step(_, carry):
        h, c, g, cg = carry                          # all (TBp, HP) f32; g/cg replicated per batch
        gb = g.astype(bf16)                          # cast once, reused in both fused matmuls

        ctx = win_ctx(h)
        # fused recurrent matmul: [ctx | g] @ [Wc ; Wg]
        rec_in = jnp.concatenate([ctx.astype(bf16), gb], axis=1)
        pre = xa + jnp.dot(rec_in, Wrec_ref[...], preferred_element_type=f32)

        # gate slices land on 128-lane vreg boundaries -> free slices, no relayouts
        p_i = pre[:, 0 * HP:1 * HP]
        p_f = pre[:, 1 * HP:2 * HP]
        p_r = pre[:, 2 * HP:3 * HP]
        p_o = pre[:, 3 * HP:4 * HP]
        p_u = pre[:, 4 * HP:5 * HP]
        p_s = pre[:, 5 * HP:6 * HP]

        # softmax-normalize {input, self-forget, read-from-global} gates
        m = jnp.maximum(jnp.maximum(p_i, p_f), p_r)
        e_i = jnp.exp(p_i - m)
        e_f = jnp.exp(p_f - m)
        e_r = jnp.exp(p_r - m)
        inv = pl.reciprocal(e_i + e_f + e_r, approx=True)
        g_i = e_i * inv
        g_f = e_f * inv
        g_r = e_r * inv

        o = jax.nn.sigmoid(p_o)
        u = jnp.tanh(p_u)
        f_s = jax.nn.sigmoid(p_s)                    # per-word forget gate toward sentence node

        c_n = (g_f * c + g_r * cg + g_i * u) * maskH
        h_n = (o * jnp.tanh(c_n)) * maskH

        # fused sentence reductions: one roll tree over [h_n | f_s*c_n], masked time-mean
        red = reduce_rep(jnp.concatenate([h_n, f_s * c_n], axis=1)) * invlen2H
        hbar = red[:, :HP]
        csum = red[:, HP:]

        # fused sentence-gate matmul: [g | hbar] @ [Wgs ; Whs]
        s_in = jnp.concatenate([gb, hbar.astype(bf16)], axis=1)
        spre = jnp.dot(s_in, Ws_ref[...], preferred_element_type=f32) + bsB
        fg = jax.nn.sigmoid(spre[:, :HP])
        og = jax.nn.sigmoid(spre[:, HP:])

        cg_n = fg * cg + csum
        g_n = og * jnp.tanh(cg_n)
        return (h_n, c_n, g_n, cg_n)

    zero = jnp.zeros((TBp, HP), f32)
    _, _, g, _ = jax.lax.fori_loop(0, T, step, (zero, zero, zero, zero),
                                   unroll=(T <= 8))

    # ---- fused MLP head + log_softmax (lane-dense padded output) ----
    rep = g[0:B, :]                                  # rows t=0 hold the replicated sentence state
    hid = jnp.tanh(jnp.dot(rep.astype(bf16), W1_ref[...],
                           preferred_element_type=f32) + b1_ref[...])
    logits = jnp.dot(hid.astype(bf16), W2_ref[...],
                     preferred_element_type=f32) + b2_ref[...]   # pad cols biased to -1e9
    mx = jnp.max(logits, axis=-1, keepdims=True)
    z = logits - mx
    lse = jnp.log(jnp.sum(jnp.exp(z), axis=-1, keepdims=True))
    out_ref[...] = z - lse


def _full_spec(shape):
    nd = len(shape)
    return pl.BlockSpec(shape, lambda i, _nd=nd: (0,) * _nd)


def _round_up(v, m):
    return ((v + m - 1) // m) * m


# ----------------------------------------------------------------------------
# Config / params / glue
# ----------------------------------------------------------------------------
class Config:
    n_embed = 20       # vocab size
    d_embed = 32
    padding_idx = 0
    d_hidden = 32
    window_size = 2
    d_out = 4
    fix_embed = True
    batch_fisrt = True  # sic, matching the reference module


def init_params(key, cfg):
    E, H, V, O = cfg.d_embed, cfg.d_hidden, cfg.n_embed, cfg.d_out
    ks = jax.random.split(key, 8)

    def nrm(k, shape, scale=0.1):
        return (scale * jax.random.normal(k, shape)).astype(jnp.float32)

    embed = nrm(ks[0], (V, E), 1.0)
    embed = embed.at[cfg.padding_idx].set(0.0)   # nn.Embedding padding_idx row is zero

    return dict(
        embed=embed,
        Wx=nrm(ks[1], (6, E, H)),
        Wc=nrm(ks[2], (6, H, H)),
        Wg=nrm(ks[3], (6, H, H)),
        bw=jnp.zeros((6, 1, H), jnp.float32),
        Wgs=nrm(ks[4], (2, H, H)),
        Whs=nrm(ks[5], (2, H, H)),
        bs=jnp.zeros((2, 1, H), jnp.float32),
        W1=nrm(ks[6], (H, 2 * H)),
        b1=jnp.zeros((1, 2 * H), jnp.float32),
        W2=nrm(ks[7], (2 * H, O)),
        b2=jnp.zeros((1, O), jnp.float32),
    )


def _pack_params(params, cfg):
    """Each gate gets its own 128-lane block; per-step matmul pairs stacked along K; bf16 operands."""
    H, E, O = cfg.d_hidden, cfg.d_embed, cfg.d_out
    f32, bf16 = jnp.float32, jnp.bfloat16
    HP = _round_up(H, 128)     # lane-padded hidden/state dim (one vreg block per gate)
    EP = _round_up(E, 128)     # lane-padded embedding dim
    D1 = _round_up(2 * H, 128)  # head hidden dim
    OP = _round_up(O, 128)     # lane-dense padded output dim

    def lane_embed(a, width):                  # (din, h) -> (din, width), zero-padded lanes
        return jnp.pad(a, ((0, 0), (0, width - a.shape[1])))

    def fuse_gates(a):                         # (k, din, H) -> (din, k*HP), gate i at lanes [i*HP, i*HP+H)
        k, _, _ = a.shape
        return jnp.concatenate([lane_embed(a[i], HP) for i in range(k)], axis=1)

    def pad_rows(a, rows):                     # zero-pad K rows (padded state lanes stay zero)
        return jnp.pad(a, ((0, rows - a.shape[0]), (0, 0)))

    Wx = pad_rows(fuse_gates(params["Wx"]), EP).astype(bf16)           # (EP, 6*HP)
    bw = fuse_gates(params["bw"]).astype(f32)                          # (1, 6*HP)
    Wrec = jnp.concatenate([pad_rows(fuse_gates(params["Wc"]), HP),    # (2*HP, 6*HP) = [Wc; Wg]
                            pad_rows(fuse_gates(params["Wg"]), HP)], axis=0).astype(bf16)
    Ws = jnp.concatenate([pad_rows(fuse_gates(params["Wgs"]), HP),     # (2*HP, 2*HP) = [Wgs; Whs]
                          pad_rows(fuse_gates(params["Whs"]), HP)], axis=0).astype(bf16)
    bs = fuse_gates(params["bs"]).astype(f32)                          # (1, 2*HP)

    W1 = pad_rows(lane_embed(params["W1"], D1), HP).astype(bf16)       # (HP, D1)
    b1 = lane_embed(params["b1"], D1).astype(f32)                      # (1, D1)
    W2 = pad_rows(lane_embed(params["W2"], OP), D1).astype(bf16)       # (D1, OP)
    b2 = jnp.pad(params["b2"], ((0, 0), (0, OP - O)),
                 constant_values=-1e9).astype(f32)                     # pad logits to -inf-ish
    return (Wx, bw, Wrec, Ws, bs, W1, b1, W2, b2), HP, EP, OP


def classifier_forward(tokens, lengths, params, cfg):
    B, T = tokens.shape
    E, H, O, w = cfg.d_embed, cfg.d_hidden, cfg.d_out, cfg.window_size
    f32, bf16 = jnp.float32, jnp.bfloat16

    weights, HP, EP, OP = _pack_params(params, cfg)

    # pad time to the next power of two so the in-kernel replicated reduction is an exact
    # log-depth wrap-around roll tree for ANY T (padded time rows are fully masked / zero).
    Tp = pl.next_power_of_2(T)
    TBp = Tp * B

    # ---- glue: embedding lookup + time-major layout + per-row scalars ----
    sents = jnp.take(params["embed"], tokens, axis=0)                 # (B, T, E)
    if cfg.fix_embed:                                                 # grad-only in torch
        sents = jax.lax.stop_gradient(sents)
    if cfg.batch_fisrt:
        sents = jnp.transpose(sents, (1, 0, 2))                       # (T, B, E) time-major
    sents = jnp.pad(sents, ((0, Tp - T), (0, 0), (0, EP - E)))        # (Tp, B, EP)
    x2d = sents.reshape(TBp, EP).astype(bf16)

    t_idx = jnp.arange(Tp)
    mask2d = (t_idx[:, None] < lengths[None, :]).astype(f32).reshape(TBp, 1)
    invlen2d = jnp.tile(1.0 / jnp.maximum(lengths, 1).astype(f32), Tp).reshape(TBp, 1)

    # ---- hoisted static window machinery: per-shift masks * 1/window_count, HP-lane broadcast ----
    # window count uses the ORIGINAL T (positional clipping at sequence ends, as in the reference).
    tcl = jnp.clip(t_idx, 0, T - 1)
    wcount = (jnp.minimum(tcl + w, T - 1) - jnp.maximum(tcl - w, 0) + 1).astype(f32)
    invwin_rows = jnp.repeat(1.0 / wcount, B)                         # (TBp,)
    t_rows = jnp.repeat(t_idx, B)                                     # (TBp,)
    terms = [invwin_rows]                                             # self-term scale
    for d in range(-w, w + 1):
        if d == 0:
            continue
        valid = ((t_rows >= d) & (t_rows <= (T - 1 + d))).astype(f32)  # neighbor t-d in [0, T-1]
        terms.append(valid * invwin_rows)
    wm = jnp.broadcast_to(jnp.stack(terms, axis=0)[:, :, None],
                          (len(terms), TBp, HP)).astype(f32)          # (2w+1, TBp, HP)

    kernel = functools.partial(_classifier_kernel, T, B, HP, w)
    ins = (x2d, mask2d, invlen2d, wm) + weights
    out = pl.pallas_call(
        kernel,
        out_shape=jax.ShapeDtypeStruct((B, OP), f32),
        grid=(1,),
        in_specs=[_full_spec(a.shape) for a in ins],
        out_specs=_full_spec((B, OP)),
        compiler_params=pltpu.CompilerParams(dimension_semantics=("arbitrary",)),
    )(*ins)
    return out[:, :O]                                                 # (B, d_out) log-probs


if __name__ == "__main__":
    cfg = Config()
    key = jax.random.PRNGKey(0)
    pkey, dkey = jax.random.split(key)
    params = init_params(pkey, cfg)

    B, T = 2, 8
    tokens = jax.random.randint(dkey, (B, T), 1, cfg.n_embed, dtype=jnp.int32)
    lengths = jnp.array([8, 5], dtype=jnp.int32)
    # pad positions beyond each sequence length with padding_idx
    valid = jnp.arange(T)[None, :] < lengths[:, None]
    tokens = jnp.where(valid, tokens, cfg.padding_idx)

    scores = classifier_forward(tokens, lengths, params, cfg)
    scores = jax.block_until_ready(scores)
    assert scores.shape == (B, cfg.d_out)
    # rows of log_softmax must sum (in prob space) to ~1
    assert jnp.allclose(jnp.exp(scores).sum(-1), 1.0, atol=1e-3)
    print("KERNEL_OK")
</pallas_src>

<mosaic_0001>
module attributes {stable_mosaic.version = 11 : i64} {
  func.func @_classifier_kernel(%arg0: i32, %arg1: memref<16x128xbf16, #tpu.memory_space<vmem>>, %arg2: memref<16x1xf32, #tpu.memory_space<vmem>>, %arg3: memref<16x1xf32, #tpu.memory_space<vmem>>, %arg4: memref<5x16x128xf32, #tpu.memory_space<vmem>>, %arg5: memref<128x768xbf16, #tpu.memory_space<vmem>>, %arg6: memref<1x768xf32, #tpu.memory_space<vmem>>, %arg7: memref<256x768xbf16, #tpu.memory_space<vmem>>, %arg8: memref<256x256xbf16, #tpu.memory_space<vmem>>, %arg9: memref<1x256xf32, #tpu.memory_space<vmem>>, %arg10: memref<128x128xbf16, #tpu.memory_space<vmem>>, %arg11: memref<1x128xf32, #tpu.memory_space<vmem>>, %arg12: memref<128x128xbf16, #tpu.memory_space<vmem>>, %arg13: memref<1x128xf32, #tpu.memory_space<vmem>>, %arg14: memref<2x128xf32, #tpu.memory_space<vmem>>) attributes {dimension_semantics = [#tpu.dimension_semantics<arbitrary>], iteration_bounds = array<i64: 1>, scalar_prefetch = 0 : i64, scratch_operands = 0 : i64, tpu.core_type = #tpu.core_type<tc>, window_params = [{pipeline_mode = #tpu.pipeline_mode<synchronous>, transform_indices = @transform_0, window_bounds = array<i64: 16, 128>}, {pipeline_mode = #tpu.pipeline_mode<synchronous>, transform_indices = @transform_1, window_bounds = array<i64: 16, 1>}, {pipeline_mode = #tpu.pipeline_mode<synchronous>, transform_indices = @transform_2, window_bounds = array<i64: 16, 1>}, {pipeline_mode = #tpu.pipeline_mode<synchronous>, transform_indices = @transform_3, window_bounds = array<i64: 5, 16, 128>}, {pipeline_mode = #tpu.pipeline_mode<synchronous>, transform_indices = @transform_4, window_bounds = array<i64: 128, 768>}, {pipeline_mode = #tpu.pipeline_mode<synchronous>, transform_indices = @transform_5, window_bounds = array<i64: 1, 768>}, {pipeline_mode = #tpu.pipeline_mode<synchronous>, transform_indices = @transform_6, window_bounds = array<i64: 256, 768>}, {pipeline_mode = #tpu.pipeline_mode<synchronous>, transform_indices = @transform_7, window_bounds = array<i64: 256, 256>}, {pipeline_mode = #tpu.pipeline_mode<synchronous>, transform_indices = @transform_8, window_bounds = array<i64: 1, 256>}, {pipeline_mode = #tpu.pipeline_mode<synchronous>, transform_indices = @transform_9, window_bounds = array<i64: 128, 128>}, {pipeline_mode = #tpu.pipeline_mode<synchronous>, transform_indices = @transform_10, window_bounds = array<i64: 1, 128>}, {pipeline_mode = #tpu.pipeline_mode<synchronous>, transform_indices = @transform_11, window_bounds = array<i64: 128, 128>}, {pipeline_mode = #tpu.pipeline_mode<synchronous>, transform_indices = @transform_12, window_bounds = array<i64: 1, 128>}, {pipeline_mode = #tpu.pipeline_mode<synchronous>, transform_indices = @transform_13, window_bounds = array<i64: 2, 128>}]} {
    %c0 = arith.constant 0 : index
    %c0_0 = arith.constant 0 : index
    %0 = vector.load %arg2[%c0, %c0_0] : memref<16x1xf32, #tpu.memory_space<vmem>>, vector<16x1xf32>
    %1 = vector.shape_cast %0 : vector<16x1xf32> to vector<16x1xf32>
    %2 = vector.broadcast %1 : vector<16x1xf32> to vector<16x128xf32>
    %c0_1 = arith.constant 0 : index
    %c0_2 = arith.constant 0 : index
    %3 = vector.load %arg3[%c0_1, %c0_2] : memref<16x1xf32, #tpu.memory_space<vmem>>, vector<16x1xf32>
    %4 = vector.shape_cast %3 : vector<16x1xf32> to vector<16x1xf32>
    %5 = vector.broadcast %4 : vector<16x1xf32> to vector<16x256xf32>
    %c0_3 = arith.constant 0 : index
    %c0_4 = arith.constant 0 : index
    %6 = vector.load %arg9[%c0_3, %c0_4] : memref<1x256xf32, #tpu.memory_space<vmem>>, vector<1x256xf32>
    %7 = vector.shape_cast %6 : vector<1x256xf32> to vector<1x256xf32>
    %8 = vector.broadcast %7 : vector<1x256xf32> to vector<16x256xf32>
    %c0_5 = arith.constant 0 : index
    %c0_6 = arith.constant 0 : index
    %9 = vector.load %arg1[%c0_5, %c0_6] : memref<16x128xbf16, #tpu.memory_space<vmem>>, vector<16x128xbf16>
    %c0_7 = arith.constant 0 : index
    %c0_8 = arith.constant 0 : index
    %10 = vector.load %arg5[%c0_7, %c0_8] : memref<128x768xbf16, #tpu.memory_space<vmem>>, vector<128x768xbf16>
    %cst = arith.constant dense<0.000000e+00> : vector<16x768xf32>
    %11 = tpu.matmul %9, %10, %cst {dimension_numbers = #tpu.dot_dimension_numbers<[1], [0], [0], [1], [0, 0, 1, 1], [], []>} : vector<16x128xbf16>, vector<128x768xbf16>, vector<16x768xf32> -> vector<16x768xf32>
    %c0_9 = arith.constant 0 : index
    %c0_10 = arith.constant 0 : index
    %12 = vector.load %arg6[%c0_9, %c0_10] : memref<1x768xf32, #tpu.memory_space<vmem>>, vector<1x768xf32>
    %13 = vector.broadcast %12 : vector<1x768xf32> to vector<16x768xf32>
    %14 = arith.addf %11, %13 : vector<16x768xf32>
    %c0_11 = arith.constant 0 : index
    %c0_12 = arith.constant 0 : index
    %c0_13 = arith.constant 0 : index
    %15 = vector.load %arg4[%c0_11, %c0_12, %c0_13] : memref<5x16x128xf32, #tpu.memory_space<vmem>>, vector<1x16x128xf32>
    %16 = vector.shape_cast %15 : vector<1x16x128xf32> to vector<16x128xf32>
    %c1 = arith.constant 1 : index
    %c0_14 = arith.constant 0 : index
    %c0_15 = arith.constant 0 : index
    %17 = vector.load %arg4[%c1, %c0_14, %c0_15] : memref<5x16x128xf32, #tpu.memory_space<vmem>>, vector<1x16x128xf32>
    %18 = vector.shape_cast %17 : vector<1x16x128xf32> to vector<16x128xf32>
    %c2 = arith.constant 2 : index
    %c0_16 = arith.constant 0 : index
    %c0_17 = arith.constant 0 : index
    %19 = vector.load %arg4[%c2, %c0_16, %c0_17] : memref<5x16x128xf32, #tpu.memory_space<vmem>>, vector<1x16x128xf32>
    %20 = vector.shape_cast %19 : vector<1x16x128xf32> to vector<16x128xf32>
    %c3 = arith.constant 3 : index
    %c0_18 = arith.constant 0 : index
    %c0_19 = arith.constant 0 : index
    %21 = vector.load %arg4[%c3, %c0_18, %c0_19] : memref<5x16x128xf32, #tpu.memory_space<vmem>>, vector<1x16x128xf32>
    %22 = vector.shape_cast %21 : vector<1x16x128xf32> to vector<16x128xf32>
    %c4 = arith.constant 4 : index
    %c0_20 = arith.constant 0 : index
    %c0_21 = arith.constant 0 : index
    %23 = vector.load %arg4[%c4, %c0_20, %c0_21] : memref<5x16x128xf32, #tpu.memory_space<vmem>>, vector<1x16x128xf32>
    %24 = vector.shape_cast %23 : vector<1x16x128xf32> to vector<16x128xf32>
    %cst_22 = arith.constant 0.000000e+00 : f32
    %25 = vector.broadcast %cst_22 : f32 to vector<16x128xf32>
    %c0_i32 = arith.constant 0 : i32
    %26 = arith.truncf %25 : vector<16x128xf32> to vector<16x128xbf16>
    %27 = arith.mulf %25, %16 : vector<16x128xf32>
    %c12_i32 = arith.constant 12 : i32
    %28 = tpu.dynamic_rotate %25 by %c12_i32 dim 0 : vector<16x128xf32>, i32 -> vector<16x128xf32>
    %29 = arith.mulf %28, %18 : vector<16x128xf32>
    %30 = arith.addf %27, %29 : vector<16x128xf32>
    %c14_i32 = arith.constant 14 : i32
    %31 = tpu.dynamic_rotate %25 by %c14_i32 dim 0 : vector<16x128xf32>, i32 -> vector<16x128xf32>
    %32 = arith.mulf %31, %20 : vector<16x128xf32>
    %33 = arith.addf %30, %32 : vector<16x128xf32>
    %c2_i32 = arith.constant 2 : i32
    %34 = tpu.dynamic_rotate %25 by %c2_i32 dim 0 : vector<16x128xf32>, i32 -> vector<16x128xf32>
    %35 = arith.mulf %34, %22 : vector<16x128xf32>
    %36 = arith.addf %33, %35 : vector<16x128xf32>
    %c4_i32 = arith.constant 4 : i32
    %37 = tpu.dynamic_rotate %25 by %c4_i32 dim 0 : vector<16x128xf32>, i32 -> vector<16x128xf32>
    %38 = arith.mulf %37, %24 : vector<16x128xf32>
    %39 = arith.addf %36, %38 : vector<16x128xf32>
    %40 = arith.truncf %39 : vector<16x128xf32> to vector<16x128xbf16>
    %41 = tpu.concatenate %40, %26 in 1 : vector<16x128xbf16>, vector<16x128xbf16> -> vector<16x256xbf16>
    %c0_23 = arith.constant 0 : index
    %c0_24 = arith.constant 0 : index
    %42 = vector.load %arg7[%c0_23, %c0_24] : memref<256x768xbf16, #tpu.memory_space<vmem>>, vector<256x768xbf16>
    %cst_25 = arith.constant dense<0.000000e+00> : vector<16x768xf32>
    %43 = tpu.matmul %41, %42, %cst_25 {dimension_numbers = #tpu.dot_dimension_numbers<[1], [0], [0], [1], [0, 0, 1, 1], [], []>} : vector<16x256xbf16>, vector<256x768xbf16>, vector<16x768xf32> -> vector<16x768xf32>
    %44 = arith.addf %14, %43 : vector<16x768xf32>
    %45 = vector.extract_strided_slice %44 {offsets = [0, 0], sizes = [16, 128], strides = [1, 1]} : vector<16x768xf32> to vector<16x128xf32>
    %46 = vector.extract_strided_slice %44 {offsets = [0, 128], sizes = [16, 128], strides = [1, 1]} : vector<16x768xf32> to vector<16x128xf32>
    %47 = vector.extract_strided_slice %44 {offsets = [0, 256], sizes = [16, 128], strides = [1, 1]} : vector<16x768xf32> to vector<16x128xf32>
    %48 = vector.extract_strided_slice %44 {offsets = [0, 384], sizes = [16, 128], strides = [1, 1]} : vector<16x768xf32> to vector<16x128xf32>
    %49 = vector.extract_strided_slice %44 {offsets = [0, 512], sizes = [16, 128], strides = [1, 1]} : vector<16x768xf32> to vector<16x128xf32>
    %50 = vector.extract_strided_slice %44 {offsets = [0, 640], sizes = [16, 128], strides = [1, 1]} : vector<16x768xf32> to vector<16x128xf32>
    %51 = arith.maximumf %45, %46 : vector<16x128xf32>
    %52 = arith.maximumf %51, %47 : vector<16x128xf32>
    %53 = arith.subf %45, %52 : vector<16x128xf32>
    %54 = math.exp %53 : vector<16x128xf32>
    %55 = arith.subf %46, %52 : vector<16x128xf32>
    %56 = math.exp %55 : vector<16x128xf32>
    %57 = arith.subf %47, %52 : vector<16x128xf32>
    %58 = math.exp %57 : vector<16x128xf32>
    %59 = arith.addf %54, %56 : vector<16x128xf32>
    %60 = arith.addf %59, %58 : vector<16x128xf32>
    %61 = tpu.reciprocal %60 {approx = true} : vector<16x128xf32> -> vector<16x128xf32>
    %62 = arith.mulf %54, %61 : vector<16x128xf32>
    %63 = arith.mulf %56, %61 : vector<16x128xf32>
    %64 = arith.mulf %58, %61 : vector<16x128xf32>
    %65 = arith.negf %48 : vector<16x128xf32>
    %66 = math.exp %65 : vector<16x128xf32>
    %cst_26 = arith.constant 1.000000e+00 : f32
    %67 = vector.broadcast %cst_26 : f32 to vector<16x128xf32>
    %68 = arith.addf %67, %66 : vector<16x128xf32>
    %69 = arith.divf %67, %68 : vector<16x128xf32>
    %70 = math.tanh %49 : vector<16x128xf32>
    %71 = arith.negf %50 : vector<16x128xf32>
    %72 = math.exp %71 : vector<16x128xf32>
    %cst_27 = arith.constant 1.000000e+00 : f32
    %73 = vector.broadcast %cst_27 : f32 to vector<16x128xf32>
    %74 = arith.addf %73, %72 : vector<16x128xf32>
    %75 = arith.divf %73, %74 : vector<16x128xf32>
    %76 = arith.mulf %63, %25 : vector<16x128xf32>
    %77 = arith.mulf %64, %25 : vector<16x128xf32>
    %78 = arith.addf %76, %77 : vector<16x128xf32>
    %79 = arith.mulf %62, %70 : vector<16x128xf32>
    %80 = arith.addf %78, %79 : vector<16x128xf32>
    %81 = arith.mulf %80, %2 : vector<16x128xf32>
    %82 = math.tanh %81 : vector<16x128xf32>
    %83 = arith.mulf %69, %82 : vector<16x128xf32>
    %84 = arith.mulf %83, %2 : vector<16x128xf32>
    %85 = arith.mulf %75, %81 : vector<16x128xf32>
    %86 = tpu.concatenate %84, %85 in 1 : vector<16x128xf32>, vector<16x128xf32> -> vector<16x256xf32>
    %c2_i32_28 = arith.constant 2 : i32
    %87 = tpu.dynamic_rotate %86 by %c2_i32_28 dim 0 : vector<16x256xf32>, i32 -> vector<16x256xf32>
    %88 = arith.addf %86, %87 : vector<16x256xf32>
    %c4_i32_29 = arith.constant 4 : i32
    %89 = tpu.dynamic_rotate %88 by %c4_i32_29 dim 0 : vector<16x256xf32>, i32 -> vector<16x256xf32>
    %90 = arith.addf %88, %89 : vector<16x256xf32>
    %c8_i32 = arith.constant 8 : i32
    %91 = tpu.dynamic_rotate %90 by %c8_i32 dim 0 : vector<16x256xf32>, i32 -> vector<16x256xf32>
    %92 = arith.addf %90, %91 : vector<16x256xf32>
    %93 = arith.mulf %92, %5 : vector<16x256xf32>
    %94 = vector.extract_strided_slice %93 {offsets = [0, 0], sizes = [16, 128], strides = [1, 1]} : vector<16x256xf32> to vector<16x128xf32>
    %95 = vector.extract_strided_slice %93 {offsets = [0, 128], sizes = [16, 128], strides = [1, 1]} : vector<16x256xf32> to vector<16x128xf32>
    %96 = arith.truncf %94 : vector<16x128xf32> to vector<16x128xbf16>
    %97 = tpu.concatenate %26, %96 in 1 : vector<16x128xbf16>, vector<16x128xbf16> -> vector<16x256xbf16>
    %c0_30 = arith.constant 0 : index
    %c0_31 = arith.constant 0 : index
    %98 = vector.load %arg8[%c0_30, %c0_31] : memref<256x256xbf16, #tpu.memory_space<vmem>>, vector<256x256xbf16>
    %cst_32 = arith.constant dense<0.000000e+00> : vector<16x256xf32>
    %99 = tpu.matmul %97, %98, %cst_32 {dimension_numbers = #tpu.dot_dimension_numbers<[1], [0], [0], [1], [0, 0, 1, 1], [], []>} : vector<16x256xbf16>, vector<256x256xbf16>, vector<16x256xf32> -> vector<16x256xf32>
    %100 = arith.addf %99, %8 : vector<16x256xf32>
    %101 = vector.extract_strided_slice %100 {offsets = [0, 0], sizes = [16, 128], strides = [1, 1]} : vector<16x256xf32> to vector<16x128xf32>
    %102 = arith.negf %101 : vector<16x128xf32>
    %103 = math.exp %102 : vector<16x128xf32>
    %cst_33 = arith.constant 1.000000e+00 : f32
    %104 = vector.broadcast %cst_33 : f32 to vector<16x128xf32>
    %105 = arith.addf %104, %103 : vector<16x128xf32>
    %106 = arith.divf %104, %105 : vector<16x128xf32>
    %107 = vector.extract_strided_slice %100 {offsets = [0, 128], sizes = [16, 128], strides = [1, 1]} : vector<16x256xf32> to vector<16x128xf32>
    %108 = arith.negf %107 : vector<16x128xf32>
    %109 = math.exp %108 : vector<16x128xf32>
    %cst_34 = arith.constant 1.000000e+00 : f32
    %110 = vector.broadcast %cst_34 : f32 to vector<16x128xf32>
    %111 = arith.addf %110, %109 : vector<16x128xf32>
    %112 = arith.divf %110, %111 : vector<16x128xf32>
    %113 = arith.mulf %106, %25 : vector<16x128xf32>
    %114 = arith.addf %113, %95 : vector<16x128xf32>
    %115 = math.tanh %114 : vector<16x128xf32>
    %116 = arith.mulf %112, %115 : vector<16x128xf32>
    %c1_i32 = arith.constant 1 : i32
    %117 = arith.truncf %116 : vector<16x128xf32> to vector<16x128xbf16>
    %118 = arith.mulf %84, %16 : vector<16x128xf32>
    %c12_i32_35 = arith.constant 12 : i32
    %119 = tpu.dynamic_rotate %84 by %c12_i32_35 dim 0 : vector<16x128xf32>, i32 -> vector<16x128xf32>
    %120 = arith.mulf %119, %18 : vector<16x128xf32>
    %121 = arith.addf %118, %120 : vector<16x128xf32>
    %c14_i32_36 = arith.constant 14 : i32
    %122 = tpu.dynamic_rotate %84 by %c14_i32_36 dim 0 : vector<16x128xf32>, i32 -> vector<16x128xf32>
    %123 = arith.mulf %122, %20 : vector<16x128xf32>
    %124 = arith.addf %121, %123 : vector<16x128xf32>
    %c2_i32_37 = arith.constant 2 : i32
    %125 = tpu.dynamic_rotate %84 by %c2_i32_37 dim 0 : vector<16x128xf32>, i32 -> vector<16x128xf32>
    %126 = arith.mulf %125, %22 : vector<16x128xf32>
    %127 = arith.addf %124, %126 : vector<16x128xf32>
    %c4_i32_38 = arith.constant 4 : i32
    %128 = tpu.dynamic_rotate %84 by %c4_i32_38 dim 0 : vector<16x128xf32>, i32 -> vector<16x128xf32>
    %129 = arith.mulf %128, %24 : vector<16x128xf32>
    %130 = arith.addf %127, %129 : vector<16x128xf32>
    %131 = arith.truncf %130 : vector<16x128xf32> to vector<16x128xbf16>
    %132 = tpu.concatenate %131, %117 in 1 : vector<16x128xbf16>, vector<16x128xbf16> -> vector<16x256xbf16>
    %c0_39 = arith.constant 0 : index
    %c0_40 = arith.constant 0 : index
    %133 = vector.load %arg7[%c0_39, %c0_40] : memref<256x768xbf16, #tpu.memory_space<vmem>>, vector<256x768xbf16>
    %cst_41 = arith.constant dense<0.000000e+00> : vector<16x768xf32>
    %134 = tpu.matmul %132, %133, %cst_41 {dimension_numbers = #tpu.dot_dimension_numbers<[1], [0], [0], [1], [0, 0, 1, 1], [], []>} : vector<16x256xbf16>, vector<256x768xbf16>, vector<16x768xf32> -> vector<16x768xf32>
    %135 = arith.addf %14, %134 : vector<16x768xf32>
    %136 = vector.extract_strided_slice %135 {offsets = [0, 0], sizes = [16, 128], strides = [1, 1]} : vector<16x768xf32> to vector<16x128xf32>
    %137 = vector.extract_strided_slice %135 {offsets = [0, 128], sizes = [16, 128], strides = [1, 1]} : vector<16x768xf32> to vector<16x128xf32>
    %138 = vector.extract_strided_slice %135 {offsets = [0, 256], sizes = [16, 128], strides = [1, 1]} : vector<16x768xf32> to vector<16x128xf32>
    %139 = vector.extract_strided_slice %135 {offsets = [0, 384], sizes = [16, 128], strides = [1, 1]} : vector<16x768xf32> to vector<16x128xf32>
    %140 = vector.extract_strided_slice %135 {offsets = [0, 512], sizes = [16, 128], strides = [1, 1]} : vector<16x768xf32> to vector<16x128xf32>
    %141 = vector.extract_strided_slice %135 {offsets = [0, 640], sizes = [16, 128], strides = [1, 1]} : vector<16x768xf32> to vector<16x128xf32>
    %142 = arith.maximumf %136, %137 : vector<16x128xf32>
    %143 = arith.maximumf %142, %138 : vector<16x128xf32>
    %144 = arith.subf %136, %143 : vector<16x128xf32>
    %145 = math.exp %144 : vector<16x128xf32>
    %146 = arith.subf %137, %143 : vector<16x128xf32>
    %147 = math.exp %146 : vector<16x128xf32>
    %148 = arith.subf %138, %143 : vector<16x128xf32>
    %149 = math.exp %148 : vector<16x128xf32>
    %150 = arith.addf %145, %147 : vector<16x128xf32>
    %151 = arith.addf %150, %149 : vector<16x128xf32>
    %152 = tpu.reciprocal %151 {approx = true} : vector<16x128xf32> -> vector<16x128xf32>
    %153 = arith.mulf %145, %152 : vector<16x128xf32>
    %154 = arith.mulf %147, %152 : vector<16x128xf32>
    %155 = arith.mulf %149, %152 : vector<16x128xf32>
    %156 = arith.negf %139 : vector<16x128xf32>
    %157 = math.exp %156 : vector<16x128xf32>
    %cst_42 = arith.constant 1.000000e+00 : f32
    %158 = vector.broadcast %cst_42 : f32 to vector<16x128xf32>
    %159 = arith.addf %158, %157 : vector<16x128xf32>
    %160 = arith.divf %158, %159 : vector<16x128xf32>
    %161 = math.tanh %140 : vector<16x128xf32>
    %162 = arith.negf %141 : vector<16x128xf32>
    %163 = math.exp %162 : vector<16x128xf32>
    %cst_43 = arith.constant 1.000000e+00 : f32
    %164 = vector.broadcast %cst_43 : f32 to vector<16x128xf32>
    %165 = arith.addf %164, %163 : vector<16x128xf32>
    %166 = arith.divf %164, %165 : vector<16x128xf32>
    %167 = arith.mulf %154, %81 : vector<16x128xf32>
    %168 = arith.mulf %155, %114 : vector<16x128xf32>
    %169 = arith.addf %167, %168 : vector<16x128xf32>
    %170 = arith.mulf %153, %161 : vector<16x128xf32>
    %171 = arith.addf %169, %170 : vector<16x128xf32>
    %172 = arith.mulf %171, %2 : vector<16x128xf32>
    %173 = math.tanh %172 : vector<16x128xf32>
    %174 = arith.mulf %160, %173 : vector<16x128xf32>
    %175 = arith.mulf %174, %2 : vector<16x128xf32>
    %176 = arith.mulf %166, %172 : vector<16x128xf32>
    %177 = tpu.concatenate %175, %176 in 1 : vector<16x128xf32>, vector<16x128xf32> -> vector<16x256xf32>
    %c2_i32_44 = arith.constant 2 : i32
    %178 = tpu.dynamic_rotate %177 by %c2_i32_44 dim 0 : vector<16x256xf32>, i32 -> vector<16x256xf32>
    %179 = arith.addf %177, %178 : vector<16x256xf32>
    %c4_i32_45 = arith.constant 4 : i32
    %180 = tpu.dynamic_rotate %179 by %c4_i32_45 dim 0 : vector<16x256xf32>, i32 -> vector<16x256xf32>
    %181 = arith.addf %179, %180 : vector<16x256xf32>
    %c8_i32_46 = arith.constant 8 : i32
    %182 = tpu.dynamic_rotate %181 by %c8_i32_46 dim 0 : vector<16x256xf32>, i32 -> vector<16x256xf32>
    %183 = arith.addf %181, %182 : vector<16x256xf32>
    %184 = arith.mulf %183, %5 : vector<16x256xf32>
    %185 = vector.extract_strided_slice %184 {offsets = [0, 0], sizes = [16, 128], strides = [1, 1]} : vector<16x256xf32> to vector<16x128xf32>
    %186 = vector.extract_strided_slice %184 {offsets = [0, 128], sizes = [16, 128], strides = [1, 1]} : vector<16x256xf32> to vector<16x128xf32>
    %187 = arith.truncf %185 : vector<16x128xf32> to vector<16x128xbf16>
    %188 = tpu.concatenate %117, %187 in 1 : vector<16x128xbf16>, vector<16x128xbf16> -> vector<16x256xbf16>
    %c0_47 = arith.constant 0 : index
    %c0_48 = arith.constant 0 : index
    %189 = vector.load %arg8[%c0_47, %c0_48] : memref<256x256xbf16, #tpu.memory_space<vmem>>, vector<256x256xbf16>
    %cst_49 = arith.constant dense<0.000000e+00> : vector<16x256xf32>
    %190 = tpu.matmul %188, %189, %cst_49 {dimension_numbers = #tpu.dot_dimension_numbers<[1], [0], [0], [1], [0, 0, 1, 1], [], []>} : vector<16x256xbf16>, vector<256x256xbf16>, vector<16x256xf32> -> vector<16x256xf32>
    %191 = arith.addf %190, %8 : vector<16x256xf32>
    %192 = vector.extract_strided_slice %191 {offsets = [0, 0], sizes = [16, 128], strides = [1, 1]} : vector<16x256xf32> to vector<16x128xf32>
    %193 = arith.negf %192 : vector<16x128xf32>
    %194 = math.exp %193 : vector<16x128xf32>
    %cst_50 = arith.constant 1.000000e+00 : f32
    %195 = vector.broadcast %cst_50 : f32 to vector<16x128xf32>
    %196 = arith.addf %195, %194 : vector<16x128xf32>
    %197 = arith.divf %195, %196 : vector<16x128xf32>
    %198 = vector.extract_strided_slice %191 {offsets = [0, 128], sizes = [16, 128], strides = [1, 1]} : vector<16x256xf32> to vector<16x128xf32>
    %199 = arith.negf %198 : vector<16x128xf32>
    %200 = math.exp %199 : vector<16x128xf32>
    %cst_51 = arith.constant 1.000000e+00 : f32
    %201 = vector.broadcast %cst_51 : f32 to vector<16x128xf32>
    %202 = arith.addf %201, %200 : vector<16x128xf32>
    %203 = arith.divf %201, %202 : vector<16x128xf32>
    %204 = arith.mulf %197, %114 : vector<16x128xf32>
    %205 = arith.addf %204, %186 : vector<16x128xf32>
    %206 = math.tanh %205 : vector<16x128xf32>
    %207 = arith.mulf %203, %206 : vector<16x128xf32>
    %c2_i32_52 = arith.constant 2 : i32
    %208 = arith.truncf %207 : vector<16x128xf32> to vector<16x128xbf16>
    %209 = arith.mulf %175, %16 : vector<16x128xf32>
    %c12_i32_53 = arith.constant 12 : i32
    %210 = tpu.dynamic_rotate %175 by %c12_i32_53 dim 0 : vector<16x128xf32>, i32 -> vector<16x128xf32>
    %211 = arith.mulf %210, %18 : vector<16x128xf32>
    %212 = arith.addf %209, %211 : vector<16x128xf32>
    %c14_i32_54 = arith.constant 14 : i32
    %213 = tpu.dynamic_rotate %175 by %c14_i32_54 dim 0 : vector<16x128xf32>, i32 -> vector<16x128xf32>
    %214 = arith.mulf %213, %20 : vector<16x128xf32>
    %215 = arith.addf %212, %214 : vector<16x128xf32>
    %c2_i32_55 = arith.constant 2 : i32
    %216 = tpu.dynamic_rotate %175 by %c2_i32_55 dim 0 : vector<16x128xf32>, i32 -> vector<16x128xf32>
    %217 = arith.mulf %216, %22 : vector<16x128xf32>
    %218 = arith.addf %215, %217 : vector<16x128xf32>
    %c4_i32_56 = arith.constant 4 : i32
    %219 = tpu.dynamic_rotate %175 by %c4_i32_56 dim 0 : vector<16x128xf32>, i32 -> vector<16x128xf32>
    %220 = arith.mulf %219, %24 : vector<16x128xf32>
    %221 = arith.addf %218, %220 : vector<16x128xf32>
    %222 = arith.truncf %221 : vector<16x128xf32> to vector<16x128xbf16>
    %223 = tpu.concatenate %222, %208 in 1 : vector<16x128xbf16>, vector<16x128xbf16> -> vector<16x256xbf16>
    %c0_57 = arith.constant 0 : index
    %c0_58 = arith.constant 0 : index
    %224 = vector.load %arg7[%c0_57, %c0_58] : memref<256x768xbf16, #tpu.memory_space<vmem>>, vector<256x768xbf16>
    %cst_59 = arith.constant dense<0.000000e+00> : vector<16x768xf32>
    %225 = tpu.matmul %223, %224, %cst_59 {dimension_numbers = #tpu.dot_dimension_numbers<[1], [0], [0], [1], [0, 0, 1, 1], [], []>} : vector<16x256xbf16>, vector<256x768xbf16>, vector<16x768xf32> -> vector<16x768xf32>
    %226 = arith.addf %14, %225 : vector<16x768xf32>
    %227 = vector.extract_strided_slice %226 {offsets = [0, 0], sizes = [16, 128], strides = [1, 1]} : vector<16x768xf32> to vector<16x128xf32>
    %228 = vector.extract_strided_slice %226 {offsets = [0, 128], sizes = [16, 128], strides = [1, 1]} : vector<16x768xf32> to vector<16x128xf32>
    %229 = vector.extract_strided_slice %226 {offsets = [0, 256], sizes = [16, 128], strides = [1, 1]} : vector<16x768xf32> to vector<16x128xf32>
    %230 = vector.extract_strided_slice %226 {offsets = [0, 384], sizes = [16, 128], strides = [1, 1]} : vector<16x768xf32> to vector<16x128xf32>
    %231 = vector.extract_strided_slice %226 {offsets = [0, 512], sizes = [16, 128], strides = [1, 1]} : vector<16x768xf32> to vector<16x128xf32>
    %232 = vector.extract_strided_slice %226 {offsets = [0, 640], sizes = [16, 128], strides = [1, 1]} : vector<16x768xf32> to vector<16x128xf32>
    %233 = arith.maximumf %227, %228 : vector<16x128xf32>
    %234 = arith.maximumf %233, %229 : vector<16x128xf32>
    %235 = arith.subf %227, %234 : vector<16x128xf32>
    %236 = math.exp %235 : vector<16x128xf32>
    %237 = arith.subf %228, %234 : vector<16x128xf32>
    %238 = math.exp %237 : vector<16x128xf32>
    %239 = arith.subf %229, %234 : vector<16x128xf32>
    %240 = math.exp %239 : vector<16x128xf32>
    %241 = arith.addf %236, %238 : vector<16x128xf32>
    %242 = arith.addf %241, %240 : vector<16x128xf32>
    %243 = tpu.reciprocal %242 {approx = true} : vector<16x128xf32> -> vector<16x128xf32>
    %244 = arith.mulf %236, %243 : vector<16x128xf32>
    %245 = arith.mulf %238, %243 : vector<16x128xf32>
    %246 = arith.mulf %240, %243 : vector<16x128xf32>
    %247 = arith.negf %230 : vector<16x128xf32>
    %248 = math.exp %247 : vector<16x128xf32>
    %cst_60 = arith.constant 1.000000e+00 : f32
    %249 = vector.broadcast %cst_60 : f32 to vector<16x128xf32>
    %250 = arith.addf %249, %248 : vector<16x128xf32>
    %251 = arith.divf %249, %250 : vector<16x128xf32>
    %252 = math.tanh %231 : vector<16x128xf32>
    %253 = arith.negf %232 : vector<16x128xf32>
    %254 = math.exp %253 : vector<16x128xf32>
    %cst_61 = arith.constant 1.000000e+00 : f32
    %255 = vector.broadcast %cst_61 : f32 to vector<16x128xf32>
    %256 = arith.addf %255, %254 : vector<16x128xf32>
    %257 = arith.divf %255, %256 : vector<16x128xf32>
    %258 = arith.mulf %245, %172 : vector<16x128xf32>
    %259 = arith.mulf %246, %205 : vector<16x128xf32>
    %260 = arith.addf %258, %259 : vector<16x128xf32>
    %261 = arith.mulf %244, %252 : vector<16x128xf32>
    %262 = arith.addf %260, %261 : vector<16x128xf32>
    %263 = arith.mulf %262, %2 : vector<16x128xf32>
    %264 = math.tanh %263 : vector<16x128xf32>
    %265 = arith.mulf %251, %264 : vector<16x128xf32>
    %266 = arith.mulf %265, %2 : vector<16x128xf32>
    %267 = arith.mulf %257, %263 : vector<16x128xf32>
    %268 = tpu.concatenate %266, %267 in 1 : vector<16x128xf32>, vector<16x128xf32> -> vector<16x256xf32>
    %c2_i32_62 = arith.constant 2 : i32
    %269 = tpu.dynamic_rotate %268 by %c2_i32_62 dim 0 : vector<16x256xf32>, i32 -> vector<16x256xf32>
    %270 = arith.addf %268, %269 : vector<16x256xf32>
    %c4_i32_63 = arith.constant 4 : i32
    %271 = tpu.dynamic_rotate %270 by %c4_i32_63 dim 0 : vector<16x256xf32>, i32 -> vector<16x256xf32>
    %272 = arith.addf %270, %271 : vector<16x256xf32>
    %c8_i32_64 = arith.constant 8 : i32
    %273 = tpu.dynamic_rotate %272 by %c8_i32_64 dim 0 : vector<16x256xf32>, i32 -> vector<16x256xf32>
    %274 = arith.addf %272, %273 : vector<16x256xf32>
    %275 = arith.mulf %274, %5 : vector<16x256xf32>
    %276 = vector.extract_strided_slice %275 {offsets = [0, 0], sizes = [16, 128], strides = [1, 1]} : vector<16x256xf32> to vector<16x128xf32>
    %277 = vector.extract_strided_slice %275 {offsets = [0, 128], sizes = [16, 128], strides = [1, 1]} : vector<16x256xf32> to vector<16x128xf32>
    %278 = arith.truncf %276 : vector<16x128xf32> to vector<16x128xbf16>
    %279 = tpu.concatenate %208, %278 in 1 : vector<16x128xbf16>, vector<16x128xbf16> -> vector<16x256xbf16>
    %c0_65 = arith.constant 0 : index
    %c0_66 = arith.constant 0 : index
    %280 = vector.load %arg8[%c0_65, %c0_66] : memref<256x256xbf16, #tpu.memory_space<vmem>>, vector<256x256xbf16>
    %cst_67 = arith.constant dense<0.000000e+00> : vector<16x256xf32>
    %281 = tpu.matmul %279, %280, %cst_67 {dimension_numbers = #tpu.dot_dimension_numbers<[1], [0], [0], [1], [0, 0, 1, 1], [], []>} : vector<16x256xbf16>, vector<256x256xbf16>, vector<16x256xf32> -> vector<16x256xf32>
    %282 = arith.addf %281, %8 : vector<16x256xf32>
    %283 = vector.extract_strided_slice %282 {offsets = [0, 0], sizes = [16, 128], strides = [1, 1]} : vector<16x256xf32> to vector<16x128xf32>
    %284 = arith.negf %283 : vector<16x128xf32>
    %285 = math.exp %284 : vector<16x128xf32>
    %cst_68 = arith.constant 1.000000e+00 : f32
    %286 = vector.broadcast %cst_68 : f32 to vector<16x128xf32>
    %287 = arith.addf %286, %285 : vector<16x128xf32>
    %288 = arith.divf %286, %287 : vector<16x128xf32>
    %289 = vector.extract_strided_slice %282 {offsets = [0, 128], sizes = [16, 128], strides = [1, 1]} : vector<16x256xf32> to vector<16x128xf32>
    %290 = arith.negf %289 : vector<16x128xf32>
    %291 = math.exp %290 : vector<16x128xf32>
    %cst_69 = arith.constant 1.000000e+00 : f32
    %292 = vector.broadcast %cst_69 : f32 to vector<16x128xf32>
    %293 = arith.addf %292, %291 : vector<16x128xf32>
    %294 = arith.divf %292, %293 : vector<16x128xf32>
    %295 = arith.mulf %288, %205 : vector<16x128xf32>
    %296 = arith.addf %295, %277 : vector<16x128xf32>
    %297 = math.tanh %296 : vector<16x128xf32>
    %298 = arith.mulf %294, %297 : vector<16x128xf32>
    %c3_i32 = arith.constant 3 : i32
    %299 = arith.truncf %298 : vector<16x128xf32> to vector<16x128xbf16>
    %300 = arith.mulf %266, %16 : vector<16x128xf32>
    %c12_i32_70 = arith.constant 12 : i32
    %301 = tpu.dynamic_rotate %266 by %c12_i32_70 dim 0 : vector<16x128xf32>, i32 -> vector<16x128xf32>
    %302 = arith.mulf %301, %18 : vector<16x128xf32>
    %303 = arith.addf %300, %302 : vector<16x128xf32>
    %c14_i32_71 = arith.constant 14 : i32
    %304 = tpu.dynamic_rotate %266 by %c14_i32_71 dim 0 : vector<16x128xf32>, i32 -> vector<16x128xf32>
    %305 = arith.mulf %304, %20 : vector<16x128xf32>
    %306 = arith.addf %303, %305 : vector<16x128xf32>
    %c2_i32_72 = arith.constant 2 : i32
    %307 = tpu.dynamic_rotate %266 by %c2_i32_72 dim 0 : vector<16x128xf32>, i32 -> vector<16x128xf32>
    %308 = arith.mulf %307, %22 : vector<16x128xf32>
    %309 = arith.addf %306, %308 : vector<16x128xf32>
    %c4_i32_73 = arith.constant 4 : i32
    %310 = tpu.dynamic_rotate %266 by %c4_i32_73 dim 0 : vector<16x128xf32>, i32 -> vector<16x128xf32>
    %311 = arith.mulf %310, %24 : vector<16x128xf32>
    %312 = arith.addf %309, %311 : vector<16x128xf32>
    %313 = arith.truncf %312 : vector<16x128xf32> to vector<16x128xbf16>
    %314 = tpu.concatenate %313, %299 in 1 : vector<16x128xbf16>, vector<16x128xbf16> -> vector<16x256xbf16>
    %c0_74 = arith.constant 0 : index
    %c0_75 = arith.constant 0 : index
    %315 = vector.load %arg7[%c0_74, %c0_75] : memref<256x768xbf16, #tpu.memory_space<vmem>>, vector<256x768xbf16>
    %cst_76 = arith.constant dense<0.000000e+00> : vector<16x768xf32>
    %316 = tpu.matmul %314, %315, %cst_76 {dimension_numbers = #tpu.dot_dimension_numbers<[1], [0], [0], [1], [0, 0, 1, 1], [], []>} : vector<16x256xbf16>, vector<256x768xbf16>, vector<16x768xf32> -> vector<16x768xf32>
    %317 = arith.addf %14, %316 : vector<16x768xf32>
    %318 = vector.extract_strided_slice %317 {offsets = [0, 0], sizes = [16, 128], strides = [1, 1]} : vector<16x768xf32> to vector<16x128xf32>
    %319 = vector.extract_strided_slice %317 {offsets = [0, 128], sizes = [16, 128], strides = [1, 1]} : vector<16x768xf32> to vector<16x128xf32>
    %320 = vector.extract_strided_slice %317 {offsets = [0, 256], sizes = [16, 128], strides = [1, 1]} : vector<16x768xf32> to vector<16x128xf32>
    %321 = vector.extract_strided_slice %317 {offsets = [0, 384], sizes = [16, 128], strides = [1, 1]} : vector<16x768xf32> to vector<16x128xf32>
    %322 = vector.extract_strided_slice %317 {offsets = [0, 512], sizes = [16, 128], strides = [1, 1]} : vector<16x768xf32> to vector<16x128xf32>
    %323 = vector.extract_strided_slice %317 {offsets = [0, 640], sizes = [16, 128], strides = [1, 1]} : vector<16x768xf32> to vector<16x128xf32>
    %324 = arith.maximumf %318, %319 : vector<16x128xf32>
    %325 = arith.maximumf %324, %320 : vector<16x128xf32>
    %326 = arith.subf %318, %325 : vector<16x128xf32>
    %327 = math.exp %326 : vector<16x128xf32>
    %328 = arith.subf %319, %325 : vector<16x128xf32>
    %329 = math.exp %328 : vector<16x128xf32>
    %330 = arith.subf %320, %325 : vector<16x128xf32>
    %331 = math.exp %330 : vector<16x128xf32>
    %332 = arith.addf %327, %329 : vector<16x128xf32>
    %333 = arith.addf %332, %331 : vector<16x128xf32>
    %334 = tpu.reciprocal %333 {approx = true} : vector<16x128xf32> -> vector<16x128xf32>
    %335 = arith.mulf %327, %334 : vector<16x128xf32>
    %336 = arith.mulf %329, %334 : vector<16x128xf32>
    %337 = arith.mulf %331, %334 : vector<16x128xf32>
    %338 = arith.negf %321 : vector<16x128xf32>
    %339 = math.exp %338 : vector<16x128xf32>
    %cst_77 = arith.constant 1.000000e+00 : f32
    %340 = vector.broadcast %cst_77 : f32 to vector<16x128xf32>
    %341 = arith.addf %340, %339 : vector<16x128xf32>
    %342 = arith.divf %340, %341 : vector<16x128xf32>
    %343 = math.tanh %322 : vector<16x128xf32>
    %344 = arith.negf %323 : vector<16x128xf32>
    %345 = math.exp %344 : vector<16x128xf32>
    %cst_78 = arith.constant 1.000000e+00 : f32
    %346 = vector.broadcast %cst_78 : f32 to vector<16x128xf32>
    %347 = arith.addf %346, %345 : vector<16x128xf32>
    %348 = arith.divf %346, %347 : vector<16x128xf32>
    %349 = arith.mulf %336, %263 : vector<16x128xf32>
    %350 = arith.mulf %337, %296 : vector<16x128xf32>
    %351 = arith.addf %349, %350 : vector<16x128xf32>
    %352 = arith.mulf %335, %343 : vector<16x128xf32>
    %353 = arith.addf %351, %352 : vector<16x128xf32>
    %354 = arith.mulf %353, %2 : vector<16x128xf32>
    %355 = math.tanh %354 : vector<16x128xf32>
    %356 = arith.mulf %342, %355 : vector<16x128xf32>
    %357 = arith.mulf %356, %2 : vector<16x128xf32>
    %358 = arith.mulf %348, %354 : vector<16x128xf32>
    %359 = tpu.concatenate %357, %358 in 1 : vector<16x128xf32>, vector<16x128xf32> -> vector<16x256xf32>
    %c2_i32_79 = arith.constant 2 : i32
    %360 = tpu.dynamic_rotate %359 by %c2_i32_79 dim 0 : vector<16x256xf32>, i32 -> vector<16x256xf32>
    %361 = arith.addf %359, %360 : vector<16x256xf32>
    %c4_i32_80 = arith.constant 4 : i32
    %362 = tpu.dynamic_rotate %361 by %c4_i32_80 dim 0 : vector<16x256xf32>, i32 -> vector<16x256xf32>
    %363 = arith.addf %361, %362 : vector<16x256xf32>
    %c8_i32_81 = arith.constant 8 : i32
    %364 = tpu.dynamic_rotate %363 by %c8_i32_81 dim 0 : vector<16x256xf32>, i32 -> vector<16x256xf32>
    %365 = arith.addf %363, %364 : vector<16x256xf32>
    %366 = arith.mulf %365, %5 : vector<16x256xf32>
    %367 = vector.extract_strided_slice %366 {offsets = [0, 0], sizes = [16, 128], strides = [1, 1]} : vector<16x256xf32> to vector<16x128xf32>
    %368 = vector.extract_strided_slice %366 {offsets = [0, 128], sizes = [16, 128], strides = [1, 1]} : vector<16x256xf32> to vector<16x128xf32>
    %369 = arith.truncf %367 : vector<16x128xf32> to vector<16x128xbf16>
    %370 = tpu.concatenate %299, %369 in 1 : vector<16x128xbf16>, vector<16x128xbf16> -> vector<16x256xbf16>
    %c0_82 = arith.constant 0 : index
    %c0_83 = arith.constant 0 : index
    %371 = vector.load %arg8[%c0_82, %c0_83] : memref<256x256xbf16, #tpu.memory_space<vmem>>, vector<256x256xbf16>
    %cst_84 = arith.constant dense<0.000000e+00> : vector<16x256xf32>
    %372 = tpu.matmul %370, %371, %cst_84 {dimension_numbers = #tpu.dot_dimension_numbers<[1], [0], [0], [1], [0, 0, 1, 1], [], []>} : vector<16x256xbf16>, vector<256x256xbf16>, vector<16x256xf32> -> vector<16x256xf32>
    %373 = arith.addf %372, %8 : vector<16x256xf32>
    %374 = vector.extract_strided_slice %373 {offsets = [0, 0], sizes = [16, 128], strides = [1, 1]} : vector<16x256xf32> to vector<16x128xf32>
    %375 = arith.negf %374 : vector<16x128xf32>
    %376 = math.exp %375 : vector<16x128xf32>
    %cst_85 = arith.constant 1.000000e+00 : f32
    %377 = vector.broadcast %cst_85 : f32 to vector<16x128xf32>
    %378 = arith.addf %377, %376 : vector<16x128xf32>
    %379 = arith.divf %377, %378 : vector<16x128xf32>
    %380 = vector.extract_strided_slice %373 {offsets = [0, 128], sizes = [16, 128], strides = [1, 1]} : vector<16x256xf32> to vector<16x128xf32>
    %381 = arith.negf %380 : vector<16x128xf32>
    %382 = math.exp %381 : vector<16x128xf32>
    %cst_86 = arith.constant 1.000000e+00 : f32
    %383 = vector.broadcast %cst_86 : f32 to vector<16x128xf32>
    %384 = arith.addf %383, %382 : vector<16x128xf32>
    %385 = arith.divf %383, %384 : vector<16x128xf32>
    %386 = arith.mulf %379, %296 : vector<16x128xf32>
    %387 = arith.addf %386, %368 : vector<16x128xf32>
    %388 = math.tanh %387 : vector<16x128xf32>
    %389 = arith.mulf %385, %388 : vector<16x128xf32>
    %c4_i32_87 = arith.constant 4 : i32
    %390 = arith.truncf %389 : vector<16x128xf32> to vector<16x128xbf16>
    %391 = arith.mulf %357, %16 : vector<16x128xf32>
    %c12_i32_88 = arith.constant 12 : i32
    %392 = tpu.dynamic_rotate %357 by %c12_i32_88 dim 0 : vector<16x128xf32>, i32 -> vector<16x128xf32>
    %393 = arith.mulf %392, %18 : vector<16x128xf32>
    %394 = arith.addf %391, %393 : vector<16x128xf32>
    %c14_i32_89 = arith.constant 14 : i32
    %395 = tpu.dynamic_rotate %357 by %c14_i32_89 dim 0 : vector<16x128xf32>, i32 -> vector<16x128xf32>
    %396 = arith.mulf %395, %20 : vector<16x128xf32>
    %397 = arith.addf %394, %396 : vector<16x128xf32>
    %c2_i32_90 = arith.constant 2 : i32
    %398 = tpu.dynamic_rotate %357 by %c2_i32_90 dim 0 : vector<16x128xf32>, i32 -> vector<16x128xf32>
    %399 = arith.mulf %398, %22 : vector<16x128xf32>
    %400 = arith.addf %397, %399 : vector<16x128xf32>
    %c4_i32_91 = arith.constant 4 : i32
    %401 = tpu.dynamic_rotate %357 by %c4_i32_91 dim 0 : vector<16x128xf32>, i32 -> vector<16x128xf32>
    %402 = arith.mulf %401, %24 : vector<16x128xf32>
    %403 = arith.addf %400, %402 : vector<16x128xf32>
    %404 = arith.truncf %403 : vector<16x128xf32> to vector<16x128xbf16>
    %405 = tpu.concatenate %404, %390 in 1 : vector<16x128xbf16>, vector<16x128xbf16> -> vector<16x256xbf16>
    %c0_92 = arith.constant 0 : index
    %c0_93 = arith.constant 0 : index
    %406 = vector.load %arg7[%c0_92, %c0_93] : memref<256x768xbf16, #tpu.memory_space<vmem>>, vector<256x768xbf16>
    %cst_94 = arith.constant dense<0.000000e+00> : vector<16x768xf32>
    %407 = tpu.matmul %405, %406, %cst_94 {dimension_numbers = #tpu.dot_dimension_numbers<[1], [0], [0], [1], [0, 0, 1, 1], [], []>} : vector<16x256xbf16>, vector<256x768xbf16>, vector<16x768xf32> -> vector<16x768xf32>
    %408 = arith.addf %14, %407 : vector<16x768xf32>
    %409 = vector.extract_strided_slice %408 {offsets = [0, 0], sizes = [16, 128], strides = [1, 1]} : vector<16x768xf32> to vector<16x128xf32>
    %410 = vector.extract_strided_slice %408 {offsets = [0, 128], sizes = [16, 128], strides = [1, 1]} : vector<16x768xf32> to vector<16x128xf32>
    %411 = vector.extract_strided_slice %408 {offsets = [0, 256], sizes = [16, 128], strides = [1, 1]} : vector<16x768xf32> to vector<16x128xf32>
    %412 = vector.extract_strided_slice %408 {offsets = [0, 384], sizes = [16, 128], strides = [1, 1]} : vector<16x768xf32> to vector<16x128xf32>
    %413 = vector.extract_strided_slice %408 {offsets = [0, 512], sizes = [16, 128], strides = [1, 1]} : vector<16x768xf32> to vector<16x128xf32>
    %414 = vector.extract_strided_slice %408 {offsets = [0, 640], sizes = [16, 128], strides = [1, 1]} : vector<16x768xf32> to vector<16x128xf32>
    %415 = arith.maximumf %409, %410 : vector<16x128xf32>
    %416 = arith.maximumf %415, %411 : vector<16x128xf32>
    %417 = arith.subf %409, %416 : vector<16x128xf32>
    %418 = math.exp %417 : vector<16x128xf32>
    %419 = arith.subf %410, %416 : vector<16x128xf32>
    %420 = math.exp %419 : vector<16x128xf32>
    %421 = arith.subf %411, %416 : vector<16x128xf32>
    %422 = math.exp %421 : vector<16x128xf32>
    %423 = arith.addf %418, %420 : vector<16x128xf32>
    %424 = arith.addf %423, %422 : vector<16x128xf32>
    %425 = tpu.reciprocal %424 {approx = true} : vector<16x128xf32> -> vector<16x128xf32>
    %426 = arith.mulf %418, %425 : vector<16x128xf32>
    %427 = arith.mulf %420, %425 : vector<16x128xf32>
    %428 = arith.mulf %422, %425 : vector<16x128xf32>
    %429 = arith.negf %412 : vector<16x128xf32>
    %430 = math.exp %429 : vector<16x128xf32>
    %cst_95 = arith.constant 1.000000e+00 : f32
    %431 = vector.broadcast %cst_95 : f32 to vector<16x128xf32>
    %432 = arith.addf %431, %430 : vector<16x128xf32>
    %433 = arith.divf %431, %432 : vector<16x128xf32>
    %434 = math.tanh %413 : vector<16x128xf32>
    %435 = arith.negf %414 : vector<16x128xf32>
    %436 = math.exp %435 : vector<16x128xf32>
    %cst_96 = arith.constant 1.000000e+00 : f32
    %437 = vector.broadcast %cst_96 : f32 to vector<16x128xf32>
    %438 = arith.addf %437, %436 : vector<16x128xf32>
    %439 = arith.divf %437, %438 : vector<16x128xf32>
    %440 = arith.mulf %427, %354 : vector<16x128xf32>
    %441 = arith.mulf %428, %387 : vector<16x128xf32>
    %442 = arith.addf %440, %441 : vector<16x128xf32>
    %443 = arith.mulf %426, %434 : vector<16x128xf32>
    %444 = arith.addf %442, %443 : vector<16x128xf32>
    %445 = arith.mulf %444, %2 : vector<16x128xf32>
    %446 = math.tanh %445 : vector<16x128xf32>
    %447 = arith.mulf %433, %446 : vector<16x128xf32>
    %448 = arith.mulf %447, %2 : vector<16x128xf32>
    %449 = arith.mulf %439, %445 : vector<16x128xf32>
    %450 = tpu.concatenate %448, %449 in 1 : vector<16x128xf32>, vector<16x128xf32> -> vector<16x256xf32>
    %c2_i32_97 = arith.constant 2 : i32
    %451 = tpu.dynamic_rotate %450 by %c2_i32_97 dim 0 : vector<16x256xf32>, i32 -> vector<16x256xf32>
    %452 = arith.addf %450, %451 : vector<16x256xf32>
    %c4_i32_98 = arith.constant 4 : i32
    %453 = tpu.dynamic_rotate %452 by %c4_i32_98 dim 0 : vector<16x256xf32>, i32 -> vector<16x256xf32>
    %454 = arith.addf %452, %453 : vector<16x256xf32>
    %c8_i32_99 = arith.constant 8 : i32
    %455 = tpu.dynamic_rotate %454 by %c8_i32_99 dim 0 : vector<16x256xf32>, i32 -> vector<16x256xf32>
    %456 = arith.addf %454, %455 : vector<16x256xf32>
    %457 = arith.mulf %456, %5 : vector<16x256xf32>
    %458 = vector.extract_strided_slice %457 {offsets = [0, 0], sizes = [16, 128], strides = [1, 1]} : vector<16x256xf32> to vector<16x128xf32>
    %459 = vector.extract_strided_slice %457 {offsets = [0, 128], sizes = [16, 128], strides = [1, 1]} : vector<16x256xf32> to vector<16x128xf32>
    %460 = arith.truncf %458 : vector<16x128xf32> to vector<16x128xbf16>
    %461 = tpu.concatenate %390, %460 in 1 : vector<16x128xbf16>, vector<16x128xbf16> -> vector<16x256xbf16>
    %c0_100 = arith.constant 0 : index
    %c0_101 = arith.constant 0 : index
    %462 = vector.load %arg8[%c0_100, %c0_101] : memref<256x256xbf16, #tpu.memory_space<vmem>>, vector<256x256xbf16>
    %cst_102 = arith.constant dense<0.000000e+00> : vector<16x256xf32>
    %463 = tpu.matmul %461, %462, %cst_102 {dimension_numbers = #tpu.dot_dimension_numbers<[1], [0], [0], [1], [0, 0, 1, 1], [], []>} : vector<16x256xbf16>, vector<256x256xbf16>, vector<16x256xf32> -> vector<16x256xf32>
    %464 = arith.addf %463, %8 : vector<16x256xf32>
    %465 = vector.extract_strided_slice %464 {offsets = [0, 0], sizes = [16, 128], strides = [1, 1]} : vector<16x256xf32> to vector<16x128xf32>
    %466 = arith.negf %465 : vector<16x128xf32>
    %467 = math.exp %466 : vector<16x128xf32>
    %cst_103 = arith.constant 1.000000e+00 : f32
    %468 = vector.broadcast %cst_103 : f32 to vector<16x128xf32>
    %469 = arith.addf %468, %467 : vector<16x128xf32>
    %470 = arith.divf %468, %469 : vector<16x128xf32>
    %471 = vector.extract_strided_slice %464 {offsets = [0, 128], sizes = [16, 128], strides = [1, 1]} : vector<16x256xf32> to vector<16x128xf32>
    %472 = arith.negf %471 : vector<16x128xf32>
    %473 = math.exp %472 : vector<16x128xf32>
    %cst_104 = arith.constant 1.000000e+00 : f32
    %474 = vector.broadcast %cst_104 : f32 to vector<16x128xf32>
    %475 = arith.addf %474, %473 : vector<16x128xf32>
    %476 = arith.divf %474, %475 : vector<16x128xf32>
    %477 = arith.mulf %470, %387 : vector<16x128xf32>
    %478 = arith.addf %477, %459 : vector<16x128xf32>
    %479 = math.tanh %478 : vector<16x128xf32>
    %480 = arith.mulf %476, %479 : vector<16x128xf32>
    %c5_i32 = arith.constant 5 : i32
    %481 = arith.truncf %480 : vector<16x128xf32> to vector<16x128xbf16>
    %482 = arith.mulf %448, %16 : vector<16x128xf32>
    %c12_i32_105 = arith.constant 12 : i32
    %483 = tpu.dynamic_rotate %448 by %c12_i32_105 dim 0 : vector<16x128xf32>, i32 -> vector<16x128xf32>
    %484 = arith.mulf %483, %18 : vector<16x128xf32>
    %485 = arith.addf %482, %484 : vector<16x128xf32>
    %c14_i32_106 = arith.constant 14 : i32
    %486 = tpu.dynamic_rotate %448 by %c14_i32_106 dim 0 : vector<16x128xf32>, i32 -> vector<16x128xf32>
    %487 = arith.mulf %486, %20 : vector<16x128xf32>
    %488 = arith.addf %485, %487 : vector<16x128xf32>
    %c2_i32_107 = arith.constant 2 : i32
    %489 = tpu.dynamic_rotate %448 by %c2_i32_107 dim 0 : vector<16x128xf32>, i32 -> vector<16x128xf32>
    %490 = arith.mulf %489, %22 : vector<16x128xf32>
    %491 = arith.addf %488, %490 : vector<16x128xf32>
    %c4_i32_108 = arith.constant 4 : i32
    %492 = tpu.dynamic_rotate %448 by %c4_i32_108 dim 0 : vector<16x128xf32>, i32 -> vector<16x128xf32>
    %493 = arith.mulf %492, %24 : vector<16x128xf32>
    %494 = arith.addf %491, %493 : vector<16x128xf32>
    %495 = arith.truncf %494 : vector<16x128xf32> to vector<16x128xbf16>
    %496 = tpu.concatenate %495, %481 in 1 : vector<16x128xbf16>, vector<16x128xbf16> -> vector<16x256xbf16>
    %c0_109 = arith.constant 0 : index
    %c0_110 = arith.constant 0 : index
    %497 = vector.load %arg7[%c0_109, %c0_110] : memref<256x768xbf16, #tpu.memory_space<vmem>>, vector<256x768xbf16>
    %cst_111 = arith.constant dense<0.000000e+00> : vector<16x768xf32>
    %498 = tpu.matmul %496, %497, %cst_111 {dimension_numbers = #tpu.dot_dimension_numbers<[1], [0], [0], [1], [0, 0, 1, 1], [], []>} : vector<16x256xbf16>, vector<256x768xbf16>, vector<16x768xf32> -> vector<16x768xf32>
    %499 = arith.addf %14, %498 : vector<16x768xf32>
    %500 = vector.extract_strided_slice %499 {offsets = [0, 0], sizes = [16, 128], strides = [1, 1]} : vector<16x768xf32> to vector<16x128xf32>
    %501 = vector.extract_strided_slice %499 {offsets = [0, 128], sizes = [16, 128], strides = [1, 1]} : vector<16x768xf32> to vector<16x128xf32>
    %502 = vector.extract_strided_slice %499 {offsets = [0, 256], sizes = [16, 128], strides = [1, 1]} : vector<16x768xf32> to vector<16x128xf32>
    %503 = vector.extract_strided_slice %499 {offsets = [0, 384], sizes = [16, 128], strides = [1, 1]} : vector<16x768xf32> to vector<16x128xf32>
    %504 = vector.extract_strided_slice %499 {offsets = [0, 512], sizes = [16, 128], strides = [1, 1]} : vector<16x768xf32> to vector<16x128xf32>
    %505 = vector.extract_strided_slice %499 {offsets = [0, 640], sizes = [16, 128], strides = [1, 1]} : vector<16x768xf32> to vector<16x128xf32>
    %506 = arith.maximumf %500, %501 : vector<16x128xf32>
    %507 = arith.maximumf %506, %502 : vector<16x128xf32>
    %508 = arith.subf %500, %507 : vector<16x128xf32>
    %509 = math.exp %508 : vector<16x128xf32>
    %510 = arith.subf %501, %507 : vector<16x128xf32>
    %511 = math.exp %510 : vector<16x128xf32>
    %512 = arith.subf %502, %507 : vector<16x128xf32>
    %513 = math.exp %512 : vector<16x128xf32>
    %514 = arith.addf %509, %511 : vector<16x128xf32>
    %515 = arith.addf %514, %513 : vector<16x128xf32>
    %516 = tpu.reciprocal %515 {approx = true} : vector<16x128xf32> -> vector<16x128xf32>
    %517 = arith.mulf %509, %516 : vector<16x128xf32>
    %518 = arith.mulf %511, %516 : vector<16x128xf32>
    %519 = arith.mulf %513, %516 : vector<16x128xf32>
    %520 = arith.negf %503 : vector<16x128xf32>
    %521 = math.exp %520 : vector<16x128xf32>
    %cst_112 = arith.constant 1.000000e+00 : f32
    %522 = vector.broadcast %cst_112 : f32 to vector<16x128xf32>
    %523 = arith.addf %522, %521 : vector<16x128xf32>
    %524 = arith.divf %522, %523 : vector<16x128xf32>
    %525 = math.tanh %504 : vector<16x128xf32>
    %526 = arith.negf %505 : vector<16x128xf32>
    %527 = math.exp %526 : vector<16x128xf32>
    %cst_113 = arith.constant 1.000000e+00 : f32
    %528 = vector.broadcast %cst_113 : f32 to vector<16x128xf32>
    %529 = arith.addf %528, %527 : vector<16x128xf32>
    %530 = arith.divf %528, %529 : vector<16x128xf32>
    %531 = arith.mulf %518, %445 : vector<16x128xf32>
    %532 = arith.mulf %519, %478 : vector<16x128xf32>
    %533 = arith.addf %531, %532 : vector<16x128xf32>
    %534 = arith.mulf %517, %525 : vector<16x128xf32>
    %535 = arith.addf %533, %534 : vector<16x128xf32>
    %536 = arith.mulf %535, %2 : vector<16x128xf32>
    %537 = math.tanh %536 : vector<16x128xf32>
    %538 = arith.mulf %524, %537 : vector<16x128xf32>
    %539 = arith.mulf %538, %2 : vector<16x128xf32>
    %540 = arith.mulf %530, %536 : vector<16x128xf32>
    %541 = tpu.concatenate %539, %540 in 1 : vector<16x128xf32>, vector<16x128xf32> -> vector<16x256xf32>
    %c2_i32_114 = arith.constant 2 : i32
    %542 = tpu.dynamic_rotate %541 by %c2_i32_114 dim 0 : vector<16x256xf32>, i32 -> vector<16x256xf32>
    %543 = arith.addf %541, %542 : vector<16x256xf32>
    %c4_i32_115 = arith.constant 4 : i32
    %544 = tpu.dynamic_rotate %543 by %c4_i32_115 dim 0 : vector<16x256xf32>, i32 -> vector<16x256xf32>
    %545 = arith.addf %543, %544 : vector<16x256xf32>
    %c8_i32_116 = arith.constant 8 : i32
    %546 = tpu.dynamic_rotate %545 by %c8_i32_116 dim 0 : vector<16x256xf32>, i32 -> vector<16x256xf32>
    %547 = arith.addf %545, %546 : vector<16x256xf32>
    %548 = arith.mulf %547, %5 : vector<16x256xf32>
    %549 = vector.extract_strided_slice %548 {offsets = [0, 0], sizes = [16, 128], strides = [1, 1]} : vector<16x256xf32> to vector<16x128xf32>
    %550 = vector.extract_strided_slice %548 {offsets = [0, 128], sizes = [16, 128], strides = [1, 1]} : vector<16x256xf32> to vector<16x128xf32>
    %551 = arith.truncf %549 : vector<16x128xf32> to vector<16x128xbf16>
    %552 = tpu.concatenate %481, %551 in 1 : vector<16x128xbf16>, vector<16x128xbf16> -> vector<16x256xbf16>
    %c0_117 = arith.constant 0 : index
    %c0_118 = arith.constant 0 : index
    %553 = vector.load %arg8[%c0_117, %c0_118] : memref<256x256xbf16, #tpu.memory_space<vmem>>, vector<256x256xbf16>
    %cst_119 = arith.constant dense<0.000000e+00> : vector<16x256xf32>
    %554 = tpu.matmul %552, %553, %cst_119 {dimension_numbers = #tpu.dot_dimension_numbers<[1], [0], [0], [1], [0, 0, 1, 1], [], []>} : vector<16x256xbf16>, vector<256x256xbf16>, vector<16x256xf32> -> vector<16x256xf32>
    %555 = arith.addf %554, %8 : vector<16x256xf32>
    %556 = vector.extract_strided_slice %555 {offsets = [0, 0], sizes = [16, 128], strides = [1, 1]} : vector<16x256xf32> to vector<16x128xf32>
    %557 = arith.negf %556 : vector<16x128xf32>
    %558 = math.exp %557 : vector<16x128xf32>
    %cst_120 = arith.constant 1.000000e+00 : f32
    %559 = vector.broadcast %cst_120 : f32 to vector<16x128xf32>
    %560 = arith.addf %559, %558 : vector<16x128xf32>
    %561 = arith.divf %559, %560 : vector<16x128xf32>
    %562 = vector.extract_strided_slice %555 {offsets = [0, 128], sizes = [16, 128], strides = [1, 1]} : vector<16x256xf32> to vector<16x128xf32>
    %563 = arith.negf %562 : vector<16x128xf32>
    %564 = math.exp %563 : vector<16x128xf32>
    %cst_121 = arith.constant 1.000000e+00 : f32
    %565 = vector.broadcast %cst_121 : f32 to vector<16x128xf32>
    %566 = arith.addf %565, %564 : vector<16x128xf32>
    %567 = arith.divf %565, %566 : vector<16x128xf32>
    %568 = arith.mulf %561, %478 : vector<16x128xf32>
    %569 = arith.addf %568, %550 : vector<16x128xf32>
    %570 = math.tanh %569 : vector<16x128xf32>
    %571 = arith.mulf %567, %570 : vector<16x128xf32>
    %c6_i32 = arith.constant 6 : i32
    %572 = arith.truncf %571 : vector<16x128xf32> to vector<16x128xbf16>
    %573 = arith.mulf %539, %16 : vector<16x128xf32>
    %c12_i32_122 = arith.constant 12 : i32
    %574 = tpu.dynamic_rotate %539 by %c12_i32_122 dim 0 : vector<16x128xf32>, i32 -> vector<16x128xf32>
    %575 = arith.mulf %574, %18 : vector<16x128xf32>
    %576 = arith.addf %573, %575 : vector<16x128xf32>
    %c14_i32_123 = arith.constant 14 : i32
    %577 = tpu.dynamic_rotate %539 by %c14_i32_123 dim 0 : vector<16x128xf32>, i32 -> vector<16x128xf32>
    %578 = arith.mulf %577, %20 : vector<16x128xf32>
    %579 = arith.addf %576, %578 : vector<16x128xf32>
    %c2_i32_124 = arith.constant 2 : i32
    %580 = tpu.dynamic_rotate %539 by %c2_i32_124 dim 0 : vector<16x128xf32>, i32 -> vector<16x128xf32>
    %581 = arith.mulf %580, %22 : vector<16x128xf32>
    %582 = arith.addf %579, %581 : vector<16x128xf32>
    %c4_i32_125 = arith.constant 4 : i32
    %583 = tpu.dynamic_rotate %539 by %c4_i32_125 dim 0 : vector<16x128xf32>, i32 -> vector<16x128xf32>
    %584 = arith.mulf %583, %24 : vector<16x128xf32>
    %585 = arith.addf %582, %584 : vector<16x128xf32>
    %586 = arith.truncf %585 : vector<16x128xf32> to vector<16x128xbf16>
    %587 = tpu.concatenate %586, %572 in 1 : vector<16x128xbf16>, vector<16x128xbf16> -> vector<16x256xbf16>
    %c0_126 = arith.constant 0 : index
    %c0_127 = arith.constant 0 : index
    %588 = vector.load %arg7[%c0_126, %c0_127] : memref<256x768xbf16, #tpu.memory_space<vmem>>, vector<256x768xbf16>
    %cst_128 = arith.constant dense<0.000000e+00> : vector<16x768xf32>
    %589 = tpu.matmul %587, %588, %cst_128 {dimension_numbers = #tpu.dot_dimension_numbers<[1], [0], [0], [1], [0, 0, 1, 1], [], []>} : vector<16x256xbf16>, vector<256x768xbf16>, vector<16x768xf32> -> vector<16x768xf32>
    %590 = arith.addf %14, %589 : vector<16x768xf32>
    %591 = vector.extract_strided_slice %590 {offsets = [0, 0], sizes = [16, 128], strides = [1, 1]} : vector<16x768xf32> to vector<16x128xf32>
    %592 = vector.extract_strided_slice %590 {offsets = [0, 128], sizes = [16, 128], strides = [1, 1]} : vector<16x768xf32> to vector<16x128xf32>
    %593 = vector.extract_strided_slice %590 {offsets = [0, 256], sizes = [16, 128], strides = [1, 1]} : vector<16x768xf32> to vector<16x128xf32>
    %594 = vector.extract_strided_slice %590 {offsets = [0, 384], sizes = [16, 128], strides = [1, 1]} : vector<16x768xf32> to vector<16x128xf32>
    %595 = vector.extract_strided_slice %590 {offsets = [0, 512], sizes = [16, 128], strides = [1, 1]} : vector<16x768xf32> to vector<16x128xf32>
    %596 = vector.extract_strided_slice %590 {offsets = [0, 640], sizes = [16, 128], strides = [1, 1]} : vector<16x768xf32> to vector<16x128xf32>
    %597 = arith.maximumf %591, %592 : vector<16x128xf32>
    %598 = arith.maximumf %597, %593 : vector<16x128xf32>
    %599 = arith.subf %591, %598 : vector<16x128xf32>
    %600 = math.exp %599 : vector<16x128xf32>
    %601 = arith.subf %592, %598 : vector<16x128xf32>
    %602 = math.exp %601 : vector<16x128xf32>
    %603 = arith.subf %593, %598 : vector<16x128xf32>
    %604 = math.exp %603 : vector<16x128xf32>
    %605 = arith.addf %600, %602 : vector<16x128xf32>
    %606 = arith.addf %605, %604 : vector<16x128xf32>
    %607 = tpu.reciprocal %606 {approx = true} : vector<16x128xf32> -> vector<16x128xf32>
    %608 = arith.mulf %600, %607 : vector<16x128xf32>
    %609 = arith.mulf %602, %607 : vector<16x128xf32>
    %610 = arith.mulf %604, %607 : vector<16x128xf32>
    %611 = arith.negf %594 : vector<16x128xf32>
    %612 = math.exp %611 : vector<16x128xf32>
    %cst_129 = arith.constant 1.000000e+00 : f32
    %613 = vector.broadcast %cst_129 : f32 to vector<16x128xf32>
    %614 = arith.addf %613, %612 : vector<16x128xf32>
    %615 = arith.divf %613, %614 : vector<16x128xf32>
    %616 = math.tanh %595 : vector<16x128xf32>
    %617 = arith.negf %596 : vector<16x128xf32>
    %618 = math.exp %617 : vector<16x128xf32>
    %cst_130 = arith.constant 1.000000e+00 : f32
    %619 = vector.broadcast %cst_130 : f32 to vector<16x128xf32>
    %620 = arith.addf %619, %618 : vector<16x128xf32>
    %621 = arith.divf %619, %620 : vector<16x128xf32>
    %622 = arith.mulf %609, %536 : vector<16x128xf32>
    %623 = arith.mulf %610, %569 : vector<16x128xf32>
    %624 = arith.addf %622, %623 : vector<16x128xf32>
    %625 = arith.mulf %608, %616 : vector<16x128xf32>
    %626 = arith.addf %624, %625 : vector<16x128xf32>
    %627 = arith.mulf %626, %2 : vector<16x128xf32>
    %628 = math.tanh %627 : vector<16x128xf32>
    %629 = arith.mulf %615, %628 : vector<16x128xf32>
    %630 = arith.mulf %629, %2 : vector<16x128xf32>
    %631 = arith.mulf %621, %627 : vector<16x128xf32>
    %632 = tpu.concatenate %630, %631 in 1 : vector<16x128xf32>, vector<16x128xf32> -> vector<16x256xf32>
    %c2_i32_131 = arith.constant 2 : i32
    %633 = tpu.dynamic_rotate %632 by %c2_i32_131 dim 0 : vector<16x256xf32>, i32 -> vector<16x256xf32>
    %634 = arith.addf %632, %633 : vector<16x256xf32>
    %c4_i32_132 = arith.constant 4 : i32
    %635 = tpu.dynamic_rotate %634 by %c4_i32_132 dim 0 : vector<16x256xf32>, i32 -> vector<16x256xf32>
    %636 = arith.addf %634, %635 : vector<16x256xf32>
    %c8_i32_133 = arith.constant 8 : i32
    %637 = tpu.dynamic_rotate %636 by %c8_i32_133 dim 0 : vector<16x256xf32>, i32 -> vector<16x256xf32>
    %638 = arith.addf %636, %637 : vector<16x256xf32>
    %639 = arith.mulf %638, %5 : vector<16x256xf32>
    %640 = vector.extract_strided_slice %639 {offsets = [0, 0], sizes = [16, 128], strides = [1, 1]} : vector<16x256xf32> to vector<16x128xf32>
    %641 = vector.extract_strided_slice %639 {offsets = [0, 128], sizes = [16, 128], strides = [1, 1]} : vector<16x256xf32> to vector<16x128xf32>
    %642 = arith.truncf %640 : vector<16x128xf32> to vector<16x128xbf16>
    %643 = tpu.concatenate %572, %642 in 1 : vector<16x128xbf16>, vector<16x128xbf16> -> vector<16x256xbf16>
    %c0_134 = arith.constant 0 : index
    %c0_135 = arith.constant 0 : index
    %644 = vector.load %arg8[%c0_134, %c0_135] : memref<256x256xbf16, #tpu.memory_space<vmem>>, vector<256x256xbf16>
    %cst_136 = arith.constant dense<0.000000e+00> : vector<16x256xf32>
    %645 = tpu.matmul %643, %644, %cst_136 {dimension_numbers = #tpu.dot_dimension_numbers<[1], [0], [0], [1], [0, 0, 1, 1], [], []>} : vector<16x256xbf16>, vector<256x256xbf16>, vector<16x256xf32> -> vector<16x256xf32>
    %646 = arith.addf %645, %8 : vector<16x256xf32>
    %647 = vector.extract_strided_slice %646 {offsets = [0, 0], sizes = [16, 128], strides = [1, 1]} : vector<16x256xf32> to vector<16x128xf32>
    %648 = arith.negf %647 : vector<16x128xf32>
    %649 = math.exp %648 : vector<16x128xf32>
    %cst_137 = arith.constant 1.000000e+00 : f32
    %650 = vector.broadcast %cst_137 : f32 to vector<16x128xf32>
    %651 = arith.addf %650, %649 : vector<16x128xf32>
    %652 = arith.divf %650, %651 : vector<16x128xf32>
    %653 = vector.extract_strided_slice %646 {offsets = [0, 128], sizes = [16, 128], strides = [1, 1]} : vector<16x256xf32> to vector<16x128xf32>
    %654 = arith.negf %653 : vector<16x128xf32>
    %655 = math.exp %654 : vector<16x128xf32>
    %cst_138 = arith.constant 1.000000e+00 : f32
    %656 = vector.broadcast %cst_138 : f32 to vector<16x128xf32>
    %657 = arith.addf %656, %655 : vector<16x128xf32>
    %658 = arith.divf %656, %657 : vector<16x128xf32>
    %659 = arith.mulf %652, %569 : vector<16x128xf32>
    %660 = arith.addf %659, %641 : vector<16x128xf32>
    %661 = math.tanh %660 : vector<16x128xf32>
    %662 = arith.mulf %658, %661 : vector<16x128xf32>
    %c7_i32 = arith.constant 7 : i32
    %663 = arith.truncf %662 : vector<16x128xf32> to vector<16x128xbf16>
    %664 = arith.mulf %630, %16 : vector<16x128xf32>
    %c12_i32_139 = arith.constant 12 : i32
    %665 = tpu.dynamic_rotate %630 by %c12_i32_139 dim 0 : vector<16x128xf32>, i32 -> vector<16x128xf32>
    %666 = arith.mulf %665, %18 : vector<16x128xf32>
    %667 = arith.addf %664, %666 : vector<16x128xf32>
    %c14_i32_140 = arith.constant 14 : i32
    %668 = tpu.dynamic_rotate %630 by %c14_i32_140 dim 0 : vector<16x128xf32>, i32 -> vector<16x128xf32>
    %669 = arith.mulf %668, %20 : vector<16x128xf32>
    %670 = arith.addf %667, %669 : vector<16x128xf32>
    %c2_i32_141 = arith.constant 2 : i32
    %671 = tpu.dynamic_rotate %630 by %c2_i32_141 dim 0 : vector<16x128xf32>, i32 -> vector<16x128xf32>
    %672 = arith.mulf %671, %22 : vector<16x128xf32>
    %673 = arith.addf %670, %672 : vector<16x128xf32>
    %c4_i32_142 = arith.constant 4 : i32
    %674 = tpu.dynamic_rotate %630 by %c4_i32_142 dim 0 : vector<16x128xf32>, i32 -> vector<16x128xf32>
    %675 = arith.mulf %674, %24 : vector<16x128xf32>
    %676 = arith.addf %673, %675 : vector<16x128xf32>
    %677 = arith.truncf %676 : vector<16x128xf32> to vector<16x128xbf16>
    %678 = tpu.concatenate %677, %663 in 1 : vector<16x128xbf16>, vector<16x128xbf16> -> vector<16x256xbf16>
    %c0_143 = arith.constant 0 : index
    %c0_144 = arith.constant 0 : index
    %679 = vector.load %arg7[%c0_143, %c0_144] : memref<256x768xbf16, #tpu.memory_space<vmem>>, vector<256x768xbf16>
    %cst_145 = arith.constant dense<0.000000e+00> : vector<16x768xf32>
    %680 = tpu.matmul %678, %679, %cst_145 {dimension_numbers = #tpu.dot_dimension_numbers<[1], [0], [0], [1], [0, 0, 1, 1], [], []>} : vector<16x256xbf16>, vector<256x768xbf16>, vector<16x768xf32> -> vector<16x768xf32>
    %681 = arith.addf %14, %680 : vector<16x768xf32>
    %682 = vector.extract_strided_slice %681 {offsets = [0, 0], sizes = [16, 128], strides = [1, 1]} : vector<16x768xf32> to vector<16x128xf32>
    %683 = vector.extract_strided_slice %681 {offsets = [0, 128], sizes = [16, 128], strides = [1, 1]} : vector<16x768xf32> to vector<16x128xf32>
    %684 = vector.extract_strided_slice %681 {offsets = [0, 256], sizes = [16, 128], strides = [1, 1]} : vector<16x768xf32> to vector<16x128xf32>
    %685 = vector.extract_strided_slice %681 {offsets = [0, 384], sizes = [16, 128], strides = [1, 1]} : vector<16x768xf32> to vector<16x128xf32>
    %686 = vector.extract_strided_slice %681 {offsets = [0, 512], sizes = [16, 128], strides = [1, 1]} : vector<16x768xf32> to vector<16x128xf32>
    %687 = vector.extract_strided_slice %681 {offsets = [0, 640], sizes = [16, 128], strides = [1, 1]} : vector<16x768xf32> to vector<16x128xf32>
    %688 = arith.maximumf %682, %683 : vector<16x128xf32>
    %689 = arith.maximumf %688, %684 : vector<16x128xf32>
    %690 = arith.subf %682, %689 : vector<16x128xf32>
    %691 = math.exp %690 : vector<16x128xf32>
    %692 = arith.subf %683, %689 : vector<16x128xf32>
    %693 = math.exp %692 : vector<16x128xf32>
    %694 = arith.subf %684, %689 : vector<16x128xf32>
    %695 = math.exp %694 : vector<16x128xf32>
    %696 = arith.addf %691, %693 : vector<16x128xf32>
    %697 = arith.addf %696, %695 : vector<16x128xf32>
    %698 = tpu.reciprocal %697 {approx = true} : vector<16x128xf32> -> vector<16x128xf32>
    %699 = arith.mulf %691, %698 : vector<16x128xf32>
    %700 = arith.mulf %693, %698 : vector<16x128xf32>
    %701 = arith.mulf %695, %698 : vector<16x128xf32>
    %702 = arith.negf %685 : vector<16x128xf32>
    %703 = math.exp %702 : vector<16x128xf32>
    %cst_146 = arith.constant 1.000000e+00 : f32
    %704 = vector.broadcast %cst_146 : f32 to vector<16x128xf32>
    %705 = arith.addf %704, %703 : vector<16x128xf32>
    %706 = arith.divf %704, %705 : vector<16x128xf32>
    %707 = math.tanh %686 : vector<16x128xf32>
    %708 = arith.negf %687 : vector<16x128xf32>
    %709 = math.exp %708 : vector<16x128xf32>
    %cst_147 = arith.constant 1.000000e+00 : f32
    %710 = vector.broadcast %cst_147 : f32 to vector<16x128xf32>
    %711 = arith.addf %710, %709 : vector<16x128xf32>
    %712 = arith.divf %710, %711 : vector<16x128xf32>
    %713 = arith.mulf %700, %627 : vector<16x128xf32>
    %714 = arith.mulf %701, %660 : vector<16x128xf32>
    %715 = arith.addf %713, %714 : vector<16x128xf32>
    %716 = arith.mulf %699, %707 : vector<16x128xf32>
    %717 = arith.addf %715, %716 : vector<16x128xf32>
    %718 = arith.mulf %717, %2 : vector<16x128xf32>
    %719 = math.tanh %718 : vector<16x128xf32>
    %720 = arith.mulf %706, %719 : vector<16x128xf32>
    %721 = arith.mulf %720, %2 : vector<16x128xf32>
    %722 = arith.mulf %712, %718 : vector<16x128xf32>
    %723 = tpu.concatenate %721, %722 in 1 : vector<16x128xf32>, vector<16x128xf32> -> vector<16x256xf32>
    %c2_i32_148 = arith.constant 2 : i32
    %724 = tpu.dynamic_rotate %723 by %c2_i32_148 dim 0 : vector<16x256xf32>, i32 -> vector<16x256xf32>
    %725 = arith.addf %723, %724 : vector<16x256xf32>
    %c4_i32_149 = arith.constant 4 : i32
    %726 = tpu.dynamic_rotate %725 by %c4_i32_149 dim 0 : vector<16x256xf32>, i32 -> vector<16x256xf32>
    %727 = arith.addf %725, %726 : vector<16x256xf32>
    %c8_i32_150 = arith.constant 8 : i32
    %728 = tpu.dynamic_rotate %727 by %c8_i32_150 dim 0 : vector<16x256xf32>, i32 -> vector<16x256xf32>
    %729 = arith.addf %727, %728 : vector<16x256xf32>
    %730 = arith.mulf %729, %5 : vector<16x256xf32>
    %731 = vector.extract_strided_slice %730 {offsets = [0, 0], sizes = [16, 128], strides = [1, 1]} : vector<16x256xf32> to vector<16x128xf32>
    %732 = vector.extract_strided_slice %730 {offsets = [0, 128], sizes = [16, 128], strides = [1, 1]} : vector<16x256xf32> to vector<16x128xf32>
    %733 = arith.truncf %731 : vector<16x128xf32> to vector<16x128xbf16>
    %734 = tpu.concatenate %663, %733 in 1 : vector<16x128xbf16>, vector<16x128xbf16> -> vector<16x256xbf16>
    %c0_151 = arith.constant 0 : index
    %c0_152 = arith.constant 0 : index
    %735 = vector.load %arg8[%c0_151, %c0_152] : memref<256x256xbf16, #tpu.memory_space<vmem>>, vector<256x256xbf16>
    %cst_153 = arith.constant dense<0.000000e+00> : vector<16x256xf32>
    %736 = tpu.matmul %734, %735, %cst_153 {dimension_numbers = #tpu.dot_dimension_numbers<[1], [0], [0], [1], [0, 0, 1, 1], [], []>} : vector<16x256xbf16>, vector<256x256xbf16>, vector<16x256xf32> -> vector<16x256xf32>
    %737 = arith.addf %736, %8 : vector<16x256xf32>
    %738 = vector.extract_strided_slice %737 {offsets = [0, 0], sizes = [16, 128], strides = [1, 1]} : vector<16x256xf32> to vector<16x128xf32>
    %739 = arith.negf %738 : vector<16x128xf32>
    %740 = math.exp %739 : vector<16x128xf32>
    %cst_154 = arith.constant 1.000000e+00 : f32
    %741 = vector.broadcast %cst_154 : f32 to vector<16x128xf32>
    %742 = arith.addf %741, %740 : vector<16x128xf32>
    %743 = arith.divf %741, %742 : vector<16x128xf32>
    %744 = vector.extract_strided_slice %737 {offsets = [0, 128], sizes = [16, 128], strides = [1, 1]} : vector<16x256xf32> to vector<16x128xf32>
    %745 = arith.negf %744 : vector<16x128xf32>
    %746 = math.exp %745 : vector<16x128xf32>
    %cst_155 = arith.constant 1.000000e+00 : f32
    %747 = vector.broadcast %cst_155 : f32 to vector<16x128xf32>
    %748 = arith.addf %747, %746 : vector<16x128xf32>
    %749 = arith.divf %747, %748 : vector<16x128xf32>
    %750 = arith.mulf %743, %660 : vector<16x128xf32>
    %751 = arith.addf %750, %732 : vector<16x128xf32>
    %752 = math.tanh %751 : vector<16x128xf32>
    %753 = arith.mulf %749, %752 : vector<16x128xf32>
    %754 = vector.extract_strided_slice %753 {offsets = [0, 0], sizes = [2, 128], strides = [1, 1]} : vector<16x128xf32> to vector<2x128xf32>
    %755 = arith.truncf %754 : vector<2x128xf32> to vector<2x128xbf16>
    %c0_156 = arith.constant 0 : index
    %c0_157 = arith.constant 0 : index
    %756 = vector.load %arg10[%c0_156, %c0_157] : memref<128x128xbf16, #tpu.memory_space<vmem>>, vector<128x128xbf16>
    %cst_158 = arith.constant dense<0.000000e+00> : vector<2x128xf32>
    %757 = tpu.matmul %755, %756, %cst_158 {dimension_numbers = #tpu.dot_dimension_numbers<[1], [0], [0], [1], [0, 0, 1, 1], [], []>} : vector<2x128xbf16>, vector<128x128xbf16>, vector<2x128xf32> -> vector<2x128xf32>
    %c0_159 = arith.constant 0 : index
    %c0_160 = arith.constant 0 : index
    %758 = vector.load %arg11[%c0_159, %c0_160] : memref<1x128xf32, #tpu.memory_space<vmem>>, vector<1x128xf32>
    %759 = vector.broadcast %758 : vector<1x128xf32> to vector<2x128xf32>
    %760 = arith.addf %757, %759 : vector<2x128xf32>
    %761 = math.tanh %760 : vector<2x128xf32>
    %762 = arith.truncf %761 : vector<2x128xf32> to vector<2x128xbf16>
    %c0_161 = arith.constant 0 : index
    %c0_162 = arith.constant 0 : index
    %763 = vector.load %arg12[%c0_161, %c0_162] : memref<128x128xbf16, #tpu.memory_space<vmem>>, vector<128x128xbf16>
    %cst_163 = arith.constant dense<0.000000e+00> : vector<2x128xf32>
    %764 = tpu.matmul %762, %763, %cst_163 {dimension_numbers = #tpu.dot_dimension_numbers<[1], [0], [0], [1], [0, 0, 1, 1], [], []>} : vector<2x128xbf16>, vector<128x128xbf16>, vector<2x128xf32> -> vector<2x128xf32>
    %c0_164 = arith.constant 0 : index
    %c0_165 = arith.constant 0 : index
    %765 = vector.load %arg13[%c0_164, %c0_165] : memref<1x128xf32, #tpu.memory_space<vmem>>, vector<1x128xf32>
    %766 = vector.broadcast %765 : vector<1x128xf32> to vector<2x128xf32>
    %767 = arith.addf %764, %766 : vector<2x128xf32>
    %cst_166 = arith.constant dense<0xFF800000> : vector<2xf32>
    %768 = vector.multi_reduction <maximumf>, %767, %cst_166 [1] : vector<2x128xf32> to vector<2xf32>
    %769 = vector.shape_cast %768 : vector<2xf32> to vector<2x1xf32>
    %770 = vector.broadcast %769 : vector<2x1xf32> to vector<2x128xf32>
    %771 = arith.subf %767, %770 : vector<2x128xf32>
    %772 = math.exp %771 : vector<2x128xf32>
    %cst_167 = arith.constant dense<0.000000e+00> : vector<2xf32>
    %773 = vector.multi_reduction <add>, %772, %cst_167 [1] : vector<2x128xf32> to vector<2xf32>
    %774 = vector.shape_cast %773 : vector<2xf32> to vector<2x1xf32>
    %775 = math.log %774 : vector<2x1xf32>
    %776 = vector.broadcast %775 : vector<2x1xf32> to vector<2x128xf32>
    %777 = arith.subf %771, %776 : vector<2x128xf32>
    %c0_168 = arith.constant 0 : index
    %c0_169 = arith.constant 0 : index
    %778 = vector.load %arg14[%c0_168, %c0_169] : memref<2x128xf32, #tpu.memory_space<vmem>>, vector<2x128xf32>
    tpu.vector_store %arg14[%c0_168, %c0_169], %777 {strides = array<i32>} : memref<2x128xf32, #tpu.memory_space<vmem>>, vector<2x128xf32>,
    return
  }
  func.func @transform_0(%arg0: i32) -> (i32, i32) {
    %c0_i32 = arith.constant 0 : i32
    %c0_i32_0 = arith.constant 0 : i32
    %c0_i32_1 = arith.constant 0 : i32
    return %c0_i32, %c0_i32_0 : i32, i32
  }
  func.func @transform_1(%arg0: i32) -> (i32, i32) {
    %c0_i32 = arith.constant 0 : i32
    %c0_i32_0 = arith.constant 0 : i32
    %c0_i32_1 = arith.constant 0 : i32
    return %c0_i32, %c0_i32_0 : i32, i32
  }
  func.func @transform_2(%arg0: i32) -> (i32, i32) {
    %c0_i32 = arith.constant 0 : i32
    %c0_i32_0 = arith.constant 0 : i32
    %c0_i32_1 = arith.constant 0 : i32
    return %c0_i32, %c0_i32_0 : i32, i32
  }
  func.func @transform_3(%arg0: i32) -> (i32, i32, i32) {
    %c0_i32 = arith.constant 0 : i32
    %c0_i32_0 = arith.constant 0 : i32
    %c0_i32_1 = arith.constant 0 : i32
    %c0_i32_2 = arith.constant 0 : i32
    return %c0_i32, %c0_i32_0, %c0_i32_1 : i32, i32, i32
  }
  func.func @transform_4(%arg0: i32) -> (i32, i32) {
    %c0_i32 = arith.constant 0 : i32
    %c0_i32_0 = arith.constant 0 : i32
    %c0_i32_1 = arith.constant 0 : i32
    return %c0_i32, %c0_i32_0 : i32, i32
  }
  func.func @transform_5(%arg0: i32) -> (i32, i32) {
    %c0_i32 = arith.constant 0 : i32
    %c0_i32_0 = arith.constant 0 : i32
    %c0_i32_1 = arith.constant 0 : i32
    return %c0_i32, %c0_i32_0 : i32, i32
  }
  func.func @transform_6(%arg0: i32) -> (i32, i32) {
    %c0_i32 = arith.constant 0 : i32
    %c0_i32_0 = arith.constant 0 : i32
    %c0_i32_1 = arith.constant 0 : i32
    return %c0_i32, %c0_i32_0 : i32, i32
  }
  func.func @transform_7(%arg0: i32) -> (i32, i32) {
    %c0_i32 = arith.constant 0 : i32
    %c0_i32_0 = arith.constant 0 : i32
    %c0_i32_1 = arith.constant 0 : i32
    return %c0_i32, %c0_i32_0 : i32, i32
  }
  func.func @transform_8(%arg0: i32) -> (i32, i32) {
    %c0_i32 = arith.constant 0 : i32
    %c0_i32_0 = arith.constant 0 : i32
    %c0_i32_1 = arith.constant 0 : i32
    return %c0_i32, %c0_i32_0 : i32, i32
  }
  func.func @transform_9(%arg0: i32) -> (i32, i32) {
    %c0_i32 = arith.constant 0 : i32
    %c0_i32_0 = arith.constant 0 : i32
    %c0_i32_1 = arith.constant 0 : i32
    return %c0_i32, %c0_i32_0 : i32, i32
  }
  func.func @transform_10(%arg0: i32) -> (i32, i32) {
    %c0_i32 = arith.constant 0 : i32
    %c0_i32_0 = arith.constant 0 : i32
    %c0_i32_1 = arith.constant 0 : i32
    return %c0_i32, %c0_i32_0 : i32, i32
  }
  func.func @transform_11(%arg0: i32) -> (i32, i32) {
    %c0_i32 = arith.constant 0 : i32
    %c0_i32_0 = arith.constant 0 : i32
    %c0_i32_1 = arith.constant 0 : i32
    return %c0_i32, %c0_i32_0 : i32, i32
  }
  func.func @transform_12(%arg0: i32) -> (i32, i32) {
    %c0_i32 = arith.constant 0 : i32
    %c0_i32_0 = arith.constant 0 : i32
    %c0_i32_1 = arith.constant 0 : i32
    return %c0_i32, %c0_i32_0 : i32, i32
  }
  func.func @transform_13(%arg0: i32) -> (i32, i32) {
    %c0_i32 = arith.constant 0 : i32
    %c0_i32_0 = arith.constant 0 : i32
    %c0_i32_1 = arith.constant 0 : i32
    return %c0_i32, %c0_i32_0 : i32, i32
  }
}

</mosaic_0001>

<llo_original>
// kernel: tpu_custom_call.1
$region0: #{tpu_custom_call.1}
  #allocation0 [shape = 'u32[]', space=smem, size = 0x4, offset = 0x4, fixed_abs, tag = 'smem constant byte address 0x4 - core index']
  #allocation1 [shape = 'u32[144,128]{1,0:T(1,128)}', space=vmem, size = 0x12000, scoped, tag = 'internal scratch']
  %s0 = inlined_call_operand.hbm [shape: bf16[16,128], index: 0, kind: input, shape index: {}]
  %s1 = inlined_call_operand.vmem [shape: f32[16,1], index: 1, kind: input, shape index: {}]
  %s2 = inlined_call_operand.vmem [shape: f32[16,1], index: 2, kind: input, shape index: {}]
  %s3 = inlined_call_operand.hbm [shape: f32[5,16,128], index: 3, kind: input, shape index: {}]
  %s4 = inlined_call_operand.hbm [shape: bf16[128,768], index: 4, kind: input, shape index: {}]
  %s5 = inlined_call_operand.hbm [shape: f32[1,768], index: 5, kind: input, shape index: {}]
  %s6 = inlined_call_operand.hbm [shape: bf16[256,768], index: 6, kind: input, shape index: {}]
  %s7 = inlined_call_operand.hbm [shape: bf16[256,256], index: 7, kind: input, shape index: {}]
  %s8 = inlined_call_operand.vmem [shape: f32[1,256], index: 8, kind: input, shape index: {}]
  %s9 = inlined_call_operand.vmem [shape: bf16[128,128], index: 9, kind: input, shape index: {}]
  %s10 = inlined_call_operand.vmem [shape: f32[1,128], index: 10, kind: input, shape index: {}]
  %s11 = inlined_call_operand.hbm [shape: bf16[128,128], index: 11, kind: input, shape index: {}]
  %s12 = inlined_call_operand.vmem [shape: f32[1,128], index: 12, kind: input, shape index: {}]
  %s13 = inlined_call_operand.hbm [shape: f32[2,128], index: 13, kind: output, shape index: {}]
  %s14 = sld [smem:[#allocation0]]
  $region90: #{tpu_custom_call.1} parent=0
    _
  %s16 = ssub.s32 1, %s14
  %s17 = scalar_select 0, %s16, %s14
  $region1: #{tpu_custom_call.1} parent=0
    #allocation2 [shape = 'u8[4096]{0}', space=vmem, size = 0x1000, scoped, tag = 'input window, operand 0, single buffered']
    #allocation3 [shape = 's32[1]{0}', space=sflag, size = 0x4, scoped, tag = 'scoped memory for tpu_custom_call.1']
    #allocation4 [shape = 's32[1]{0}', space=sflag, size = 0x4, scoped, tag = 'scoped memory for tpu_custom_call.1']
    #allocation5 [shape = 'u8[40960]{0}', space=vmem, size = 0xa000, scoped, tag = 'input window, operand 3, single buffered']
    #allocation6 [shape = 's32[1]{0}', space=sflag, size = 0x4, scoped, tag = 'scoped memory for tpu_custom_call.1']
    #allocation7 [shape = 'u8[196608]{0}', space=vmem, size = 0x30000, scoped, tag = 'input window, operand 4, single buffered']
    #allocation8 [shape = 'u8[3072]{0}', space=vmem, size = 0xc00, scoped, tag = 'input window, operand 5, single buffered']
    #allocation9 [shape = 's32[1]{0}', space=sflag, size = 0x4, scoped, tag = 'scoped memory for tpu_custom_call.1']
    #allocation10 [shape = 'u8[393216]{0}', space=vmem, size = 0x60000, scoped, tag = 'input window, operand 6, single buffered']
    #allocation11 [shape = 'u8[131072]{0}', space=vmem, size = 0x20000, scoped, tag = 'input window, operand 7, single buffered']
    #allocation12 [shape = 's32[1]{0}', space=sflag, size = 0x4, scoped, tag = 'scoped memory for tpu_custom_call.1']
    #allocation13 [shape = 'u8[32768]{0}', space=vmem, size = 0x8000, scoped, tag = 'input window, operand 11, single buffered']
    #allocation14 [shape = 'u8[1024]{0}', space=vmem, size = 0x400, scoped, tag = 'output window, operand 0, single buffered']
    %18 = vsyncpa [#allocation3], 0
    %19 = vsyncpa [#allocation6], 0
    %20 = vsyncpa [#allocation9], 0
    %21 = vsyncpa [#allocation12], 0
    %22 = vsyncpa [#allocation4], 0
    // Predicated region
    $region2: #{tpu_custom_call.1} parent=1 // pred_check
      _
    $region3: #{tpu_custom_call.1} parent=1 // pred_check_branch
      %24 = sbr.rel (0) target = $region5
    $region4: #{tpu_custom_call.1} parent=1 // pred_region
      %s26 = ssub.s32 128, 128
      %27 = vsyncadd [#allocation3], %s26
      %s28 = sshll.u32 [#allocation2], 4
      %s29 = int_to_ptr.vmem [resolvable:$true] %s28
      %34 = dma.hbm_to_vmem [thread:$0]  %s0, 128, %s29, [#allocation3], 64, 64, 4
    $region5: #{tpu_custom_call.1} parent=1 // pred_fallthru
      _
    // Predicated region
    $region6: #{tpu_custom_call.1} parent=1 // pred_check
      _
    $region7: #{tpu_custom_call.1} parent=1 // pred_check_branch
      %36 = sbr.rel (0) target = $region9
    $region8: #{tpu_custom_call.1} parent=1 // pred_region
      _
    $region9: #{tpu_custom_call.1} parent=1 // pred_fallthru
      _
    // Predicated region
    $region10: #{tpu_custom_call.1} parent=1 // pred_check
      _
    $region11: #{tpu_custom_call.1} parent=1 // pred_check_branch
      %38 = sbr.rel (0) target = $region13
    $region12: #{tpu_custom_call.1} parent=1 // pred_region
      _
    $region13: #{tpu_custom_call.1} parent=1 // pred_fallthru
      _
    // Predicated region
    $region14: #{tpu_custom_call.1} parent=1 // pred_check
      _
    $region15: #{tpu_custom_call.1} parent=1 // pred_check_branch
      %40 = sbr.rel (0) target = $region17
    $region16: #{tpu_custom_call.1} parent=1 // pred_region
      %s42 = ssub.s32 1280, 1280
      %43 = vsyncadd [#allocation6], %s42
      %s44 = sshll.u32 [#allocation5], 4
      %s45 = int_to_ptr.vmem [resolvable:$true] %s44
      %50 = dma.hbm_to_vmem [thread:$0]  %s3, 1280, %s45, [#allocation6], 128, 128, 8
    $region17: #{tpu_custom_call.1} parent=1 // pred_fallthru
      _
    // Predicated region
    $region18: #{tpu_custom_call.1} parent=1 // pred_check
      _
    $region19: #{tpu_custom_call.1} parent=1 // pred_check_branch
      %52 = sbr.rel (0) target = $region21
    $region20: #{tpu_custom_call.1} parent=1 // pred_region
      %s54 = ssub.s32 6144, 6144
      %55 = vsyncadd [#allocation6], %s54
      %s56 = sshll.u32 [#allocation7], 4
      %s57 = int_to_ptr.vmem [resolvable:$true] %s56
      %62 = dma.hbm_to_vmem [thread:$0]  %s4, 6144, %s57, [#allocation6], 384, 384, 24
    $region21: #{tpu_custom_call.1} parent=1 // pred_fallthru
      _
    // Predicated region
    $region22: #{tpu_custom_call.1} parent=1 // pred_check
      _
    $region23: #{tpu_custom_call.1} parent=1 // pred_check_branch
      %64 = sbr.rel (0) target = $region25
    $region24: #{tpu_custom_call.1} parent=1 // pred_region
      %s66 = ssub.s32 96, 96
      %67 = vsyncadd [#allocation9], %s66
      %s69 = sshll.u32 [#allocation8], 4
      %s70 = int_to_ptr.vmem [resolvable:$true] %s69
      %72 = dma.hbm_to_vmem [thread:$0]  %s5, 96, %s70, [#allocation9]
    $region25: #{tpu_custom_call.1} parent=1 // pred_fallthru
      _
    // Predicated region
    $region26: #{tpu_custom_call.1} parent=1 // pred_check
      _
    $region27: #{tpu_custom_call.1} parent=1 // pred_check_branch
      %74 = sbr.rel (0) target = $region29
    $region28: #{tpu_custom_call.1} parent=1 // pred_region
      %s76 = ssub.s32 12288, 12288
      %77 = vsyncadd [#allocation9], %s76
      %s78 = sshll.u32 [#allocation10], 4
      %s79 = int_to_ptr.vmem [resolvable:$true] %s78
      %84 = dma.hbm_to_vmem [thread:$0]  %s6, 12288, %s79, [#allocation9], 384, 384, 24
    $region29: #{tpu_custom_call.1} parent=1 // pred_fallthru
      _
    // Predicated region
    $region30: #{tpu_custom_call.1} parent=1 // pred_check
      _
    $region31: #{tpu_custom_call.1} parent=1 // pred_check_branch
      %86 = sbr.rel (0) target = $region33
    $region32: #{tpu_custom_call.1} parent=1 // pred_region
      %s88 = ssub.s32 4096, 4096
      %89 = vsyncadd [#allocation12], %s88
      %s90 = sshll.u32 [#allocation11], 4
      %s91 = int_to_ptr.vmem [resolvable:$true] %s90
      %96 = dma.hbm_to_vmem [thread:$0]  %s7, 4096, %s91, [#allocation12], 128, 128, 8
    $region33: #{tpu_custom_call.1} parent=1 // pred_fallthru
      _
    // Predicated region
    $region34: #{tpu_custom_call.1} parent=1 // pred_check
      _
    $region35: #{tpu_custom_call.1} parent=1 // pred_check_branch
      %98 = sbr.rel (0) target = $region37
    $region36: #{tpu_custom_call.1} parent=1 // pred_region
      _
    $region37: #{tpu_custom_call.1} parent=1 // pred_fallthru
      _
    // Predicated region
    $region38: #{tpu_custom_call.1} parent=1 // pred_check
      _
    $region39: #{tpu_custom_call.1} parent=1 // pred_check_branch
      %100 = sbr.rel (0) target = $region41
    $region40: #{tpu_custom_call.1} parent=1 // pred_region
      _
    $region41: #{tpu_custom_call.1} parent=1 // pred_fallthru
      _
    // Predicated region
    $region42: #{tpu_custom_call.1} parent=1 // pred_check
      _
    $region43: #{tpu_custom_call.1} parent=1 // pred_check_branch
      %102 = sbr.rel (0) target = $region45
    $region44: #{tpu_custom_call.1} parent=1 // pred_region
      _
    $region45: #{tpu_custom_call.1} parent=1 // pred_fallthru
      _
    // Predicated region
    $region46: #{tpu_custom_call.1} parent=1 // pred_check
      _
    $region47: #{tpu_custom_call.1} parent=1 // pred_check_branch
      %104 = sbr.rel (0) target = $region49
    $region48: #{tpu_custom_call.1} parent=1 // pred_region
      %s106 = ssub.s32 1024, 1024
      %107 = vsyncadd [#allocation12], %s106
      %s108 = sshll.u32 [#allocation13], 4
      %s109 = int_to_ptr.vmem [resolvable:$true] %s108
      %114 = dma.hbm_to_vmem [thread:$0]  %s11, 1024, %s109, [#allocation12], 64, 64, 4
    $region49: #{tpu_custom_call.1} parent=1 // pred_fallthru
      _
    // Predicated region
    $region50: #{tpu_custom_call.1} parent=1 // pred_check
      _
    $region51: #{tpu_custom_call.1} parent=1 // pred_check_branch
      %116 = sbr.rel (0) target = $region53
    $region52: #{tpu_custom_call.1} parent=1 // pred_region
      _
    $region53: #{tpu_custom_call.1} parent=1 // pred_fallthru
      _
    // Predicated region
    $region54: #{tpu_custom_call.1} parent=1 // pred_check
      _
    $region55: #{tpu_custom_call.1} parent=1 // pred_check_branch
      %118 = sbr.rel (0) target = $region57
    $region56: #{tpu_custom_call.1} parent=1 // pred_region
      %119 = dma.done [#allocation3], 128
    $region57: #{tpu_custom_call.1} parent=1 // pred_fallthru
      _
    // Predicated region
    $region58: #{tpu_custom_call.1} parent=1 // pred_check
      _
    $region59: #{tpu_custom_call.1} parent=1 // pred_check_branch
      %121 = sbr.rel (0) target = $region61
    $region60: #{tpu_custom_call.1} parent=1 // pred_region
      %122 = dma.done [#allocation6], 1280
    $region61: #{tpu_custom_call.1} parent=1 // pred_fallthru
      _
    // Predicated region
    $region62: #{tpu_custom_call.1} parent=1 // pred_check
      _
    $region63: #{tpu_custom_call.1} parent=1 // pred_check_branch
      %124 = sbr.rel (0) target = $region65
    $region64: #{tpu_custom_call.1} parent=1 // pred_region
      %125 = dma.done [#allocation6], 6144
    $region65: #{tpu_custom_call.1} parent=1 // pred_fallthru
      _
    // Predicated region
    $region66: #{tpu_custom_call.1} parent=1 // pred_check
      _
    $region67: #{tpu_custom_call.1} parent=1 // pred_check_branch
      %127 = sbr.rel (0) target = $region69
    $region68: #{tpu_custom_call.1} parent=1 // pred_region
      %128 = dma.done [#allocation9], 96
    $region69: #{tpu_custom_call.1} parent=1 // pred_fallthru
      _
    // Predicated region
    $region70: #{tpu_custom_call.1} parent=1 // pred_check
      _
    $region71: #{tpu_custom_call.1} parent=1 // pred_check_branch
      %130 = sbr.rel (0) target = $region73
    $region72: #{tpu_custom_call.1} parent=1 // pred_region
      %131 = dma.done [#allocation9], 12288
    $region73: #{tpu_custom_call.1} parent=1 // pred_fallthru
      _
    // Predicated region
    $region74: #{tpu_custom_call.1} parent=1 // pred_check
      _
    $region75: #{tpu_custom_call.1} parent=1 // pred_check_branch
      %133 = sbr.rel (0) target = $region77
    $region76: #{tpu_custom_call.1} parent=1 // pred_region
      %134 = dma.done [#allocation12], 4096
    $region77: #{tpu_custom_call.1} parent=1 // pred_fallthru
      _
    // Predicated region
    $region78: #{tpu_custom_call.1} parent=1 // pred_check
      _
    $region79: #{tpu_custom_call.1} parent=1 // pred_check_branch
      %136 = sbr.rel (0) target = $region81
    $region80: #{tpu_custom_call.1} parent=1 // pred_region
      %137 = dma.done [#allocation12], 1024
    $region81: #{tpu_custom_call.1} parent=1 // pred_fallthru
      _
    %v139 = vld [vmem:[%s1] sm:$0xff]
    %v140 = vld [vmem:[%s1 + $0x8] sm:$0xff]
    %142 = vset.pattern.permute.xlu0 0
    %143 = vperm.xlu0 %142, %v139
    %v144 = vpop.permute.xlu0 %143
    %147 = vset.pattern.permute.xlu0 0
    %148 = vperm.xlu0 %147, %v140
    %v149 = vpop.permute.xlu0 %148
    %v151 = vld [vmem:[%s2] sm:$0xff]
    %v152 = vld [vmem:[%s2 + $0x8] sm:$0xff]
    %154 = vset.pattern.permute.xlu0 0
    %155 = vperm.xlu0 %154, %v151
    %v156 = vpop.permute.xlu0 %155
    %159 = vset.pattern.permute.xlu0 0
    %160 = vperm.xlu0 %159, %v152
    %v161 = vpop.permute.xlu0 %160
    %v163 = vld [vmem:[%s8] sm:$0x3]
    %v165 = vlaneseq
    %v166 = vshrl.u32 %v165, 7
    %v167 = vsub.s32 0, %v166
    %v168 = vrot.slane %v163, %v167
    %v169 = vlaneseq
    %v170 = vshrl.u32 %v169, 7
    %v171 = vsub.s32 1, %v170
    %v172 = vrot.slane %v163, %v171
    %v175 = vld [vmem:[#allocation2] sm:$0xf]
    %v176 = vld [vmem:[#allocation2 + $0x4] sm:$0xf]
    %v177 = vld [vmem:[#allocation7] sm:$0xff]
    %v178 = vld [vmem:[#allocation7 + $0x8] sm:$0xff]
    %v179 = vld [vmem:[#allocation7 + $0x10] sm:$0xff]
    %v180 = vld [vmem:[#allocation7 + $0x18] sm:$0xff]
    %v181 = vld [vmem:[#allocation7 + $0x20] sm:$0xff]
    %v182 = vld [vmem:[#allocation7 + $0x28] sm:$0xff]
    %v183 = vld [vmem:[#allocation7 + $0x30] sm:$0xff]
    %v184 = vld [vmem:[#allocation7 + $0x38] sm:$0xff]
    %v185 = vld [vmem:[#allocation7 + $0x40] sm:$0xff]
    %v186 = vld [vmem:[#allocation7 + $0x48] sm:$0xff]
    %v187 = vld [vmem:[#allocation7 + $0x50] sm:$0xff]
    %v188 = vld [vmem:[#allocation7 + $0x58] sm:$0xff]
    %v189 = vld [vmem:[#allocation7 + $0x60] sm:$0xff]
    %v190 = vld [vmem:[#allocation7 + $0x68] sm:$0xff]
    %v191 = vld [vmem:[#allocation7 + $0x70] sm:$0xff]
    %v192 = vld [vmem:[#allocation7 + $0x78] sm:$0xff]
    %v193 = vld [vmem:[#allocation7 + $0x80] sm:$0xff]
    %v194 = vld [vmem:[#allocation7 + $0x88] sm:$0xff]
    %v195 = vld [vmem:[#allocation7 + $0x90] sm:$0xff]
    %v196 = vld [vmem:[#allocation7 + $0x98] sm:$0xff]
    %v197 = vld [vmem:[#allocation7 + $0xa0] sm:$0xff]
    %v198 = vld [vmem:[#allocation7 + $0xa8] sm:$0xff]
    %v199 = vld [vmem:[#allocation7 + $0xb0] sm:$0xff]
    %v200 = vld [vmem:[#allocation7 + $0xb8] sm:$0xff]
    %v201 = vld [vmem:[#allocation7 + $0xc0] sm:$0xff]
    %v202 = vld [vmem:[#allocation7 + $0xc8] sm:$0xff]
    %v203 = vld [vmem:[#allocation7 + $0xd0] sm:$0xff]
    %v204 = vld [vmem:[#allocation7 + $0xd8] sm:$0xff]
    %v205 = vld [vmem:[#allocation7 + $0xe0] sm:$0xff]
    %v206 = vld [vmem:[#allocation7 + $0xe8] sm:$0xff]
    %v207 = vld [vmem:[#allocation7 + $0xf0] sm:$0xff]
    %v208 = vld [vmem:[#allocation7 + $0xf8] sm:$0xff]
    %v209 = vld [vmem:[#allocation7 + $0x100] sm:$0xff]
    %v210 = vld [vmem:[#allocation7 + $0x108] sm:$0xff]
    %v211 = vld [vmem:[#allocation7 + $0x110] sm:$0xff]
    %v212 = vld [vmem:[#allocation7 + $0x118] sm:$0xff]
    %v213 = vld [vmem:[#allocation7 + $0x120] sm:$0xff]
    %v214 = vld [vmem:[#allocation7 + $0x128] sm:$0xff]
    %v215 = vld [vmem:[#allocation7 + $0x130] sm:$0xff]
    %v216 = vld [vmem:[#allocation7 + $0x138] sm:$0xff]
    %v217 = vld [vmem:[#allocation7 + $0x140] sm:$0xff]
    %v218 = vld [vmem:[#allocation7 + $0x148] sm:$0xff]
    %v219 = vld [vmem:[#allocation7 + $0x150] sm:$0xff]
    %v220 = vld [vmem:[#allocation7 + $0x158] sm:$0xff]
    %v221 = vld [vmem:[#allocation7 + $0x160] sm:$0xff]
    %v222 = vld [vmem:[#allocation7 + $0x168] sm:$0xff]
    %v223 = vld [vmem:[#allocation7 + $0x170] sm:$0xff]
    %v224 = vld [vmem:[#allocation7 + $0x178] sm:$0xff]
    %v225 = vld [vmem:[#allocation8] sm:$0x3f]
    %v227 = vlaneseq
    %v228 = vshrl.u32 %v227, 7
    %v229 = vsub.s32 0, %v228
    %v230 = vrot.slane %v225, %v229
    %v231 = vlaneseq
    %v232 = vshrl.u32 %v231, 7
    %v233 = vsub.s32 1, %v232
    %v234 = vrot.slane %v225, %v233
    %v235 = vlaneseq
    %v236 = vshrl.u32 %v235, 7
    %v237 = vsub.s32 2, %v236
    %v238 = vrot.slane %v225, %v237
    %v239 = vlaneseq
    %v240 = vshrl.u32 %v239, 7
    %v241 = vsub.s32 3, %v240
    %v242 = vrot.slane %v225, %v241
    %v243 = vlaneseq
    %v244 = vshrl.u32 %v243, 7
    %v245 = vsub.s32 4, %v244
    %v246 = vrot.slane %v225, %v245
    %v247 = vlaneseq
    %v248 = vshrl.u32 %v247, 7
    %v249 = vsub.s32 5, %v248
    %v250 = vrot.slane %v225, %v249
    %v259 = vunpack.c.l.b16 %v175
    %v260 = vunpack.c.l.b16 %v176
    %v261 = vpack.c.b16 %v260, %v259
    %v311 = vunpack.c.l.b16 %v177
    %v312 = vunpack.c.h.b16 %v177
    %v313 = vunpack.c.l.b16 %v178
    %v314 = vunpack.c.h.b16 %v178
    %v315 = vunpack.c.l.b16 %v179
    %v316 = vunpack.c.h.b16 %v179
    %v317 = vunpack.c.l.b16 %v180
    %v318 = vunpack.c.h.b16 %v180
    %v319 = vunpack.c.l.b16 %v181
    %v320 = vunpack.c.h.b16 %v181
    %v321 = vunpack.c.l.b16 %v182
    %v322 = vunpack.c.h.b16 %v182
    %v323 = vunpack.c.l.b16 %v183
    %v324 = vunpack.c.h.b16 %v183
    %v325 = vunpack.c.l.b16 %v184
    %v326 = vunpack.c.h.b16 %v184
    %v327 = vunpack.c.l.b16 %v185
    %v328 = vunpack.c.h.b16 %v185
    %v329 = vunpack.c.l.b16 %v186
    %v330 = vunpack.c.h.b16 %v186
    %v331 = vunpack.c.l.b16 %v187
    %v332 = vunpack.c.h.b16 %v187
    %v333 = vunpack.c.l.b16 %v188
    %v334 = vunpack.c.h.b16 %v188
    %v335 = vunpack.c.l.b16 %v189
    %v336 = vunpack.c.h.b16 %v189
    %v337 = vunpack.c.l.b16 %v190
    %v338 = vunpack.c.h.b16 %v190
    %v339 = vunpack.c.l.b16 %v191
    %v340 = vunpack.c.h.b16 %v191
    %v341 = vunpack.c.l.b16 %v192
    %v342 = vunpack.c.h.b16 %v192
    %v343 = vunpack.c.l.b16 %v193
    %v344 = vunpack.c.h.b16 %v193
    %v345 = vunpack.c.l.b16 %v194
    %v346 = vunpack.c.h.b16 %v194
    %v347 = vunpack.c.l.b16 %v195
    %v348 = vunpack.c.h.b16 %v195
    %v349 = vunpack.c.l.b16 %v196
    %v350 = vunpack.c.h.b16 %v196
    %v351 = vunpack.c.l.b16 %v197
    %v352 = vunpack.c.h.b16 %v197
    %v353 = vunpack.c.l.b16 %v198
    %v354 = vunpack.c.h.b16 %v198
    %v355 = vunpack.c.l.b16 %v199
    %v356 = vunpack.c.h.b16 %v199
    %v357 = vunpack.c.l.b16 %v200
    %v358 = vunpack.c.h.b16 %v200
    %v359 = vunpack.c.l.b16 %v201
    %v360 = vunpack.c.h.b16 %v201
    %v361 = vunpack.c.l.b16 %v202
    %v362 = vunpack.c.h.b16 %v202
    %v363 = vunpack.c.l.b16 %v203
    %v364 = vunpack.c.h.b16 %v203
    %v365 = vunpack.c.l.b16 %v204
    %v366 = vunpack.c.h.b16 %v204
    %v367 = vunpack.c.l.b16 %v205
    %v368 = vunpack.c.h.b16 %v205
    %v369 = vunpack.c.l.b16 %v206
    %v370 = vunpack.c.h.b16 %v206
    %v371 = vunpack.c.l.b16 %v207
    %v372 = vunpack.c.h.b16 %v207
    %v373 = vunpack.c.l.b16 %v208
    %v374 = vunpack.c.h.b16 %v208
    %v375 = vunpack.c.l.b16 %v209
    %v376 = vunpack.c.h.b16 %v209
    %v377 = vunpack.c.l.b16 %v210
    %v378 = vunpack.c.h.b16 %v210
    %v379 = vunpack.c.l.b16 %v211
    %v380 = vunpack.c.h.b16 %v211
    %v381 = vunpack.c.l.b16 %v212
    %v382 = vunpack.c.h.b16 %v212
    %v383 = vunpack.c.l.b16 %v213
    %v384 = vunpack.c.h.b16 %v213
    %v385 = vunpack.c.l.b16 %v214
    %v386 = vunpack.c.h.b16 %v214
    %v387 = vunpack.c.l.b16 %v215
    %v388 = vunpack.c.h.b16 %v215
    %v389 = vunpack.c.l.b16 %v216
    %v390 = vunpack.c.h.b16 %v216
    %v391 = vunpack.c.l.b16 %v217
    %v392 = vunpack.c.h.b16 %v217
    %v393 = vunpack.c.l.b16 %v218
    %v394 = vunpack.c.h.b16 %v218
    %v395 = vunpack.c.l.b16 %v219
    %v396 = vunpack.c.h.b16 %v219
    %v397 = vunpack.c.l.b16 %v220
    %v398 = vunpack.c.h.b16 %v220
    %v399 = vunpack.c.l.b16 %v221
    %v400 = vunpack.c.h.b16 %v221
    %v401 = vunpack.c.l.b16 %v222
    %v402 = vunpack.c.h.b16 %v222
    %v403 = vunpack.c.l.b16 %v223
    %v404 = vunpack.c.h.b16 %v223
    %v405 = vunpack.c.l.b16 %v224
    %v406 = vunpack.c.h.b16 %v224
    %v407 = vpack.c.b16 %v317, %v311
    %v408 = vpack.c.b16 %v318, %v312
    %v409 = vpack.c.b16 %v319, %v313
    %v410 = vpack.c.b16 %v320, %v314
    %v411 = vpack.c.b16 %v321, %v315
    %v412 = vpack.c.b16 %v322, %v316
    %v413 = vpack.c.b16 %v329, %v323
    %v414 = vpack.c.b16 %v330, %v324
    %v415 = vpack.c.b16 %v331, %v325
    %v416 = vpack.c.b16 %v332, %v326
    %v417 = vpack.c.b16 %v333, %v327
    %v418 = vpack.c.b16 %v334, %v328
    %v419 = vpack.c.b16 %v341, %v335
    %v420 = vpack.c.b16 %v342, %v336
    %v421 = vpack.c.b16 %v343, %v337
    %v422 = vpack.c.b16 %v344, %v338
    %v423 = vpack.c.b16 %v345, %v339
    %v424 = vpack.c.b16 %v346, %v340
    %v425 = vpack.c.b16 %v353, %v347
    %v426 = vpack.c.b16 %v354, %v348
    %v427 = vpack.c.b16 %v355, %v349
    %v428 = vpack.c.b16 %v356, %v350
    %v429 = vpack.c.b16 %v357, %v351
    %v430 = vpack.c.b16 %v358, %v352
    %v431 = vpack.c.b16 %v365, %v359
    %v432 = vpack.c.b16 %v366, %v360
    %v433 = vpack.c.b16 %v367, %v361
    %v434 = vpack.c.b16 %v368, %v362
    %v435 = vpack.c.b16 %v369, %v363
    %v436 = vpack.c.b16 %v370, %v364
    %v437 = vpack.c.b16 %v377, %v371
    %v438 = vpack.c.b16 %v378, %v372
    %v439 = vpack.c.b16 %v379, %v373
    %v440 = vpack.c.b16 %v380, %v374
    %v441 = vpack.c.b16 %v381, %v375
    %v442 = vpack.c.b16 %v382, %v376
    %v443 = vpack.c.b16 %v389, %v383
    %v444 = vpack.c.b16 %v390, %v384
    %v445 = vpack.c.b16 %v391, %v385
    %v446 = vpack.c.b16 %v392, %v386
    %v447 = vpack.c.b16 %v393, %v387
    %v448 = vpack.c.b16 %v394, %v388
    %v449 = vpack.c.b16 %v401, %v395
    %v450 = vpack.c.b16 %v402, %v396
    %v451 = vpack.c.b16 %v403, %v397
    %v452 = vpack.c.b16 %v404, %v398
    %v453 = vpack.c.b16 %v405, %v399
    %v454 = vpack.c.b16 %v406, %v400
    %503 = vmatprep.subr.bf16.mxu0 %v408
    %504 = vmatpush1.bf16.msra.mxu0 %v407
    %505 = vmatprep.subr.bf16.mxu0 %v414
    %506 = vmatpush1.bf16.msra.mxu0 %v413
    %507 = vmatprep.subr.bf16.mxu0 %v420
    %508 = vmatpush1.bf16.msra.mxu0 %v419
    %509 = vmatprep.subr.bf16.mxu0 %v426
    %510 = vmatpush1.bf16.msra.mxu0 %v425
    %511 = vmatprep.subr.bf16.mxu0 %v432
    %512 = vmatpush1.bf16.msra.mxu0 %v431
    %513 = vmatprep.subr.bf16.mxu0 %v438
    %514 = vmatpush1.bf16.msra.mxu0 %v437
    %515 = vmatprep.subr.bf16.mxu0 %v444
    %516 = vmatpush1.bf16.msra.mxu0 %v443
    %517 = vmatprep.subr.bf16.mxu0 %v450
    %518 = vmatpush1.bf16.msra.mxu0 %v449
    %519 = vmatprep.subr.bf16.mxu0 0
    %520 = vmatpush1.bf16.msra.mxu0 0
    %521 = vmatprep.subr.bf16.mxu0 0
    %522 = vmatpush1.bf16.msra.mxu0 0
    %523 = vmatprep.subr.bf16.mxu0 0
    %524 = vmatpush1.bf16.msra.mxu0 0
    %525 = vmatprep.subr.bf16.mxu0 0
    %526 = vmatpush1.bf16.msra.mxu0 0
    %527 = vmatprep.subr.bf16.mxu0 0
    %528 = vmatpush1.bf16.msra.mxu0 0
    %529 = vmatprep.subr.bf16.mxu0 0
    %530 = vmatpush1.bf16.msra.mxu0 0
    %531 = vmatprep.subr.bf16.mxu0 0
    %532 = vmatpush1.bf16.msra.mxu0 0
    %533 = vmatprep.subr.bf16.mxu0 0
    %534 = vmatpush1.bf16.msra.mxu0 0
    %535 = vmatprep.mubr.bf16.mxu0 0
    %536 = vmatmul.mubr.bf16.gmra.mrb[0].mxu0 %v261
    %v537 = vpop.f32.mrb[0].mxu0
    %v538 = vadd.f32 %v230, %v537
    %v539 = vpop.f32.mrb[0].mxu0
    %v540 = vadd.f32 %v234, %v539
    %v541 = vpop.f32.mrb[0].mxu0
    %v542 = vadd.f32 %v230, %v541
    %v543 = vpop.f32.mrb[0].mxu0
    %v544 = vadd.f32 %v234, %v543
    %545 = vdwg.mxu0
    %546 = vmatprep.subr.bf16.mxu0 %v410
    %547 = vmatpush1.bf16.msra.mxu0 %v409
    %548 = vmatprep.subr.bf16.mxu0 %v416
    %549 = vmatpush1.bf16.msra.mxu0 %v415
    %550 = vmatprep.subr.bf16.mxu0 %v422
    %551 = vmatpush1.bf16.msra.mxu0 %v421
    %552 = vmatprep.subr.bf16.mxu0 %v428
    %553 = vmatpush1.bf16.msra.mxu0 %v427
    %554 = vmatprep.subr.bf16.mxu0 %v434
    %555 = vmatpush1.bf16.msra.mxu0 %v433
    %556 = vmatprep.subr.bf16.mxu0 %v440
    %557 = vmatpush1.bf16.msra.mxu0 %v439
    %558 = vmatprep.subr.bf16.mxu0 %v446
    %559 = vmatpush1.bf16.msra.mxu0 %v445
    %560 = vmatprep.subr.bf16.mxu0 %v452
    %561 = vmatpush1.bf16.msra.mxu0 %v451
    %562 = vmatprep.subr.bf16.mxu0 0
    %563 = vmatpush1.bf16.msra.mxu0 0
    %564 = vmatprep.subr.bf16.mxu0 0
    %565 = vmatpush1.bf16.msra.mxu0 0
    %566 = vmatprep.subr.bf16.mxu0 0
    %567 = vmatpush1.bf16.msra.mxu0 0
    %568 = vmatprep.subr.bf16.mxu0 0
    %569 = vmatpush1.bf16.msra.mxu0 0
    %570 = vmatprep.subr.bf16.mxu0 0
    %571 = vmatpush1.bf16.msra.mxu0 0
    %572 = vmatprep.subr.bf16.mxu0 0
    %573 = vmatpush1.bf16.msra.mxu0 0
    %574 = vmatprep.subr.bf16.mxu0 0
    %575 = vmatpush1.bf16.msra.mxu0 0
    %576 = vmatprep.subr.bf16.mxu0 0
    %577 = vmatpush1.bf16.msra.mxu0 0
    %578 = vmatprep.mubr.bf16.mxu0 0
    %579 = vmatmul.mubr.bf16.gmra.mrb[0].mxu0 %v261
    %v580 = vpop.f32.mrb[0].mxu0
    %v581 = vadd.f32 %v238, %v580
    %v582 = vpop.f32.mrb[0].mxu0
    %v583 = vadd.f32 %v242, %v582
    %v584 = vpop.f32.mrb[0].mxu0
    %v585 = vadd.f32 %v238, %v584
    %v586 = vpop.f32.mrb[0].mxu0
    %v587 = vadd.f32 %v242, %v586
    %588 = vdwg.mxu0
    %589 = vmatprep.subr.bf16.mxu0 %v412
    %590 = vmatpush1.bf16.msra.mxu0 %v411
    %591 = vmatprep.subr.bf16.mxu0 %v418
    %592 = vmatpush1.bf16.msra.mxu0 %v417
    %593 = vmatprep.subr.bf16.mxu0 %v424
    %594 = vmatpush1.bf16.msra.mxu0 %v423
    %595 = vmatprep.subr.bf16.mxu0 %v430
    %596 = vmatpush1.bf16.msra.mxu0 %v429
    %597 = vmatprep.subr.bf16.mxu0 %v436
    %598 = vmatpush1.bf16.msra.mxu0 %v435
    %599 = vmatprep.subr.bf16.mxu0 %v442
    %600 = vmatpush1.bf16.msra.mxu0 %v441
    %601 = vmatprep.subr.bf16.mxu0 %v448
    %602 = vmatpush1.bf16.msra.mxu0 %v447
    %603 = vmatprep.subr.bf16.mxu0 %v454
    %604 = vmatpush1.bf16.msra.mxu0 %v453
    %605 = vmatprep.subr.bf16.mxu0 0
    %606 = vmatpush1.bf16.msra.mxu0 0
    %607 = vmatprep.subr.bf16.mxu0 0
    %608 = vmatpush1.bf16.msra.mxu0 0
    %609 = vmatprep.subr.bf16.mxu0 0
    %610 = vmatpush1.bf16.msra.mxu0 0
    %611 = vmatprep.subr.bf16.mxu0 0
    %612 = vmatpush1.bf16.msra.mxu0 0
    %613 = vmatprep.subr.bf16.mxu0 0
    %614 = vmatpush1.bf16.msra.mxu0 0
    %615 = vmatprep.subr.bf16.mxu0 0
    %616 = vmatpush1.bf16.msra.mxu0 0
    %617 = vmatprep.subr.bf16.mxu0 0
    %618 = vmatpush1.bf16.msra.mxu0 0
    %619 = vmatprep.subr.bf16.mxu0 0
    %620 = vmatpush1.bf16.msra.mxu0 0
    %621 = vmatprep.mubr.bf16.mxu0 0
    %622 = vmatmul.mubr.bf16.gmra.mrb[0].mxu0 %v261
    %v623 = vpop.f32.mrb[0].mxu0
    %v624 = vadd.f32 %v246, %v623
    %v625 = vpop.f32.mrb[0].mxu0
    %v626 = vadd.f32 %v250, %v625
    %v627 = vpop.f32.mrb[0].mxu0
    %v628 = vadd.f32 %v246, %v627
    %v629 = vpop.f32.mrb[0].mxu0
    %v630 = vadd.f32 %v250, %v629
    %631 = vdwg.mxu0
    %v632 = vld [vmem:[#allocation5] sm:$0xff]
    %v633 = vld [vmem:[#allocation5 + $0x8] sm:$0xff]
    %s634 = scalar_lea.vmem [#allocation5], 16
    %v635 = vld [vmem:[%s634] sm:$0xff]
    %v636 = vld [vmem:[%s634 + $0x8] sm:$0xff]
    %s637 = scalar_lea.vmem [#allocation5], 32
    %v638 = vld [vmem:[%s637] sm:$0xff]
    %v639 = vld [vmem:[%s637 + $0x8] sm:$0xff]
    %s640 = scalar_lea.vmem [#allocation5], 48
    %v641 = vld [vmem:[%s640] sm:$0xff]
    %v642 = vld [vmem:[%s640 + $0x8] sm:$0xff]
    %s643 = scalar_lea.vmem [#allocation5], 64
    %v644 = vld [vmem:[%s643] sm:$0xff]
    %v645 = vld [vmem:[%s643 + $0x8] sm:$0xff]
    %v646 = vmul.f32 %v632, 0.0
    %v647 = vmul.f32 %v633, 0.0
    %v648 = vlaneseq
    %v649 = vshrl.u32 %v648, 7
    %vm650 = vcmp.lt.s32.totalorder %v649, 4
    %v651 = vmul.f32 0.0, %v635
    %v652 = vmul.f32 0.0, %v636
    %v653 = vadd.f32 %v646, %v651
    %v654 = vadd.f32 %v647, %v652
    %vm655 = vcmp.lt.s32.totalorder %v649, 6
    %v656 = vmul.f32 0.0, %v638
    %v657 = vmul.f32 0.0, %v639
    %v658 = vadd.f32 %v653, %v656
    %v659 = vadd.f32 %v654, %v657
    %vm660 = vcmp.lt.s32.totalorder %v649, 2
    %v661 = vmul.f32 0.0, %v641
    %v662 = vmul.f32 0.0, %v642
    %v663 = vadd.f32 %v658, %v661
    %v664 = vadd.f32 %v659, %v662
    %v665 = vmul.f32 0.0, %v644
    %v666 = vmul.f32 0.0, %v645
    %v667 = vadd.f32 %v663, %v665
    %v668 = vadd.f32 %v664, %v666
    %v669 = vpack.c.bf16 %v668, %v667
    %v670 = vld [vmem:[#allocation10] sm:$0xff]
    %v671 = vld [vmem:[#allocation10 + $0x8] sm:$0xff]
    %v672 = vld [vmem:[#allocation10 + $0x10] sm:$0xff]
    %v673 = vld [vmem:[#allocation10 + $0x18] sm:$0xff]
    %v674 = vld [vmem:[#allocation10 + $0x20] sm:$0xff]
    %v675 = vld [vmem:[#allocation10 + $0x28] sm:$0xff]
    %v676 = vld [vmem:[#allocation10 + $0x30] sm:$0xff]
    %v677 = vld [vmem:[#allocation10 + $0x38] sm:$0xff]
    %v678 = vld [vmem:[#allocation10 + $0x40] sm:$0xff]
    %v679 = vld [vmem:[#allocation10 + $0x48] sm:$0xff]
    %v680 = vld [vmem:[#allocation10 + $0x50] sm:$0xff]
    %v681 = vld [vmem:[#allocation10 + $0x58] sm:$0xff]
    %v682 = vld [vmem:[#allocation10 + $0x60] sm:$0xff]
    %v683 = vld [vmem:[#allocation10 + $0x68] sm:$0xff]
    %v684 = vld [vmem:[#allocation10 + $0x70] sm:$0xff]
    %v685 = vld [vmem:[#allocation10 + $0x78] sm:$0xff]
    %v686 = vld [vmem:[#allocation10 + $0x80] sm:$0xff]
    %v687 = vld [vmem:[#allocation10 + $0x88] sm:$0xff]
    %v688 = vld [vmem:[#allocation10 + $0x90] sm:$0xff]
    %v689 = vld [vmem:[#allocation10 + $0x98] sm:$0xff]
    %v690 = vld [vmem:[#allocation10 + $0xa0] sm:$0xff]
    %v691 = vld [vmem:[#allocation10 + $0xa8] sm:$0xff]
    %v692 = vld [vmem:[#allocation10 + $0xb0] sm:$0xff]
    %v693 = vld [vmem:[#allocation10 + $0xb8] sm:$0xff]
    %v694 = vld [vmem:[#allocation10 + $0xc0] sm:$0xff]
    %v695 = vld [vmem:[#allocation10 + $0xc8] sm:$0xff]
    %v696 = vld [vmem:[#allocation10 + $0xd0] sm:$0xff]
    %v697 = vld [vmem:[#allocation10 + $0xd8] sm:$0xff]
    %v698 = vld [vmem:[#allocation10 + $0xe0] sm:$0xff]
    %v699 = vld [vmem:[#allocation10 + $0xe8] sm:$0xff]
    %v700 = vld [vmem:[#allocation10 + $0xf0] sm:$0xff]
    %v701 = vld [vmem:[#allocation10 + $0xf8] sm:$0xff]
    %v702 = vld [vmem:[#allocation10 + $0x100] sm:$0xff]
    %v703 = vld [vmem:[#allocation10 + $0x108] sm:$0xff]
    %v704 = vld [vmem:[#allocation10 + $0x110] sm:$0xff]
    %v705 = vld [vmem:[#allocation10 + $0x118] sm:$0xff]
    %v706 = vld [vmem:[#allocation10 + $0x120] sm:$0xff]
    %v707 = vld [vmem:[#allocation10 + $0x128] sm:$0xff]
    %v708 = vld [vmem:[#allocation10 + $0x130] sm:$0xff]
    %v709 = vld [vmem:[#allocation10 + $0x138] sm:$0xff]
    %v710 = vld [vmem:[#allocation10 + $0x140] sm:$0xff]
    %v711 = vld [vmem:[#allocation10 + $0x148] sm:$0xff]
    %v712 = vld [vmem:[#allocation10 + $0x150] sm:$0xff]
    %v713 = vld [vmem:[#allocation10 + $0x158] sm:$0xff]
    %v714 = vld [vmem:[#allocation10 + $0x160] sm:$0xff]
    %v715 = vld [vmem:[#allocation10 + $0x168] sm:$0xff]
    %v716 = vld [vmem:[#allocation10 + $0x170] sm:$0xff]
    %v717 = vld [vmem:[#allocation10 + $0x178] sm:$0xff]
    %v718 = vld [vmem:[#allocation10 + $0x180] sm:$0xff]
    %v719 = vld [vmem:[#allocation10 + $0x188] sm:$0xff]
    %v720 = vld [vmem:[#allocation10 + $0x190] sm:$0xff]
    %v721 = vld [vmem:[#allocation10 + $0x198] sm:$0xff]
    %v722 = vld [vmem:[#allocation10 + $0x1a0] sm:$0xff]
    %v723 = vld [vmem:[#allocation10 + $0x1a8] sm:$0xff]
    %v724 = vld [vmem:[#allocation10 + $0x1b0] sm:$0xff]
    %v725 = vld [vmem:[#allocation10 + $0x1b8] sm:$0xff]
    %v726 = vld [vmem:[#allocation10 + $0x1c0] sm:$0xff]
    %v727 = vld [vmem:[#allocation10 + $0x1c8] sm:$0xff]
    %v728 = vld [vmem:[#allocation10 + $0x1d0] sm:$0xff]
    %v729 = vld [vmem:[#allocation10 + $0x1d8] sm:$0xff]
    %v730 = vld [vmem:[#allocation10 + $0x1e0] sm:$0xff]
    %v731 = vld [vmem:[#allocation10 + $0x1e8] sm:$0xff]
    %v732 = vld [vmem:[#allocation10 + $0x1f0] sm:$0xff]
    %v733 = vld [vmem:[#allocation10 + $0x1f8] sm:$0xff]
    %v734 = vld [vmem:[#allocation10 + $0x200] sm:$0xff]
    %v735 = vld [vmem:[#allocation10 + $0x208] sm:$0xff]
    %v736 = vld [vmem:[#allocation10 + $0x210] sm:$0xff]
    %v737 = vld [vmem:[#allocation10 + $0x218] sm:$0xff]
    %v738 = vld [vmem:[#allocation10 + $0x220] sm:$0xff]
    %v739 = vld [vmem:[#allocation10 + $0x228] sm:$0xff]
    %v740 = vld [vmem:[#allocation10 + $0x230] sm:$0xff]
    %v741 = vld [vmem:[#allocation10 + $0x238] sm:$0xff]
    %v742 = vld [vmem:[#allocation10 + $0x240] sm:$0xff]
    %v743 = vld [vmem:[#allocation10 + $0x248] sm:$0xff]
    %v744 = vld [vmem:[#allocation10 + $0x250] sm:$0xff]
    %v745 = vld [vmem:[#allocation10 + $0x258] sm:$0xff]
    %v746 = vld [vmem:[#allocation10 + $0x260] sm:$0xff]
    %v747 = vld [vmem:[#allocation10 + $0x268] sm:$0xff]
    %v748 = vld [vmem:[#allocation10 + $0x270] sm:$0xff]
    %v749 = vld [vmem:[#allocation10 + $0x278] sm:$0xff]
    %v750 = vld [vmem:[#allocation10 + $0x280] sm:$0xff]
    %v751 = vld [vmem:[#allocation10 + $0x288] sm:$0xff]
    %v752 = vld [vmem:[#allocation10 + $0x290] sm:$0xff]
    %v753 = vld [vmem:[#allocation10 + $0x298] sm:$0xff]
    %v754 = vld [vmem:[#allocation10 + $0x2a0] sm:$0xff]
    %v755 = vld [vmem:[#allocation10 + $0x2a8] sm:$0xff]
    %v756 = vld [vmem:[#allocation10 + $0x2b0] sm:$0xff]
    %v757 = vld [vmem:[#allocation10 + $0x2b8] sm:$0xff]
    %v758 = vld [vmem:[#allocation10 + $0x2c0] sm:$0xff]
    %v759 = vld [vmem:[#allocation10 + $0x2c8] sm:$0xff]
    %v760 = vld [vmem:[#allocation10 + $0x2d0] sm:$0xff]
    %v761 = vld [vmem:[#allocation10 + $0x2d8] sm:$0xff]
    %v762 = vld [vmem:[#allocation10 + $0x2e0] sm:$0xff]
    %v763 = vld [vmem:[#allocation10 + $0x2e8] sm:$0xff]
    %v764 = vld [vmem:[#allocation10 + $0x2f0] sm:$0xff]
    %v765 = vld [vmem:[#allocation10 + $0x2f8] sm:$0xff]
    %v862 = vunpack.c.l.b16 %v670
    %v863 = vunpack.c.h.b16 %v670
    %v864 = vunpack.c.l.b16 %v671
    %v865 = vunpack.c.h.b16 %v671
    %v866 = vunpack.c.l.b16 %v672
    %v867 = vunpack.c.h.b16 %v672
    %v868 = vunpack.c.l.b16 %v673
    %v869 = vunpack.c.h.b16 %v673
    %v870 = vunpack.c.l.b16 %v674
    %v871 = vunpack.c.h.b16 %v674
    %v872 = vunpack.c.l.b16 %v675
    %v873 = vunpack.c.h.b16 %v675
    %v874 = vunpack.c.l.b16 %v676
    %v875 = vunpack.c.h.b16 %v676
    %v876 = vunpack.c.l.b16 %v677
    %v877 = vunpack.c.h.b16 %v677
    %v878 = vunpack.c.l.b16 %v678
    %v879 = vunpack.c.h.b16 %v678
    %v880 = vunpack.c.l.b16 %v679
    %v881 = vunpack.c.h.b16 %v679
    %v882 = vunpack.c.l.b16 %v680
    %v883 = vunpack.c.h.b16 %v680
    %v884 = vunpack.c.l.b16 %v681
    %v885 = vunpack.c.h.b16 %v681
    %v886 = vunpack.c.l.b16 %v682
    %v887 = vunpack.c.h.b16 %v682
    %v888 = vunpack.c.l.b16 %v683
    %v889 = vunpack.c.h.b16 %v683
    %v890 = vunpack.c.l.b16 %v684
    %v891 = vunpack.c.h.b16 %v684
    %v892 = vunpack.c.l.b16 %v685
    %v893 = vunpack.c.h.b16 %v685
    %v894 = vunpack.c.l.b16 %v686
    %v895 = vunpack.c.h.b16 %v686
    %v896 = vunpack.c.l.b16 %v687
    %v897 = vunpack.c.h.b16 %v687
    %v898 = vunpack.c.l.b16 %v688
    %v899 = vunpack.c.h.b16 %v688
    %v900 = vunpack.c.l.b16 %v689
    %v901 = vunpack.c.h.b16 %v689
    %v902 = vunpack.c.l.b16 %v690
    %v903 = vunpack.c.h.b16 %v690
    %v904 = vunpack.c.l.b16 %v691
    %v905 = vunpack.c.h.b16 %v691
    %v906 = vunpack.c.l.b16 %v692
    %v907 = vunpack.c.h.b16 %v692
    %v908 = vunpack.c.l.b16 %v693
    %v909 = vunpack.c.h.b16 %v693
    %v910 = vunpack.c.l.b16 %v694
    %v911 = vunpack.c.h.b16 %v694
    %v912 = vunpack.c.l.b16 %v695
    %v913 = vunpack.c.h.b16 %v695
    %v914 = vunpack.c.l.b16 %v696
    %v915 = vunpack.c.h.b16 %v696
    %v916 = vunpack.c.l.b16 %v697
    %v917 = vunpack.c.h.b16 %v697
    %v918 = vunpack.c.l.b16 %v698
    %v919 = vunpack.c.h.b16 %v698
    %v920 = vunpack.c.l.b16 %v699
    %v921 = vunpack.c.h.b16 %v699
    %v922 = vunpack.c.l.b16 %v700
    %v923 = vunpack.c.h.b16 %v700
    %v924 = vunpack.c.l.b16 %v701
    %v925 = vunpack.c.h.b16 %v701
    %v926 = vunpack.c.l.b16 %v702
    %v927 = vunpack.c.h.b16 %v702
    %v928 = vunpack.c.l.b16 %v703
    %v929 = vunpack.c.h.b16 %v703
    %v930 = vunpack.c.l.b16 %v704
    %v931 = vunpack.c.h.b16 %v704
    %v932 = vunpack.c.l.b16 %v705
    %v933 = vunpack.c.h.b16 %v705
    %v934 = vunpack.c.l.b16 %v706
    %v935 = vunpack.c.h.b16 %v706
    %v936 = vunpack.c.l.b16 %v707
    %v937 = vunpack.c.h.b16 %v707
    %v938 = vunpack.c.l.b16 %v708
    %v939 = vunpack.c.h.b16 %v708
    %v940 = vunpack.c.l.b16 %v709
    %v941 = vunpack.c.h.b16 %v709
    %v942 = vunpack.c.l.b16 %v710
    %v943 = vunpack.c.h.b16 %v710
    %v944 = vunpack.c.l.b16 %v711
    %v945 = vunpack.c.h.b16 %v711
    %v946 = vunpack.c.l.b16 %v712
    %v947 = vunpack.c.h.b16 %v712
    %v948 = vunpack.c.l.b16 %v713
    %v949 = vunpack.c.h.b16 %v713
    %v950 = vunpack.c.l.b16 %v714
    %v951 = vunpack.c.h.b16 %v714
    %v952 = vunpack.c.l.b16 %v715
    %v953 = vunpack.c.h.b16 %v715
    %v954 = vunpack.c.l.b16 %v716
    %v955 = vunpack.c.h.b16 %v716
    %v956 = vunpack.c.l.b16 %v717
    %v957 = vunpack.c.h.b16 %v717
    %v958 = vunpack.c.l.b16 %v718
    %v959 = vunpack.c.h.b16 %v718
    %v960 = vunpack.c.l.b16 %v719
    %v961 = vunpack.c.h.b16 %v719
    %v962 = vunpack.c.l.b16 %v720
    %v963 = vunpack.c.h.b16 %v720
    %v964 = vunpack.c.l.b16 %v721
    %v965 = vunpack.c.h.b16 %v721
    %v966 = vunpack.c.l.b16 %v722
    %v967 = vunpack.c.h.b16 %v722
    %v968 = vunpack.c.l.b16 %v723
    %v969 = vunpack.c.h.b16 %v723
    %v970 = vunpack.c.l.b16 %v724
    %v971 = vunpack.c.h.b16 %v724
    %v972 = vunpack.c.l.b16 %v725
    %v973 = vunpack.c.h.b16 %v725
    %v974 = vunpack.c.l.b16 %v726
    %v975 = vunpack.c.h.b16 %v726
    %v976 = vunpack.c.l.b16 %v727
    %v977 = vunpack.c.h.b16 %v727
    %v978 = vunpack.c.l.b16 %v728
    %v979 = vunpack.c.h.b16 %v728
    %v980 = vunpack.c.l.b16 %v729
    %v981 = vunpack.c.h.b16 %v729
    %v982 = vunpack.c.l.b16 %v730
    %v983 = vunpack.c.h.b16 %v730
    %v984 = vunpack.c.l.b16 %v731
    %v985 = vunpack.c.h.b16 %v731
    %v986 = vunpack.c.l.b16 %v732
    %v987 = vunpack.c.h.b16 %v732
    %v988 = vunpack.c.l.b16 %v733
    %v989 = vunpack.c.h.b16 %v733
    %v990 = vunpack.c.l.b16 %v734
    %v991 = vunpack.c.h.b16 %v734
    %v992 = vunpack.c.l.b16 %v735
    %v993 = vunpack.c.h.b16 %v735
    %v994 = vunpack.c.l.b16 %v736
    %v995 = vunpack.c.h.b16 %v736
    %v996 = vunpack.c.l.b16 %v737
    %v997 = vunpack.c.h.b16 %v737
    %v998 = vunpack.c.l.b16 %v738
    %v999 = vunpack.c.h.b16 %v738
    %v1000 = vunpack.c.l.b16 %v739
    %v1001 = vunpack.c.h.b16 %v739
    %v1002 = vunpack.c.l.b16 %v740
    %v1003 = vunpack.c.h.b16 %v740
    %v1004 = vunpack.c.l.b16 %v741
    %v1005 = vunpack.c.h.b16 %v741
    %v1006 = vunpack.c.l.b16 %v742
    %v1007 = vunpack.c.h.b16 %v742
    %v1008 = vunpack.c.l.b16 %v743
    %v1009 = vunpack.c.h.b16 %v743
    %v1010 = vunpack.c.l.b16 %v744
    %v1011 = vunpack.c.h.b16 %v744
    %v1012 = vunpack.c.l.b16 %v745
    %v1013 = vunpack.c.h.b16 %v745
    %v1014 = vunpack.c.l.b16 %v746
    %v1015 = vunpack.c.h.b16 %v746
    %v1016 = vunpack.c.l.b16 %v747
    %v1017 = vunpack.c.h.b16 %v747
    %v1018 = vunpack.c.l.b16 %v748
    %v1019 = vunpack.c.h.b16 %v748
    %v1020 = vunpack.c.l.b16 %v749
    %v1021 = vunpack.c.h.b16 %v749
    %v1022 = vunpack.c.l.b16 %v750
    %v1023 = vunpack.c.h.b16 %v750
    %v1024 = vunpack.c.l.b16 %v751
    %v1025 = vunpack.c.h.b16 %v751
    %v1026 = vunpack.c.l.b16 %v752
    %v1027 = vunpack.c.h.b16 %v752
    %v1028 = vunpack.c.l.b16 %v753
    %v1029 = vunpack.c.h.b16 %v753
    %v1030 = vunpack.c.l.b16 %v754
    %v1031 = vunpack.c.h.b16 %v754
    %v1032 = vunpack.c.l.b16 %v755
    %v1033 = vunpack.c.h.b16 %v755
    %v1034 = vunpack.c.l.b16 %v756
    %v1035 = vunpack.c.h.b16 %v756
    %v1036 = vunpack.c.l.b16 %v757
    %v1037 = vunpack.c.h.b16 %v757
    %v1038 = vunpack.c.l.b16 %v758
    %v1039 = vunpack.c.h.b16 %v758
    %v1040 = vunpack.c.l.b16 %v759
    %v1041 = vunpack.c.h.b16 %v759
    %v1042 = vunpack.c.l.b16 %v760
    %v1043 = vunpack.c.h.b16 %v760
    %v1044 = vunpack.c.l.b16 %v761
    %v1045 = vunpack.c.h.b16 %v761
    %v1046 = vunpack.c.l.b16 %v762
    %v1047 = vunpack.c.h.b16 %v762
    %v1048 = vunpack.c.l.b16 %v763
    %v1049 = vunpack.c.h.b16 %v763
    %v1050 = vunpack.c.l.b16 %v764
    %v1051 = vunpack.c.h.b16 %v764
    %v1052 = vunpack.c.l.b16 %v765
    %v1053 = vunpack.c.h.b16 %v765
    %v1054 = vpack.c.b16 %v868, %v862
    %v1055 = vpack.c.b16 %v869, %v863
    %v1056 = vpack.c.b16 %v870, %v864
    %v1057 = vpack.c.b16 %v871, %v865
    %v1058 = vpack.c.b16 %v872, %v866
    %v1059 = vpack.c.b16 %v873, %v867
    %v1060 = vpack.c.b16 %v880, %v874
    %v1061 = vpack.c.b16 %v881, %v875
    %v1062 = vpack.c.b16 %v882, %v876
    %v1063 = vpack.c.b16 %v883, %v877
    %v1064 = vpack.c.b16 %v884, %v878
    %v1065 = vpack.c.b16 %v885, %v879
    %v1066 = vpack.c.b16 %v892, %v886
    %v1067 = vpack.c.b16 %v893, %v887
    %v1068 = vpack.c.b16 %v894, %v888
    %v1069 = vpack.c.b16 %v895, %v889
    %v1070 = vpack.c.b16 %v896, %v890
    %v1071 = vpack.c.b16 %v897, %v891
    %v1072 = vpack.c.b16 %v904, %v898
    %v1073 = vpack.c.b16 %v905, %v899
    %v1074 = vpack.c.b16 %v906, %v900
    %v1075 = vpack.c.b16 %v907, %v901
    %v1076 = vpack.c.b16 %v908, %v902
    %v1077 = vpack.c.b16 %v909, %v903
    %v1078 = vpack.c.b16 %v916, %v910
    %v1079 = vpack.c.b16 %v917, %v911
    %v1080 = vpack.c.b16 %v918, %v912
    %v1081 = vpack.c.b16 %v919, %v913
    %v1082 = vpack.c.b16 %v920, %v914
    %v1083 = vpack.c.b16 %v921, %v915
    %v1084 = vpack.c.b16 %v928, %v922
    %v1085 = vpack.c.b16 %v929, %v923
    %v1086 = vpack.c.b16 %v930, %v924
    %v1087 = vpack.c.b16 %v931, %v925
    %v1088 = vpack.c.b16 %v932, %v926
    %v1089 = vpack.c.b16 %v933, %v927
    %v1090 = vpack.c.b16 %v940, %v934
    %v1091 = vpack.c.b16 %v941, %v935
    %v1092 = vpack.c.b16 %v942, %v936
    %v1093 = vpack.c.b16 %v943, %v937
    %v1094 = vpack.c.b16 %v944, %v938
    %v1095 = vpack.c.b16 %v945, %v939
    %v1096 = vpack.c.b16 %v952, %v946
    %v1097 = vpack.c.b16 %v953, %v947
    %v1098 = vpack.c.b16 %v954, %v948
    %v1099 = vpack.c.b16 %v955, %v949
    %v1100 = vpack.c.b16 %v956, %v950
    %v1101 = vpack.c.b16 %v957, %v951
    %v1102 = vpack.c.b16 %v964, %v958
    %v1103 = vpack.c.b16 %v965, %v959
    %v1104 = vpack.c.b16 %v966, %v960
    %v1105 = vpack.c.b16 %v967, %v961
    %v1106 = vpack.c.b16 %v968, %v962
    %v1107 = vpack.c.b16 %v969, %v963
    %v1108 = vpack.c.b16 %v976, %v970
    %v1109 = vpack.c.b16 %v977, %v971
    %v1110 = vpack.c.b16 %v978, %v972
    %v1111 = vpack.c.b16 %v979, %v973
    %v1112 = vpack.c.b16 %v980, %v974
    %v1113 = vpack.c.b16 %v981, %v975
    %v1114 = vpack.c.b16 %v988, %v982
    %v1115 = vpack.c.b16 %v989, %v983
    %v1116 = vpack.c.b16 %v990, %v984
    %v1117 = vpack.c.b16 %v991, %v985
    %v1118 = vpack.c.b16 %v992, %v986
    %v1119 = vpack.c.b16 %v993, %v987
    %v1120 = vpack.c.b16 %v1000, %v994
    %v1121 = vpack.c.b16 %v1001, %v995
    %v1122 = vpack.c.b16 %v1002, %v996
    %v1123 = vpack.c.b16 %v1003, %v997
    %v1124 = vpack.c.b16 %v1004, %v998
    %v1125 = vpack.c.b16 %v1005, %v999
    %v1126 = vpack.c.b16 %v1012, %v1006
    %v1127 = vpack.c.b16 %v1013, %v1007
    %v1128 = vpack.c.b16 %v1014, %v1008
    %v1129 = vpack.c.b16 %v1015, %v1009
    %v1130 = vpack.c.b16 %v1016, %v1010
    %v1131 = vpack.c.b16 %v1017, %v1011
    %v1132 = vpack.c.b16 %v1024, %v1018
    %v1133 = vpack.c.b16 %v1025, %v1019
    %v1134 = vpack.c.b16 %v1026, %v1020
    %v1135 = vpack.c.b16 %v1027, %v1021
    %v1136 = vpack.c.b16 %v1028, %v1022
    %v1137 = vpack.c.b16 %v1029, %v1023
    %v1138 = vpack.c.b16 %v1036, %v1030
    %v1139 = vpack.c.b16 %v1037, %v1031
    %v1140 = vpack.c.b16 %v1038, %v1032
    %v1141 = vpack.c.b16 %v1039, %v1033
    %v1142 = vpack.c.b16 %v1040, %v1034
    %v1143 = vpack.c.b16 %v1041, %v1035
    %v1144 = vpack.c.b16 %v1048, %v1042
    %v1145 = vpack.c.b16 %v1049, %v1043
    %v1146 = vpack.c.b16 %v1050, %v1044
    %v1147 = vpack.c.b16 %v1051, %v1045
    %v1148 = vpack.c.b16 %v1052, %v1046
    %v1149 = vpack.c.b16 %v1053, %v1047
    %1246 = vmatprep.subr.bf16.mxu0 %v1055
    %1247 = vmatpush1.bf16.msra.mxu0 %v1054
    %1248 = vmatprep.subr.bf16.mxu0 %v1061
    %1249 = vmatpush1.bf16.msra.mxu0 %v1060
    %1250 = vmatprep.subr.bf16.mxu0 %v1067
    %1251 = vmatpush1.bf16.msra.mxu0 %v1066
    %1252 = vmatprep.subr.bf16.mxu0 %v1073
    %1253 = vmatpush1.bf16.msra.mxu0 %v1072
    %1254 = vmatprep.subr.bf16.mxu0 %v1079
    %1255 = vmatpush1.bf16.msra.mxu0 %v1078
    %1256 = vmatprep.subr.bf16.mxu0 %v1085
    %1257 = vmatpush1.bf16.msra.mxu0 %v1084
    %1258 = vmatprep.subr.bf16.mxu0 %v1091
    %1259 = vmatpush1.bf16.msra.mxu0 %v1090
    %1260 = vmatprep.subr.bf16.mxu0 %v1097
    %1261 = vmatpush1.bf16.msra.mxu0 %v1096
    %1262 = vmatprep.subr.bf16.mxu0 %v1103
    %1263 = vmatpush1.bf16.msra.mxu0 %v1102
    %1264 = vmatprep.subr.bf16.mxu0 %v1109
    %1265 = vmatpush1.bf16.msra.mxu0 %v1108
    %1266 = vmatprep.subr.bf16.mxu0 %v1115
    %1267 = vmatpush1.bf16.msra.mxu0 %v1114
    %1268 = vmatprep.subr.bf16.mxu0 %v1121
    %1269 = vmatpush1.bf16.msra.mxu0 %v1120
    %1270 = vmatprep.subr.bf16.mxu0 %v1127
    %1271 = vmatpush1.bf16.msra.mxu0 %v1126
    %1272 = vmatprep.subr.bf16.mxu0 %v1133
    %1273 = vmatpush1.bf16.msra.mxu0 %v1132
    %1274 = vmatprep.subr.bf16.mxu0 %v1139
    %1275 = vmatpush1.bf16.msra.mxu0 %v1138
    %1276 = vmatprep.subr.bf16.mxu0 %v1145
    %1277 = vmatpush1.bf16.msra.mxu0 %v1144
    %1278 = vmatprep.mubr.bf16.mxu0 0
    %1279 = vmatmul.mubr.bf16.gmra.mrb[0].mxu0 %v669
    %v1280 = vpop.f32.mrb[0].mxu0
    %v1281 = vadd.f32 0.0, %v1280
    %v1282 = vpop.f32.mrb[0].mxu0
    %v1283 = vadd.f32 0.0, %v1282
    %v1284 = vpop.f32.mrb[0].mxu0
    %v1285 = vadd.f32 0.0, %v1284
    %v1286 = vpop.f32.mrb[0].mxu0
    %v1287 = vadd.f32 0.0, %v1286
    %1288 = vdwg.mxu0
    %1289 = vmatprep.subr.bf16.mxu0 %v1057
    %1290 = vmatpush1.bf16.msra.mxu0 %v1056
    %1291 = vmatprep.subr.bf16.mxu0 %v1063
    %1292 = vmatpush1.bf16.msra.mxu0 %v1062
    %1293 = vmatprep.subr.bf16.mxu0 %v1069
    %1294 = vmatpush1.bf16.msra.mxu0 %v1068
    %1295 = vmatprep.subr.bf16.mxu0 %v1075
    %1296 = vmatpush1.bf16.msra.mxu0 %v1074
    %1297 = vmatprep.subr.bf16.mxu0 %v1081
    %1298 = vmatpush1.bf16.msra.mxu0 %v1080
    %1299 = vmatprep.subr.bf16.mxu0 %v1087
    %1300 = vmatpush1.bf16.msra.mxu0 %v1086
    %1301 = vmatprep.subr.bf16.mxu0 %v1093
    %1302 = vmatpush1.bf16.msra.mxu0 %v1092
    %1303 = vmatprep.subr.bf16.mxu0 %v1099
    %1304 = vmatpush1.bf16.msra.mxu0 %v1098
    %1305 = vmatprep.subr.bf16.mxu0 %v1105
    %1306 = vmatpush1.bf16.msra.mxu0 %v1104
    %1307 = vmatprep.subr.bf16.mxu0 %v1111
    %1308 = vmatpush1.bf16.msra.mxu0 %v1110
    %1309 = vmatprep.subr.bf16.mxu0 %v1117
    %1310 = vmatpush1.bf16.msra.mxu0 %v1116
    %1311 = vmatprep.subr.bf16.mxu0 %v1123
    %1312 = vmatpush1.bf16.msra.mxu0 %v1122
    %1313 = vmatprep.subr.bf16.mxu0 %v1129
    %1314 = vmatpush1.bf16.msra.mxu0 %v1128
    %1315 = vmatprep.subr.bf16.mxu0 %v1135
    %1316 = vmatpush1.bf16.msra.mxu0 %v1134
    %1317 = vmatprep.subr.bf16.mxu0 %v1141
    %1318 = vmatpush1.bf16.msra.mxu0 %v1140
    %1319 = vmatprep.subr.bf16.mxu0 %v1147
    %1320 = vmatpush1.bf16.msra.mxu0 %v1146
    %1321 = vmatprep.mubr.bf16.mxu0 0
    %1322 = vmatmul.mubr.bf16.gmra.mrb[0].mxu0 %v669
    %v1323 = vpop.f32.mrb[0].mxu0
    %v1324 = vadd.f32 0.0, %v1323
    %v1325 = vpop.f32.mrb[0].mxu0
    %v1326 = vadd.f32 0.0, %v1325
    %v1327 = vpop.f32.mrb[0].mxu0
    %v1328 = vadd.f32 0.0, %v1327
    %v1329 = vpop.f32.mrb[0].mxu0
    %v1330 = vadd.f32 0.0, %v1329
    %1331 = vdwg.mxu0
    %1332 = vmatprep.subr.bf16.mxu0 %v1059
    %1333 = vmatpush1.bf16.msra.mxu0 %v1058
    %1334 = vmatprep.subr.bf16.mxu0 %v1065
    %1335 = vmatpush1.bf16.msra.mxu0 %v1064
    %1336 = vmatprep.subr.bf16.mxu0 %v1071
    %1337 = vmatpush1.bf16.msra.mxu0 %v1070
    %1338 = vmatprep.subr.bf16.mxu0 %v1077
    %1339 = vmatpush1.bf16.msra.mxu0 %v1076
    %1340 = vmatprep.subr.bf16.mxu0 %v1083
    %1341 = vmatpush1.bf16.msra.mxu0 %v1082
    %1342 = vmatprep.subr.bf16.mxu0 %v1089
    %1343 = vmatpush1.bf16.msra.mxu0 %v1088
    %1344 = vmatprep.subr.bf16.mxu0 %v1095
    %1345 = vmatpush1.bf16.msra.mxu0 %v1094
    %1346 = vmatprep.subr.bf16.mxu0 %v1101
    %1347 = vmatpush1.bf16.msra.mxu0 %v1100
    %1348 = vmatprep.subr.bf16.mxu0 %v1107
    %1349 = vmatpush1.bf16.msra.mxu0 %v1106
    %1350 = vmatprep.subr.bf16.mxu0 %v1113
    %1351 = vmatpush1.bf16.msra.mxu0 %v1112
    %1352 = vmatprep.subr.bf16.mxu0 %v1119
    %1353 = vmatpush1.bf16.msra.mxu0 %v1118
    %1354 = vmatprep.subr.bf16.mxu0 %v1125
    %1355 = vmatpush1.bf16.msra.mxu0 %v1124
    %1356 = vmatprep.subr.bf16.mxu0 %v1131
    %1357 = vmatpush1.bf16.msra.mxu0 %v1130
    %1358 = vmatprep.subr.bf16.mxu0 %v1137
    %1359 = vmatpush1.bf16.msra.mxu0 %v1136
    %1360 = vmatprep.subr.bf16.mxu0 %v1143
    %1361 = vmatpush1.bf16.msra.mxu0 %v1142
    %1362 = vmatprep.subr.bf16.mxu0 %v1149
    %1363 = vmatpush1.bf16.msra.mxu0 %v1148
    %1364 = vmatprep.mubr.bf16.mxu0 0
    %1365 = vmatmul.mubr.bf16.gmra.mrb[0].mxu0 %v669
    %v1366 = vpop.f32.mrb[0].mxu0
    %v1367 = vadd.f32 0.0, %v1366
    %v1368 = vpop.f32.mrb[0].mxu0
    %v1369 = vadd.f32 0.0, %v1368
    %v1370 = vpop.f32.mrb[0].mxu0
    %v1371 = vadd.f32 0.0, %v1370
    %v1372 = vpop.f32.mrb[0].mxu0
    %v1373 = vadd.f32 0.0, %v1372
    %1374 = vdwg.mxu0
    %v1375 = vadd.f32 %v538, %v1281
    %v1376 = vadd.f32 %v540, %v1283
    %v1377 = vadd.f32 %v581, %v1324
    %v1378 = vadd.f32 %v583, %v1326
    %v1379 = vadd.f32 %v624, %v1367
    %v1380 = vadd.f32 %v626, %v1369
    %v1381 = vadd.f32 %v542, %v1285
    %v1382 = vadd.f32 %v544, %v1287
    %v1383 = vadd.f32 %v585, %v1328
    %v1384 = vadd.f32 %v587, %v1330
    %v1385 = vadd.f32 %v628, %v1371
    %v1386 = vadd.f32 %v630, %v1373
    %v1387 = vmax.f32 %v1375, %v1376
    %v1388 = vmax.f32 %v1381, %v1382
    %v1389 = vmax.f32 %v1387, %v1377
    %v1390 = vmax.f32 %v1388, %v1383
    %v1391 = vsub.f32 %v1375, %v1389
    %v1392 = vsub.f32 %v1381, %v1390
    %v1393 = vmul.f32 %v1391, 1.442695
    %v1394 = vpow.pop %v1393
    %v1395 = vmul.f32 %v1392, 1.442695
    %v1396 = vpow.pop %v1395
    %v1397 = vsub.f32 %v1376, %v1389
    %v1398 = vsub.f32 %v1382, %v1390
    %v1399 = vmul.f32 %v1397, 1.442695
    %v1400 = vpow.pop %v1399
    %v1401 = vmul.f32 %v1398, 1.442695
    %v1402 = vpow.pop %v1401
    %v1403 = vsub.f32 %v1377, %v1389
    %v1404 = vsub.f32 %v1383, %v1390
    %v1405 = vmul.f32 %v1403, 1.442695
    %v1406 = vpow.pop %v1405
    %v1407 = vmul.f32 %v1404, 1.442695
    %v1408 = vpow.pop %v1407
    %v1409 = vadd.f32 %v1394, %v1400
    %v1410 = vadd.f32 %v1396, %v1402
    %v1411 = vadd.f32 %v1409, %v1406
    %v1412 = vadd.f32 %v1410, %v1408
    %v1413 = vrcp.pop %v1411
    %v1414 = vrcp.pop %v1412
    %v1415 = vmul.f32 %v1394, %v1413
    %v1416 = vmul.f32 %v1396, %v1414
    %v1417 = vmul.f32 %v1400, %v1413
    %v1418 = vmul.f32 %v1402, %v1414
    %v1419 = vmul.f32 %v1406, %v1413
    %v1420 = vmul.f32 %v1408, %v1414
    %v1421 = vxor.u32 %v1378, 2147483648
    %v1422 = vxor.u32 %v1384, 2147483648
    %v1423 = vmul.f32 %v1421, 1.442695
    %v1424 = vpow.pop %v1423
    %v1425 = vmul.f32 %v1422, 1.442695
    %v1426 = vpow.pop %v1425
    %v1427 = vadd.f32 %v1424, 1.0
    %v1428 = vadd.f32 %v1426, 1.0
    %v1429 = vrcp.pop %v1427
    %v1430 = vmul.f32 1.0, %v1429
    %v1431 = vrcp.pop %v1428
    %v1432 = vmul.f32 1.0, %v1431
    %v1433 = vtanh.pop %v1379
    %v1434 = vtanh.pop %v1385
    %v1435 = vxor.u32 %v1380, 2147483648
    %v1436 = vxor.u32 %v1386, 2147483648
    %v1437 = vmul.f32 %v1435, 1.442695
    %v1438 = vpow.pop %v1437
    %v1439 = vmul.f32 %v1436, 1.442695
    %v1440 = vpow.pop %v1439
    %v1441 = vadd.f32 %v1438, 1.0
    %v1442 = vadd.f32 %v1440, 1.0
    %v1443 = vrcp.pop %v1441
    %v1444 = vmul.f32 1.0, %v1443
    %v1445 = vrcp.pop %v1442
    %v1446 = vmul.f32 1.0, %v1445
    %v1447 = vmul.f32 %v1417, 0.0
    %v1448 = vmul.f32 %v1418, 0.0
    %v1449 = vmul.f32 %v1419, 0.0
    %v1450 = vmul.f32 %v1420, 0.0
    %v1451 = vadd.f32 %v1447, %v1449
    %v1452 = vadd.f32 %v1448, %v1450
    %v1453 = vmul.f32 %v1415, %v1433
    %v1454 = vmul.f32 %v1416, %v1434
    %v1455 = vadd.f32 %v1451, %v1453
    %v1456 = vadd.f32 %v1452, %v1454
    %v1457 = vmul.f32 %v1455, %v144
    %v1458 = vmul.f32 %v1456, %v149
    %v1459 = vtanh.pop %v1457
    %v1460 = vtanh.pop %v1458
    %v1461 = vmul.f32 %v1430, %v1459
    %v1462 = vmul.f32 %v1432, %v1460
    %v1463 = vmul.f32 %v1461, %v144
    %v1464 = vmul.f32 %v1462, %v149
    %v1465 = vmul.f32 %v1444, %v1457
    %v1466 = vmul.f32 %v1446, %v1458
    %v1467 = vrot.slane %v1463, 6
    %v1468 = vrot.slane %v1465, 6
    %v1469 = vrot.slane %v1464, 6
    %v1470 = vrot.slane %v1466, 6
    %v1471 = vsel %vm660, %v1467, %v1469
    %v1472 = vsel %vm660, %v1468, %v1470
    %v1473 = vsel %vm660, %v1469, %v1467
    %v1474 = vsel %vm660, %v1470, %v1468
    %v1475 = vadd.f32 %v1463, %v1473
    %v1476 = vadd.f32 %v1465, %v1474
    %v1477 = vadd.f32 %v1464, %v1471
    %v1478 = vadd.f32 %v1466, %v1472
    %v1479 = vrot.slane %v1475, 4
    %v1480 = vrot.slane %v1476, 4
    %v1481 = vrot.slane %v1477, 4
    %v1482 = vrot.slane %v1478, 4
    %v1483 = vsel %vm650, %v1479, %v1481
    %v1484 = vsel %vm650, %v1480, %v1482
    %v1485 = vsel %vm650, %v1481, %v1479
    %v1486 = vsel %vm650, %v1482, %v1480
    %v1487 = vadd.f32 %v1475, %v1485
    %v1488 = vadd.f32 %v1476, %v1486
    %v1489 = vadd.f32 %v1477, %v1483
    %v1490 = vadd.f32 %v1478, %v1484
    %v1491 = vadd.f32 %v1487, %v1489
    %v1492 = vadd.f32 %v1488, %v1490
    %v1493 = vmul.f32 %v1491, %v156
    %v1494 = vmul.f32 %v1492, %v156
    %v1495 = vmul.f32 %v1491, %v161
    %v1496 = vmul.f32 %v1492, %v161
    %v1497 = vpack.c.bf16 %v1495, %v1493
    %v1498 = vld [vmem:[#allocation11] sm:$0xff]
    %v1499 = vld [vmem:[#allocation11 + $0x8] sm:$0xff]
    %v1500 = vld [vmem:[#allocation11 + $0x10] sm:$0xff]
    %v1501 = vld [vmem:[#allocation11 + $0x18] sm:$0xff]
    %v1502 = vld [vmem:[#allocation11 + $0x20] sm:$0xff]
    %v1503 = vld [vmem:[#allocation11 + $0x28] sm:$0xff]
    %v1504 = vld [vmem:[#allocation11 + $0x30] sm:$0xff]
    %v1505 = vld [vmem:[#allocation11 + $0x38] sm:$0xff]
    %v1506 = vld [vmem:[#allocation11 + $0x40] sm:$0xff]
    %v1507 = vld [vmem:[#allocation11 + $0x48] sm:$0xff]
    %v1508 = vld [vmem:[#allocation11 + $0x50] sm:$0xff]
    %v1509 = vld [vmem:[#allocation11 + $0x58] sm:$0xff]
    %v1510 = vld [vmem:[#allocation11 + $0x60] sm:$0xff]
    %v1511 = vld [vmem:[#allocation11 + $0x68] sm:$0xff]
    %v1512 = vld [vmem:[#allocation11 + $0x70] sm:$0xff]
    %v1513 = vld [vmem:[#allocation11 + $0x78] sm:$0xff]
    %v1514 = vld [vmem:[#allocation11 + $0x80] sm:$0xff]
    %v1515 = vld [vmem:[#allocation11 + $0x88] sm:$0xff]
    %v1516 = vld [vmem:[#allocation11 + $0x90] sm:$0xff]
    %v1517 = vld [vmem:[#allocation11 + $0x98] sm:$0xff]
    %v1518 = vld [vmem:[#allocation11 + $0xa0] sm:$0xff]
    %v1519 = vld [vmem:[#allocation11 + $0xa8] sm:$0xff]
    %v1520 = vld [vmem:[#allocation11 + $0xb0] sm:$0xff]
    %v1521 = vld [vmem:[#allocation11 + $0xb8] sm:$0xff]
    %v1522 = vld [vmem:[#allocation11 + $0xc0] sm:$0xff]
    %v1523 = vld [vmem:[#allocation11 + $0xc8] sm:$0xff]
    %v1524 = vld [vmem:[#allocation11 + $0xd0] sm:$0xff]
    %v1525 = vld [vmem:[#allocation11 + $0xd8] sm:$0xff]
    %v1526 = vld [vmem:[#allocation11 + $0xe0] sm:$0xff]
    %v1527 = vld [vmem:[#allocation11 + $0xe8] sm:$0xff]
    %v1528 = vld [vmem:[#allocation11 + $0xf0] sm:$0xff]
    %v1529 = vld [vmem:[#allocation11 + $0xf8] sm:$0xff]
    %v1562 = vunpack.c.l.b16 %v1498
    %v1563 = vunpack.c.h.b16 %v1498
    %v1564 = vunpack.c.l.b16 %v1499
    %v1565 = vunpack.c.h.b16 %v1499
    %v1566 = vunpack.c.l.b16 %v1500
    %v1567 = vunpack.c.h.b16 %v1500
    %v1568 = vunpack.c.l.b16 %v1501
    %v1569 = vunpack.c.h.b16 %v1501
    %v1570 = vunpack.c.l.b16 %v1502
    %v1571 = vunpack.c.h.b16 %v1502
    %v1572 = vunpack.c.l.b16 %v1503
    %v1573 = vunpack.c.h.b16 %v1503
    %v1574 = vunpack.c.l.b16 %v1504
    %v1575 = vunpack.c.h.b16 %v1504
    %v1576 = vunpack.c.l.b16 %v1505
    %v1577 = vunpack.c.h.b16 %v1505
    %v1578 = vunpack.c.l.b16 %v1506
    %v1579 = vunpack.c.h.b16 %v1506
    %v1580 = vunpack.c.l.b16 %v1507
    %v1581 = vunpack.c.h.b16 %v1507
    %v1582 = vunpack.c.l.b16 %v1508
    %v1583 = vunpack.c.h.b16 %v1508
    %v1584 = vunpack.c.l.b16 %v1509
    %v1585 = vunpack.c.h.b16 %v1509
    %v1586 = vunpack.c.l.b16 %v1510
    %v1587 = vunpack.c.h.b16 %v1510
    %v1588 = vunpack.c.l.b16 %v1511
    %v1589 = vunpack.c.h.b16 %v1511
    %v1590 = vunpack.c.l.b16 %v1512
    %v1591 = vunpack.c.h.b16 %v1512
    %v1592 = vunpack.c.l.b16 %v1513
    %v1593 = vunpack.c.h.b16 %v1513
    %v1594 = vunpack.c.l.b16 %v1514
    %v1595 = vunpack.c.h.b16 %v1514
    %v1596 = vunpack.c.l.b16 %v1515
    %v1597 = vunpack.c.h.b16 %v1515
    %v1598 = vunpack.c.l.b16 %v1516
    %v1599 = vunpack.c.h.b16 %v1516
    %v1600 = vunpack.c.l.b16 %v1517
    %v1601 = vunpack.c.h.b16 %v1517
    %v1602 = vunpack.c.l.b16 %v1518
    %v1603 = vunpack.c.h.b16 %v1518
    %v1604 = vunpack.c.l.b16 %v1519
    %v1605 = vunpack.c.h.b16 %v1519
    %v1606 = vunpack.c.l.b16 %v1520
    %v1607 = vunpack.c.h.b16 %v1520
    %v1608 = vunpack.c.l.b16 %v1521
    %v1609 = vunpack.c.h.b16 %v1521
    %v1610 = vunpack.c.l.b16 %v1522
    %v1611 = vunpack.c.h.b16 %v1522
    %v1612 = vunpack.c.l.b16 %v1523
    %v1613 = vunpack.c.h.b16 %v1523
    %v1614 = vunpack.c.l.b16 %v1524
    %v1615 = vunpack.c.h.b16 %v1524
    %v1616 = vunpack.c.l.b16 %v1525
    %v1617 = vunpack.c.h.b16 %v1525
    %v1618 = vunpack.c.l.b16 %v1526
    %v1619 = vunpack.c.h.b16 %v1526
    %v1620 = vunpack.c.l.b16 %v1527
    %v1621 = vunpack.c.h.b16 %v1527
    %v1622 = vunpack.c.l.b16 %v1528
    %v1623 = vunpack.c.h.b16 %v1528
    %v1624 = vunpack.c.l.b16 %v1529
    %v1625 = vunpack.c.h.b16 %v1529
    %v1626 = vpack.c.b16 %v1564, %v1562
    %v1627 = vpack.c.b16 %v1565, %v1563
    %v1628 = vpack.c.b16 %v1568, %v1566
    %v1629 = vpack.c.b16 %v1569, %v1567
    %v1630 = vpack.c.b16 %v1572, %v1570
    %v1631 = vpack.c.b16 %v1573, %v1571
    %v1632 = vpack.c.b16 %v1576, %v1574
    %v1633 = vpack.c.b16 %v1577, %v1575
    %v1634 = vpack.c.b16 %v1580, %v1578
    %v1635 = vpack.c.b16 %v1581, %v1579
    %v1636 = vpack.c.b16 %v1584, %v1582
    %v1637 = vpack.c.b16 %v1585, %v1583
    %v1638 = vpack.c.b16 %v1588, %v1586
    %v1639 = vpack.c.b16 %v1589, %v1587
    %v1640 = vpack.c.b16 %v1592, %v1590
    %v1641 = vpack.c.b16 %v1593, %v1591
    %v1642 = vpack.c.b16 %v1596, %v1594
    %v1643 = vpack.c.b16 %v1597, %v1595
    %v1644 = vpack.c.b16 %v1600, %v1598
    %v1645 = vpack.c.b16 %v1601, %v1599
    %v1646 = vpack.c.b16 %v1604, %v1602
    %v1647 = vpack.c.b16 %v1605, %v1603
    %v1648 = vpack.c.b16 %v1608, %v1606
    %v1649 = vpack.c.b16 %v1609, %v1607
    %v1650 = vpack.c.b16 %v1612, %v1610
    %v1651 = vpack.c.b16 %v1613, %v1611
    %v1652 = vpack.c.b16 %v1616, %v1614
    %v1653 = vpack.c.b16 %v1617, %v1615
    %v1654 = vpack.c.b16 %v1620, %v1618
    %v1655 = vpack.c.b16 %v1621, %v1619
    %v1656 = vpack.c.b16 %v1624, %v1622
    %v1657 = vpack.c.b16 %v1625, %v1623
    %1690 = vmatprep.subr.bf16.mxu0 %v1627
    %1691 = vmatpush1.bf16.msra.mxu0 %v1626
    %1692 = vmatprep.subr.bf16.mxu0 %v1629
    %1693 = vmatpush1.bf16.msra.mxu0 %v1628
    %1694 = vmatprep.subr.bf16.mxu0 %v1631
    %1695 = vmatpush1.bf16.msra.mxu0 %v1630
    %1696 = vmatprep.subr.bf16.mxu0 %v1633
    %1697 = vmatpush1.bf16.msra.mxu0 %v1632
    %1698 = vmatprep.subr.bf16.mxu0 %v1635
    %1699 = vmatpush1.bf16.msra.mxu0 %v1634
    %1700 = vmatprep.subr.bf16.mxu0 %v1637
    %1701 = vmatpush1.bf16.msra.mxu0 %v1636
    %1702 = vmatprep.subr.bf16.mxu0 %v1639
    %1703 = vmatpush1.bf16.msra.mxu0 %v1638
    %1704 = vmatprep.subr.bf16.mxu0 %v1641
    %1705 = vmatpush1.bf16.msra.mxu0 %v1640
    %1706 = vmatprep.subr.bf16.mxu0 %v1643
    %1707 = vmatpush1.bf16.msra.mxu0 %v1642
    %1708 = vmatprep.subr.bf16.mxu0 %v1645
    %1709 = vmatpush1.bf16.msra.mxu0 %v1644
    %1710 = vmatprep.subr.bf16.mxu0 %v1647
    %1711 = vmatpush1.bf16.msra.mxu0 %v1646
    %1712 = vmatprep.subr.bf16.mxu0 %v1649
    %1713 = vmatpush1.bf16.msra.mxu0 %v1648
    %1714 = vmatprep.subr.bf16.mxu0 %v1651
    %1715 = vmatpush1.bf16.msra.mxu0 %v1650
    %1716 = vmatprep.subr.bf16.mxu0 %v1653
    %1717 = vmatpush1.bf16.msra.mxu0 %v1652
    %1718 = vmatprep.subr.bf16.mxu0 %v1655
    %1719 = vmatpush1.bf16.msra.mxu0 %v1654
    %1720 = vmatprep.subr.bf16.mxu0 %v1657
    %1721 = vmatpush1.bf16.msra.mxu0 %v1656
    %1722 = vmatprep.mubr.bf16.mxu0 %v1497
    %1723 = vmatmul.mubr.bf16.gmra.mrb[0].mxu0 0
    %v1724 = vpop.f32.mrb[0].mxu0
    %v1725 = vadd.f32 %v168, %v1724
    %v1726 = vpop.f32.mrb[0].mxu0
    %v1727 = vadd.f32 %v172, %v1726
    %v1728 = vpop.f32.mrb[0].mxu0
    %v1729 = vadd.f32 %v168, %v1728
    %v1730 = vpop.f32.mrb[0].mxu0
    %v1731 = vadd.f32 %v172, %v1730
    %1732 = vdwg.mxu0
    %v1733 = vxor.u32 %v1725, 2147483648
    %v1734 = vxor.u32 %v1729, 2147483648
    %v1735 = vmul.f32 %v1733, 1.442695
    %v1736 = vpow.pop %v1735
    %v1737 = vmul.f32 %v1734, 1.442695
    %v1738 = vpow.pop %v1737
    %v1739 = vadd.f32 %v1736, 1.0
    %v1740 = vadd.f32 %v1738, 1.0
    %v1741 = vrcp.pop %v1739
    %v1742 = vmul.f32 1.0, %v1741
    %v1743 = vrcp.pop %v1740
    %v1744 = vmul.f32 1.0, %v1743
    %v1745 = vxor.u32 %v1727, 2147483648
    %v1746 = vxor.u32 %v1731, 2147483648
    %v1747 = vmul.f32 %v1745, 1.442695
    %v1748 = vpow.pop %v1747
    %v1749 = vmul.f32 %v1746, 1.442695
    %v1750 = vpow.pop %v1749
    %v1751 = vadd.f32 %v1748, 1.0
    %v1752 = vadd.f32 %v1750, 1.0
    %v1753 = vrcp.pop %v1751
    %v1754 = vmul.f32 1.0, %v1753
    %v1755 = vrcp.pop %v1752
    %v1756 = vmul.f32 1.0, %v1755
    %v1757 = vmul.f32 %v1742, 0.0
    %v1758 = vmul.f32 %v1744, 0.0
    %v1759 = vadd.f32 %v1757, %v1494
    %v1760 = vadd.f32 %v1758, %v1496
    %v1761 = vtanh.pop %v1759
    %v1762 = vtanh.pop %v1760
    %v1763 = vmul.f32 %v1754, %v1761
    %v1764 = vmul.f32 %v1756, %v1762
    %v1765 = vpack.c.bf16 %v1764, %v1763
    %v1766 = vmul.f32 %v1463, %v632
    %v1767 = vmul.f32 %v1464, %v633
    %v1768 = vrot.slane %v1463, 4
    %v1769 = vrot.slane %v1464, 4
    %v1770 = vsel %vm650, %v1768, %v1769
    %v1771 = vsel %vm650, %v1769, %v1768
    %v1772 = vmul.f32 %v1770, %v635
    %v1773 = vmul.f32 %v1771, %v636
    %v1774 = vadd.f32 %v1766, %v1772
    %v1775 = vadd.f32 %v1767, %v1773
    %v1776 = vrot.slane %v1463, 2
    %v1777 = vrot.slane %v1464, 2
    %v1778 = vsel %vm655, %v1776, %v1777
    %v1779 = vsel %vm655, %v1777, %v1776
    %v1780 = vmul.f32 %v1778, %v638
    %v1781 = vmul.f32 %v1779, %v639
    %v1782 = vadd.f32 %v1774, %v1780
    %v1783 = vadd.f32 %v1775, %v1781
    %v1784 = vmul.f32 %v1473, %v641
    %v1785 = vmul.f32 %v1471, %v642
    %v1786 = vadd.f32 %v1782, %v1784
    %v1787 = vadd.f32 %v1783, %v1785
    %v1788 = vmul.f32 %v1771, %v644
    %v1789 = vmul.f32 %v1770, %v645
    %v1790 = vadd.f32 %v1786, %v1788
    %v1791 = vadd.f32 %v1787, %v1789
    %v1792 = vpack.c.bf16 %v1791, %v1790
    %1793 = vmatprep.subr.bf16.mxu0 %v1055
    %1794 = vmatpush1.bf16.msra.mxu0 %v1054
    %1795 = vmatprep.subr.bf16.mxu0 %v1061
    %1796 = vmatpush1.bf16.msra.mxu0 %v1060
    %1797 = vmatprep.subr.bf16.mxu0 %v1067
    %1798 = vmatpush1.bf16.msra.mxu0 %v1066
    %1799 = vmatprep.subr.bf16.mxu0 %v1073
    %1800 = vmatpush1.bf16.msra.mxu0 %v1072
    %1801 = vmatprep.subr.bf16.mxu0 %v1079
    %1802 = vmatpush1.bf16.msra.mxu0 %v1078
    %1803 = vmatprep.subr.bf16.mxu0 %v1085
    %1804 = vmatpush1.bf16.msra.mxu0 %v1084
    %1805 = vmatprep.subr.bf16.mxu0 %v1091
    %1806 = vmatpush1.bf16.msra.mxu0 %v1090
    %1807 = vmatprep.subr.bf16.mxu0 %v1097
    %1808 = vmatpush1.bf16.msra.mxu0 %v1096
    %1809 = vmatprep.subr.bf16.mxu0 %v1103
    %1810 = vmatpush1.bf16.msra.mxu0 %v1102
    %1811 = vmatprep.subr.bf16.mxu0 %v1109
    %1812 = vmatpush1.bf16.msra.mxu0 %v1108
    %1813 = vmatprep.subr.bf16.mxu0 %v1115
    %1814 = vmatpush1.bf16.msra.mxu0 %v1114
    %1815 = vmatprep.subr.bf16.mxu0 %v1121
    %1816 = vmatpush1.bf16.msra.mxu0 %v1120
    %1817 = vmatprep.subr.bf16.mxu0 %v1127
    %1818 = vmatpush1.bf16.msra.mxu0 %v1126
    %1819 = vmatprep.subr.bf16.mxu0 %v1133
    %1820 = vmatpush1.bf16.msra.mxu0 %v1132
    %1821 = vmatprep.subr.bf16.mxu0 %v1139
    %1822 = vmatpush1.bf16.msra.mxu0 %v1138
    %1823 = vmatprep.subr.bf16.mxu0 %v1145
    %1824 = vmatpush1.bf16.msra.mxu0 %v1144
    %1825 = vmatprep.mubr.bf16.mxu0 %v1765
    %1826 = vmatmul.mubr.bf16.gmra.mrb[0].mxu0 %v1792
    %v1827 = vpop.f32.mrb[0].mxu0
    %v1828 = vadd.f32 0.0, %v1827
    %v1829 = vpop.f32.mrb[0].mxu0
    %v1830 = vadd.f32 0.0, %v1829
    %v1831 = vpop.f32.mrb[0].mxu0
    %v1832 = vadd.f32 0.0, %v1831
    %v1833 = vpop.f32.mrb[0].mxu0
    %v1834 = vadd.f32 0.0, %v1833
    %1835 = vdwg.mxu0
    %1836 = vmatprep.subr.bf16.mxu0 %v1057
    %1837 = vmatpush1.bf16.msra.mxu0 %v1056
    %1838 = vmatprep.subr.bf16.mxu0 %v1063
    %1839 = vmatpush1.bf16.msra.mxu0 %v1062
    %1840 = vmatprep.subr.bf16.mxu0 %v1069
    %1841 = vmatpush1.bf16.msra.mxu0 %v1068
    %1842 = vmatprep.subr.bf16.mxu0 %v1075
    %1843 = vmatpush1.bf16.msra.mxu0 %v1074
    %1844 = vmatprep.subr.bf16.mxu0 %v1081
    %1845 = vmatpush1.bf16.msra.mxu0 %v1080
    %1846 = vmatprep.subr.bf16.mxu0 %v1087
    %1847 = vmatpush1.bf16.msra.mxu0 %v1086
    %1848 = vmatprep.subr.bf16.mxu0 %v1093
    %1849 = vmatpush1.bf16.msra.mxu0 %v1092
    %1850 = vmatprep.subr.bf16.mxu0 %v1099
    %1851 = vmatpush1.bf16.msra.mxu0 %v1098
    %1852 = vmatprep.subr.bf16.mxu0 %v1105
    %1853 = vmatpush1.bf16.msra.mxu0 %v1104
    %1854 = vmatprep.subr.bf16.mxu0 %v1111
    %1855 = vmatpush1.bf16.msra.mxu0 %v1110
    %1856 = vmatprep.subr.bf16.mxu0 %v1117
    %1857 = vmatpush1.bf16.msra.mxu0 %v1116
    %1858 = vmatprep.subr.bf16.mxu0 %v1123
    %1859 = vmatpush1.bf16.msra.mxu0 %v1122
    %1860 = vmatprep.subr.bf16.mxu0 %v1129
    %1861 = vmatpush1.bf16.msra.mxu0 %v1128
    %1862 = vmatprep.subr.bf16.mxu0 %v1135
    %1863 = vmatpush1.bf16.msra.mxu0 %v1134
    %1864 = vmatprep.subr.bf16.mxu0 %v1141
    %1865 = vmatpush1.bf16.msra.mxu0 %v1140
    %1866 = vmatprep.subr.bf16.mxu0 %v1147
    %1867 = vmatpush1.bf16.msra.mxu0 %v1146
    %1868 = vmatprep.mubr.bf16.mxu0 %v1765
    %1869 = vmatmul.mubr.bf16.gmra.mrb[0].mxu0 %v1792
    %v1870 = vpop.f32.mrb[0].mxu0
    %v1871 = vadd.f32 0.0, %v1870
    %v1872 = vpop.f32.mrb[0].mxu0
    %v1873 = vadd.f32 0.0, %v1872
    %v1874 = vpop.f32.mrb[0].mxu0
    %v1875 = vadd.f32 0.0, %v1874
    %v1876 = vpop.f32.mrb[0].mxu0
    %v1877 = vadd.f32 0.0, %v1876
    %1878 = vdwg.mxu0
    %1879 = vmatprep.subr.bf16.mxu0 %v1059
    %1880 = vmatpush1.bf16.msra.mxu0 %v1058
    %1881 = vmatprep.subr.bf16.mxu0 %v1065
    %1882 = vmatpush1.bf16.msra.mxu0 %v1064
    %1883 = vmatprep.subr.bf16.mxu0 %v1071
    %1884 = vmatpush1.bf16.msra.mxu0 %v1070
    %1885 = vmatprep.subr.bf16.mxu0 %v1077
    %1886 = vmatpush1.bf16.msra.mxu0 %v1076
    %1887 = vmatprep.subr.bf16.mxu0 %v1083
    %1888 = vmatpush1.bf16.msra.mxu0 %v1082
    %1889 = vmatprep.subr.bf16.mxu0 %v1089
    %1890 = vmatpush1.bf16.msra.mxu0 %v1088
    %1891 = vmatprep.subr.bf16.mxu0 %v1095
    %1892 = vmatpush1.bf16.msra.mxu0 %v1094
    %1893 = vmatprep.subr.bf16.mxu0 %v1101
    %1894 = vmatpush1.bf16.msra.mxu0 %v1100
    %1895 = vmatprep.subr.bf16.mxu0 %v1107
    %1896 = vmatpush1.bf16.msra.mxu0 %v1106
    %1897 = vmatprep.subr.bf16.mxu0 %v1113
    %1898 = vmatpush1.bf16.msra.mxu0 %v1112
    %1899 = vmatprep.subr.bf16.mxu0 %v1119
    %1900 = vmatpush1.bf16.msra.mxu0 %v1118
    %1901 = vmatprep.subr.bf16.mxu0 %v1125
    %1902 = vmatpush1.bf16.msra.mxu0 %v1124
    %1903 = vmatprep.subr.bf16.mxu0 %v1131
    %1904 = vmatpush1.bf16.msra.mxu0 %v1130
    %1905 = vmatprep.subr.bf16.mxu0 %v1137
    %1906 = vmatpush1.bf16.msra.mxu0 %v1136
    %1907 = vmatprep.subr.bf16.mxu0 %v1143
    %1908 = vmatpush1.bf16.msra.mxu0 %v1142
    %1909 = vmatprep.subr.bf16.mxu0 %v1149
    %1910 = vmatpush1.bf16.msra.mxu0 %v1148
    %1911 = vmatprep.mubr.bf16.mxu0 %v1765
    %1912 = vmatmul.mubr.bf16.gmra.mrb[0].mxu0 %v1792
    %v1913 = vpop.f32.mrb[0].mxu0
    %v1914 = vadd.f32 0.0, %v1913
    %v1915 = vpop.f32.mrb[0].mxu0
    %v1916 = vadd.f32 0.0, %v1915
    %v1917 = vpop.f32.mrb[0].mxu0
    %v1918 = vadd.f32 0.0, %v1917
    %v1919 = vpop.f32.mrb[0].mxu0
    %v1920 = vadd.f32 0.0, %v1919
    %1921 = vdwg.mxu0
    %v1922 = vadd.f32 %v538, %v1828
    %v1923 = vadd.f32 %v540, %v1830
    %v1924 = vadd.f32 %v581, %v1871
    %v1925 = vadd.f32 %v583, %v1873
    %v1926 = vadd.f32 %v624, %v1914
    %v1927 = vadd.f32 %v626, %v1916
    %v1928 = vadd.f32 %v542, %v1832
    %v1929 = vadd.f32 %v544, %v1834
    %v1930 = vadd.f32 %v585, %v1875
    %v1931 = vadd.f32 %v587, %v1877
    %v1932 = vadd.f32 %v628, %v1918
    %v1933 = vadd.f32 %v630, %v1920
    %v1934 = vmax.f32 %v1922, %v1923
    %v1935 = vmax.f32 %v1928, %v1929
    %v1936 = vmax.f32 %v1934, %v1924
    %v1937 = vmax.f32 %v1935, %v1930
    %v1938 = vsub.f32 %v1922, %v1936
    %v1939 = vsub.f32 %v1928, %v1937
    %v1940 = vmul.f32 %v1938, 1.442695
    %v1941 = vpow.pop %v1940
    %v1942 = vmul.f32 %v1939, 1.442695
    %v1943 = vpow.pop %v1942
    %v1944 = vsub.f32 %v1923, %v1936
    %v1945 = vsub.f32 %v1929, %v1937
    %v1946 = vmul.f32 %v1944, 1.442695
    %v1947 = vpow.pop %v1946
    %v1948 = vmul.f32 %v1945, 1.442695
    %v1949 = vpow.pop %v1948
    %v1950 = vsub.f32 %v1924, %v1936
    %v1951 = vsub.f32 %v1930, %v1937
    %v1952 = vmul.f32 %v1950, 1.442695
    %v1953 = vpow.pop %v1952
    %v1954 = vmul.f32 %v1951, 1.442695
    %v1955 = vpow.pop %v1954
    %v1956 = vadd.f32 %v1941, %v1947
    %v1957 = vadd.f32 %v1943, %v1949
    %v1958 = vadd.f32 %v1956, %v1953
    %v1959 = vadd.f32 %v1957, %v1955
    %v1960 = vrcp.pop %v1958
    %v1961 = vrcp.pop %v1959
    %v1962 = vmul.f32 %v1941, %v1960
    %v1963 = vmul.f32 %v1943, %v1961
    %v1964 = vmul.f32 %v1947, %v1960
    %v1965 = vmul.f32 %v1949, %v1961
    %v1966 = vmul.f32 %v1953, %v1960
    %v1967 = vmul.f32 %v1955, %v1961
    %v1968 = vxor.u32 %v1925, 2147483648
    %v1969 = vxor.u32 %v1931, 2147483648
    %v1970 = vmul.f32 %v1968, 1.442695
    %v1971 = vpow.pop %v1970
    %v1972 = vmul.f32 %v1969, 1.442695
    %v1973 = vpow.pop %v1972
    %v1974 = vadd.f32 %v1971, 1.0
    %v1975 = vadd.f32 %v1973, 1.0
    %v1976 = vrcp.pop %v1974
    %v1977 = vmul.f32 1.0, %v1976
    %v1978 = vrcp.pop %v1975
    %v1979 = vmul.f32 1.0, %v1978
    %v1980 = vtanh.pop %v1926
    %v1981 = vtanh.pop %v1932
    %v1982 = vxor.u32 %v1927, 2147483648
    %v1983 = vxor.u32 %v1933, 2147483648
    %v1984 = vmul.f32 %v1982, 1.442695
    %v1985 = vpow.pop %v1984
    %v1986 = vmul.f32 %v1983, 1.442695
    %v1987 = vpow.pop %v1986
    %v1988 = vadd.f32 %v1985, 1.0
    %v1989 = vadd.f32 %v1987, 1.0
    %v1990 = vrcp.pop %v1988
    %v1991 = vmul.f32 1.0, %v1990
    %v1992 = vrcp.pop %v1989
    %v1993 = vmul.f32 1.0, %v1992
    %v1994 = vmul.f32 %v1964, %v1457
    %v1995 = vmul.f32 %v1965, %v1458
    %v1996 = vmul.f32 %v1966, %v1759
    %v1997 = vmul.f32 %v1967, %v1760
    %v1998 = vadd.f32 %v1994, %v1996
    %v1999 = vadd.f32 %v1995, %v1997
    %v2000 = vmul.f32 %v1962, %v1980
    %v2001 = vmul.f32 %v1963, %v1981
    %v2002 = vadd.f32 %v1998, %v2000
    %v2003 = vadd.f32 %v1999, %v2001
    %v2004 = vmul.f32 %v2002, %v144
    %v2005 = vmul.f32 %v2003, %v149
    %v2006 = vtanh.pop %v2004
    %v2007 = vtanh.pop %v2005
    %v2008 = vmul.f32 %v1977, %v2006
    %v2009 = vmul.f32 %v1979, %v2007
    %v2010 = vmul.f32 %v2008, %v144
    %v2011 = vmul.f32 %v2009, %v149
    %v2012 = vmul.f32 %v1991, %v2004
    %v2013 = vmul.f32 %v1993, %v2005
    %v2014 = vrot.slane %v2010, 6
    %v2015 = vrot.slane %v2012, 6
    %v2016 = vrot.slane %v2011, 6
    %v2017 = vrot.slane %v2013, 6
    %v2018 = vsel %vm660, %v2014, %v2016
    %v2019 = vsel %vm660, %v2015, %v2017
    %v2020 = vsel %vm660, %v2016, %v2014
    %v2021 = vsel %vm660, %v2017, %v2015
    %v2022 = vadd.f32 %v2010, %v2020
    %v2023 = vadd.f32 %v2012, %v2021
    %v2024 = vadd.f32 %v2011, %v2018
    %v2025 = vadd.f32 %v2013, %v2019
    %v2026 = vrot.slane %v2022, 4
    %v2027 = vrot.slane %v2023, 4
    %v2028 = vrot.slane %v2024, 4
    %v2029 = vrot.slane %v2025, 4
    %v2030 = vsel %vm650, %v2026, %v2028
    %v2031 = vsel %vm650, %v2027, %v2029
    %v2032 = vsel %vm650, %v2028, %v2026
    %v2033 = vsel %vm650, %v2029, %v2027
    %v2034 = vadd.f32 %v2022, %v2032
    %v2035 = vadd.f32 %v2023, %v2033
    %v2036 = vadd.f32 %v2024, %v2030
    %v2037 = vadd.f32 %v2025, %v2031
    %v2038 = vadd.f32 %v2034, %v2036
    %v2039 = vadd.f32 %v2035, %v2037
    %v2040 = vmul.f32 %v2038, %v156
    %v2041 = vmul.f32 %v2039, %v156
    %v2042 = vmul.f32 %v2038, %v161
    %v2043 = vmul.f32 %v2039, %v161
    %v2044 = vpack.c.bf16 %v2042, %v2040
    %2045 = vmatprep.subr.bf16.mxu0 %v1627
    %2046 = vmatpush1.bf16.msra.mxu0 %v1626
    %2047 = vmatprep.subr.bf16.mxu0 %v1629
    %2048 = vmatpush1.bf16.msra.mxu0 %v1628
    %2049 = vmatprep.subr.bf16.mxu0 %v1631
    %2050 = vmatpush1.bf16.msra.mxu0 %v1630
    %2051 = vmatprep.subr.bf16.mxu0 %v1633
    %2052 = vmatpush1.bf16.msra.mxu0 %v1632
    %2053 = vmatprep.subr.bf16.mxu0 %v1635
    %2054 = vmatpush1.bf16.msra.mxu0 %v1634
    %2055 = vmatprep.subr.bf16.mxu0 %v1637
    %2056 = vmatpush1.bf16.msra.mxu0 %v1636
    %2057 = vmatprep.subr.bf16.mxu0 %v1639
    %2058 = vmatpush1.bf16.msra.mxu0 %v1638
    %2059 = vmatprep.subr.bf16.mxu0 %v1641
    %2060 = vmatpush1.bf16.msra.mxu0 %v1640
    %2061 = vmatprep.subr.bf16.mxu0 %v1643
    %2062 = vmatpush1.bf16.msra.mxu0 %v1642
    %2063 = vmatprep.subr.bf16.mxu0 %v1645
    %2064 = vmatpush1.bf16.msra.mxu0 %v1644
    %2065 = vmatprep.subr.bf16.mxu0 %v1647
    %2066 = vmatpush1.bf16.msra.mxu0 %v1646
    %2067 = vmatprep.subr.bf16.mxu0 %v1649
    %2068 = vmatpush1.bf16.msra.mxu0 %v1648
    %2069 = vmatprep.subr.bf16.mxu0 %v1651
    %2070 = vmatpush1.bf16.msra.mxu0 %v1650
    %2071 = vmatprep.subr.bf16.mxu0 %v1653
    %2072 = vmatpush1.bf16.msra.mxu0 %v1652
    %2073 = vmatprep.subr.bf16.mxu0 %v1655
    %2074 = vmatpush1.bf16.msra.mxu0 %v1654
    %2075 = vmatprep.subr.bf16.mxu0 %v1657
    %2076 = vmatpush1.bf16.msra.mxu0 %v1656
    %2077 = vmatprep.mubr.bf16.mxu0 %v2044
    %2078 = vmatmul.mubr.bf16.gmra.mrb[0].mxu0 %v1765
    %v2079 = vpop.f32.mrb[0].mxu0
    %v2080 = vadd.f32 %v168, %v2079
    %v2081 = vpop.f32.mrb[0].mxu0
    %v2082 = vadd.f32 %v172, %v2081
    %v2083 = vpop.f32.mrb[0].mxu0
    %v2084 = vadd.f32 %v168, %v2083
    %v2085 = vpop.f32.mrb[0].mxu0
    %v2086 = vadd.f32 %v172, %v2085
    %2087 = vdwg.mxu0
    %v2088 = vxor.u32 %v2080, 2147483648
    %v2089 = vxor.u32 %v2084, 2147483648
    %v2090 = vmul.f32 %v2088, 1.442695
    %v2091 = vpow.pop %v2090
    %v2092 = vmul.f32 %v2089, 1.442695
    %v2093 = vpow.pop %v2092
    %v2094 = vadd.f32 %v2091, 1.0
    %v2095 = vadd.f32 %v2093, 1.0
    %v2096 = vrcp.pop %v2094
    %v2097 = vmul.f32 1.0, %v2096
    %v2098 = vrcp.pop %v2095
    %v2099 = vmul.f32 1.0, %v2098
    %v2100 = vxor.u32 %v2082, 2147483648
    %v2101 = vxor.u32 %v2086, 2147483648
    %v2102 = vmul.f32 %v2100, 1.442695
    %v2103 = vpow.pop %v2102
    %v2104 = vmul.f32 %v2101, 1.442695
    %v2105 = vpow.pop %v2104
    %v2106 = vadd.f32 %v2103, 1.0
    %v2107 = vadd.f32 %v2105, 1.0
    %v2108 = vrcp.pop %v2106
    %v2109 = vmul.f32 1.0, %v2108
    %v2110 = vrcp.pop %v2107
    %v2111 = vmul.f32 1.0, %v2110
    %v2112 = vmul.f32 %v2097, %v1759
    %v2113 = vmul.f32 %v2099, %v1760
    %v2114 = vadd.f32 %v2112, %v2041
    %v2115 = vadd.f32 %v2113, %v2043
    %v2116 = vtanh.pop %v2114
    %v2117 = vtanh.pop %v2115
    %v2118 = vmul.f32 %v2109, %v2116
    %v2119 = vmul.f32 %v2111, %v2117
    %v2120 = vpack.c.bf16 %v2119, %v2118
    %v2121 = vmul.f32 %v2010, %v632
    %v2122 = vmul.f32 %v2011, %v633
    %v2123 = vrot.slane %v2010, 4
    %v2124 = vrot.slane %v2011, 4
    %v2125 = vsel %vm650, %v2123, %v2124
    %v2126 = vsel %vm650, %v2124, %v2123
    %v2127 = vmul.f32 %v2125, %v635
    %v2128 = vmul.f32 %v2126, %v636
    %v2129 = vadd.f32 %v2121, %v2127
    %v2130 = vadd.f32 %v2122, %v2128
    %v2131 = vrot.slane %v2010, 2
    %v2132 = vrot.slane %v2011, 2
    %v2133 = vsel %vm655, %v2131, %v2132
    %v2134 = vsel %vm655, %v2132, %v2131
    %v2135 = vmul.f32 %v2133, %v638
    %v2136 = vmul.f32 %v2134, %v639
    %v2137 = vadd.f32 %v2129, %v2135
    %v2138 = vadd.f32 %v2130, %v2136
    %v2139 = vmul.f32 %v2020, %v641
    %v2140 = vmul.f32 %v2018, %v642
    %v2141 = vadd.f32 %v2137, %v2139
    %v2142 = vadd.f32 %v2138, %v2140
    %v2143 = vmul.f32 %v2126, %v644
    %v2144 = vmul.f32 %v2125, %v645
    %v2145 = vadd.f32 %v2141, %v2143
    %v2146 = vadd.f32 %v2142, %v2144
    %v2147 = vpack.c.bf16 %v2146, %v2145
    %2148 = vmatprep.subr.bf16.mxu0 %v1055
    %2149 = vmatpush1.bf16.msra.mxu0 %v1054
    %2150 = vmatprep.subr.bf16.mxu0 %v1061
    %2151 = vmatpush1.bf16.msra.mxu0 %v1060
    %2152 = vmatprep.subr.bf16.mxu0 %v1067
    %2153 = vmatpush1.bf16.msra.mxu0 %v1066
    %2154 = vmatprep.subr.bf16.mxu0 %v1073
    %2155 = vmatpush1.bf16.msra.mxu0 %v1072
    %2156 = vmatprep.subr.bf16.mxu0 %v1079
    %2157 = vmatpush1.bf16.msra.mxu0 %v1078
    %2158 = vmatprep.subr.bf16.mxu0 %v1085
    %2159 = vmatpush1.bf16.msra.mxu0 %v1084
    %2160 = vmatprep.subr.bf16.mxu0 %v1091
    %2161 = vmatpush1.bf16.msra.mxu0 %v1090
    %2162 = vmatprep.subr.bf16.mxu0 %v1097
    %2163 = vmatpush1.bf16.msra.mxu0 %v1096
    %2164 = vmatprep.subr.bf16.mxu0 %v1103
    %2165 = vmatpush1.bf16.msra.mxu0 %v1102
    %2166 = vmatprep.subr.bf16.mxu0 %v1109
    %2167 = vmatpush1.bf16.msra.mxu0 %v1108
    %2168 = vmatprep.subr.bf16.mxu0 %v1115
    %2169 = vmatpush1.bf16.msra.mxu0 %v1114
    %2170 = vmatprep.subr.bf16.mxu0 %v1121
    %2171 = vmatpush1.bf16.msra.mxu0 %v1120
    %2172 = vmatprep.subr.bf16.mxu0 %v1127
    %2173 = vmatpush1.bf16.msra.mxu0 %v1126
    %2174 = vmatprep.subr.bf16.mxu0 %v1133
    %2175 = vmatpush1.bf16.msra.mxu0 %v1132
    %2176 = vmatprep.subr.bf16.mxu0 %v1139
    %2177 = vmatpush1.bf16.msra.mxu0 %v1138
    %2178 = vmatprep.subr.bf16.mxu0 %v1145
    %2179 = vmatpush1.bf16.msra.mxu0 %v1144
    %2180 = vmatprep.mubr.bf16.mxu0 %v2120
    %2181 = vmatmul.mubr.bf16.gmra.mrb[0].mxu0 %v2147
    %v2182 = vpop.f32.mrb[0].mxu0
    %v2183 = vadd.f32 0.0, %v2182
    %v2184 = vpop.f32.mrb[0].mxu0
    %v2185 = vadd.f32 0.0, %v2184
    %v2186 = vpop.f32.mrb[0].mxu0
    %v2187 = vadd.f32 0.0, %v2186
    %v2188 = vpop.f32.mrb[0].mxu0
    %v2189 = vadd.f32 0.0, %v2188
    %2190 = vdwg.mxu0
    %2191 = vmatprep.subr.bf16.mxu0 %v1057
    %2192 = vmatpush1.bf16.msra.mxu0 %v1056
    %2193 = vmatprep.subr.bf16.mxu0 %v1063
    %2194 = vmatpush1.bf16.msra.mxu0 %v1062
    %2195 = vmatprep.subr.bf16.mxu0 %v1069
    %2196 = vmatpush1.bf16.msra.mxu0 %v1068
    %2197 = vmatprep.subr.bf16.mxu0 %v1075
    %2198 = vmatpush1.bf16.msra.mxu0 %v1074
    %2199 = vmatprep.subr.bf16.mxu0 %v1081
    %2200 = vmatpush1.bf16.msra.mxu0 %v1080
    %2201 = vmatprep.subr.bf16.mxu0 %v1087
    %2202 = vmatpush1.bf16.msra.mxu0 %v1086
    %2203 = vmatprep.subr.bf16.mxu0 %v1093
    %2204 = vmatpush1.bf16.msra.mxu0 %v1092
    %2205 = vmatprep.subr.bf16.mxu0 %v1099
    %2206 = vmatpush1.bf16.msra.mxu0 %v1098
    %2207 = vmatprep.subr.bf16.mxu0 %v1105
    %2208 = vmatpush1.bf16.msra.mxu0 %v1104
    %2209 = vmatprep.subr.bf16.mxu0 %v1111
    %2210 = vmatpush1.bf16.msra.mxu0 %v1110
    %2211 = vmatprep.subr.bf16.mxu0 %v1117
    %2212 = vmatpush1.bf16.msra.mxu0 %v1116
    %2213 = vmatprep.subr.bf16.mxu0 %v1123
    %2214 = vmatpush1.bf16.msra.mxu0 %v1122
    %2215 = vmatprep.subr.bf16.mxu0 %v1129
    %2216 = vmatpush1.bf16.msra.mxu0 %v1128
    %2217 = vmatprep.subr.bf16.mxu0 %v1135
    %2218 = vmatpush1.bf16.msra.mxu0 %v1134
    %2219 = vmatprep.subr.bf16.mxu0 %v1141
    %2220 = vmatpush1.bf16.msra.mxu0 %v1140
    %2221 = vmatprep.subr.bf16.mxu0 %v1147
    %2222 = vmatpush1.bf16.msra.mxu0 %v1146
    %2223 = vmatprep.mubr.bf16.mxu0 %v2120
    %2224 = vmatmul.mubr.bf16.gmra.mrb[0].mxu0 %v2147
    %v2225 = vpop.f32.mrb[0].mxu0
    %v2226 = vadd.f32 0.0, %v2225
    %v2227 = vpop.f32.mrb[0].mxu0
    %v2228 = vadd.f32 0.0, %v2227
    %v2229 = vpop.f32.mrb[0].mxu0
    %v2230 = vadd.f32 0.0, %v2229
    %v2231 = vpop.f32.mrb[0].mxu0
    %v2232 = vadd.f32 0.0, %v2231
    %2233 = vdwg.mxu0
    %2234 = vmatprep.subr.bf16.mxu0 %v1059
    %2235 = vmatpush1.bf16.msra.mxu0 %v1058
    %2236 = vmatprep.subr.bf16.mxu0 %v1065
    %2237 = vmatpush1.bf16.msra.mxu0 %v1064
    %2238 = vmatprep.subr.bf16.mxu0 %v1071
    %2239 = vmatpush1.bf16.msra.mxu0 %v1070
    %2240 = vmatprep.subr.bf16.mxu0 %v1077
    %2241 = vmatpush1.bf16.msra.mxu0 %v1076
    %2242 = vmatprep.subr.bf16.mxu0 %v1083
    %2243 = vmatpush1.bf16.msra.mxu0 %v1082
    %2244 = vmatprep.subr.bf16.mxu0 %v1089
    %2245 = vmatpush1.bf16.msra.mxu0 %v1088
    %2246 = vmatprep.subr.bf16.mxu0 %v1095
    %2247 = vmatpush1.bf16.msra.mxu0 %v1094
    %2248 = vmatprep.subr.bf16.mxu0 %v1101
    %2249 = vmatpush1.bf16.msra.mxu0 %v1100
    %2250 = vmatprep.subr.bf16.mxu0 %v1107
    %2251 = vmatpush1.bf16.msra.mxu0 %v1106
    %2252 = vmatprep.subr.bf16.mxu0 %v1113
    %2253 = vmatpush1.bf16.msra.mxu0 %v1112
    %2254 = vmatprep.subr.bf16.mxu0 %v1119
    %2255 = vmatpush1.bf16.msra.mxu0 %v1118
    %2256 = vmatprep.subr.bf16.mxu0 %v1125
    %2257 = vmatpush1.bf16.msra.mxu0 %v1124
    %2258 = vmatprep.subr.bf16.mxu0 %v1131
    %2259 = vmatpush1.bf16.msra.mxu0 %v1130
    %2260 = vmatprep.subr.bf16.mxu0 %v1137
    %2261 = vmatpush1.bf16.msra.mxu0 %v1136
    %2262 = vmatprep.subr.bf16.mxu0 %v1143
    %2263 = vmatpush1.bf16.msra.mxu0 %v1142
    %2264 = vmatprep.subr.bf16.mxu0 %v1149
    %2265 = vmatpush1.bf16.msra.mxu0 %v1148
    %2266 = vmatprep.mubr.bf16.mxu0 %v2120
    %2267 = vmatmul.mubr.bf16.gmra.mrb[0].mxu0 %v2147
    %v2268 = vpop.f32.mrb[0].mxu0
    %v2269 = vadd.f32 0.0, %v2268
    %v2270 = vpop.f32.mrb[0].mxu0
    %v2271 = vadd.f32 0.0, %v2270
    %v2272 = vpop.f32.mrb[0].mxu0
    %v2273 = vadd.f32 0.0, %v2272
    %v2274 = vpop.f32.mrb[0].mxu0
    %v2275 = vadd.f32 0.0, %v2274
    %2276 = vdwg.mxu0
    %v2277 = vadd.f32 %v538, %v2183
    %v2278 = vadd.f32 %v540, %v2185
    %v2279 = vadd.f32 %v581, %v2226
    %v2280 = vadd.f32 %v583, %v2228
    %v2281 = vadd.f32 %v624, %v2269
    %v2282 = vadd.f32 %v626, %v2271
    %v2283 = vadd.f32 %v542, %v2187
    %v2284 = vadd.f32 %v544, %v2189
    %v2285 = vadd.f32 %v585, %v2230
    %v2286 = vadd.f32 %v587, %v2232
    %v2287 = vadd.f32 %v628, %v2273
    %v2288 = vadd.f32 %v630, %v2275
    %v2289 = vmax.f32 %v2277, %v2278
    %v2290 = vmax.f32 %v2283, %v2284
    %v2291 = vmax.f32 %v2289, %v2279
    %v2292 = vmax.f32 %v2290, %v2285
    %v2293 = vsub.f32 %v2277, %v2291
    %v2294 = vsub.f32 %v2283, %v2292
    %v2295 = vmul.f32 %v2293, 1.442695
    %v2296 = vpow.pop %v2295
    %v2297 = vmul.f32 %v2294, 1.442695
    %v2298 = vpow.pop %v2297
    %v2299 = vsub.f32 %v2278, %v2291
    %v2300 = vsub.f32 %v2284, %v2292
    %v2301 = vmul.f32 %v2299, 1.442695
    %v2302 = vpow.pop %v2301
    %v2303 = vmul.f32 %v2300, 1.442695
    %v2304 = vpow.pop %v2303
    %v2305 = vsub.f32 %v2279, %v2291
    %v2306 = vsub.f32 %v2285, %v2292
    %v2307 = vmul.f32 %v2305, 1.442695
    %v2308 = vpow.pop %v2307
    %v2309 = vmul.f32 %v2306, 1.442695
    %v2310 = vpow.pop %v2309
    %v2311 = vadd.f32 %v2296, %v2302
    %v2312 = vadd.f32 %v2298, %v2304
    %v2313 = vadd.f32 %v2311, %v2308
    %v2314 = vadd.f32 %v2312, %v2310
    %v2315 = vrcp.pop %v2313
    %v2316 = vrcp.pop %v2314
    %v2317 = vmul.f32 %v2296, %v2315
    %v2318 = vmul.f32 %v2298, %v2316
    %v2319 = vmul.f32 %v2302, %v2315
    %v2320 = vmul.f32 %v2304, %v2316
    %v2321 = vmul.f32 %v2308, %v2315
    %v2322 = vmul.f32 %v2310, %v2316
    %v2323 = vxor.u32 %v2280, 2147483648
    %v2324 = vxor.u32 %v2286, 2147483648
    %v2325 = vmul.f32 %v2323, 1.442695
    %v2326 = vpow.pop %v2325
    %v2327 = vmul.f32 %v2324, 1.442695
    %v2328 = vpow.pop %v2327
    %v2329 = vadd.f32 %v2326, 1.0
    %v2330 = vadd.f32 %v2328, 1.0
    %v2331 = vrcp.pop %v2329
    %v2332 = vmul.f32 1.0, %v2331
    %v2333 = vrcp.pop %v2330
    %v2334 = vmul.f32 1.0, %v2333
    %v2335 = vtanh.pop %v2281
    %v2336 = vtanh.pop %v2287
    %v2337 = vxor.u32 %v2282, 2147483648
    %v2338 = vxor.u32 %v2288, 2147483648
    %v2339 = vmul.f32 %v2337, 1.442695
    %v2340 = vpow.pop %v2339
    %v2341 = vmul.f32 %v2338, 1.442695
    %v2342 = vpow.pop %v2341
    %v2343 = vadd.f32 %v2340, 1.0
    %v2344 = vadd.f32 %v2342, 1.0
    %v2345 = vrcp.pop %v2343
    %v2346 = vmul.f32 1.0, %v2345
    %v2347 = vrcp.pop %v2344
    %v2348 = vmul.f32 1.0, %v2347
    %v2349 = vmul.f32 %v2319, %v2004
    %v2350 = vmul.f32 %v2320, %v2005
    %v2351 = vmul.f32 %v2321, %v2114
    %v2352 = vmul.f32 %v2322, %v2115
    %v2353 = vadd.f32 %v2349, %v2351
    %v2354 = vadd.f32 %v2350, %v2352
    %v2355 = vmul.f32 %v2317, %v2335
    %v2356 = vmul.f32 %v2318, %v2336
    %v2357 = vadd.f32 %v2353, %v2355
    %v2358 = vadd.f32 %v2354, %v2356
    %v2359 = vmul.f32 %v2357, %v144
    %v2360 = vmul.f32 %v2358, %v149
    %v2361 = vtanh.pop %v2359
    %v2362 = vtanh.pop %v2360
    %v2363 = vmul.f32 %v2332, %v2361
    %v2364 = vmul.f32 %v2334, %v2362
    %v2365 = vmul.f32 %v2363, %v144
    %v2366 = vmul.f32 %v2364, %v149
    %v2367 = vmul.f32 %v2346, %v2359
    %v2368 = vmul.f32 %v2348, %v2360
    %v2369 = vrot.slane %v2365, 6
    %v2370 = vrot.slane %v2367, 6
    %v2371 = vrot.slane %v2366, 6
    %v2372 = vrot.slane %v2368, 6
    %v2373 = vsel %vm660, %v2369, %v2371
    %v2374 = vsel %vm660, %v2370, %v2372
    %v2375 = vsel %vm660, %v2371, %v2369
    %v2376 = vsel %vm660, %v2372, %v2370
    %v2377 = vadd.f32 %v2365, %v2375
    %v2378 = vadd.f32 %v2367, %v2376
    %v2379 = vadd.f32 %v2366, %v2373
    %v2380 = vadd.f32 %v2368, %v2374
    %v2381 = vrot.slane %v2377, 4
    %v2382 = vrot.slane %v2378, 4
    %v2383 = vrot.slane %v2379, 4
    %v2384 = vrot.slane %v2380, 4
    %v2385 = vsel %vm650, %v2381, %v2383
    %v2386 = vsel %vm650, %v2382, %v2384
    %v2387 = vsel %vm650, %v2383, %v2381
    %v2388 = vsel %vm650, %v2384, %v2382
    %v2389 = vadd.f32 %v2377, %v2387
    %v2390 = vadd.f32 %v2378, %v2388
    %v2391 = vadd.f32 %v2379, %v2385
    %v2392 = vadd.f32 %v2380, %v2386
    %v2393 = vadd.f32 %v2389, %v2391
    %v2394 = vadd.f32 %v2390, %v2392
    %v2395 = vmul.f32 %v2393, %v156
    %v2396 = vmul.f32 %v2394, %v156
    %v2397 = vmul.f32 %v2393, %v161
    %v2398 = vmul.f32 %v2394, %v161
    %v2399 = vpack.c.bf16 %v2397, %v2395
    %2400 = vmatprep.subr.bf16.mxu0 %v1627
    %2401 = vmatpush1.bf16.msra.mxu0 %v1626
    %2402 = vmatprep.subr.bf16.mxu0 %v1629
    %2403 = vmatpush1.bf16.msra.mxu0 %v1628
    %2404 = vmatprep.subr.bf16.mxu0 %v1631
    %2405 = vmatpush1.bf16.msra.mxu0 %v1630
    %2406 = vmatprep.subr.bf16.mxu0 %v1633
    %2407 = vmatpush1.bf16.msra.mxu0 %v1632
    %2408 = vmatprep.subr.bf16.mxu0 %v1635
    %2409 = vmatpush1.bf16.msra.mxu0 %v1634
    %2410 = vmatprep.subr.bf16.mxu0 %v1637
    %2411 = vmatpush1.bf16.msra.mxu0 %v1636
    %2412 = vmatprep.subr.bf16.mxu0 %v1639
    %2413 = vmatpush1.bf16.msra.mxu0 %v1638
    %2414 = vmatprep.subr.bf16.mxu0 %v1641
    %2415 = vmatpush1.bf16.msra.mxu0 %v1640
    %2416 = vmatprep.subr.bf16.mxu0 %v1643
    %2417 = vmatpush1.bf16.msra.mxu0 %v1642
    %2418 = vmatprep.subr.bf16.mxu0 %v1645
    %2419 = vmatpush1.bf16.msra.mxu0 %v1644
    %2420 = vmatprep.subr.bf16.mxu0 %v1647
    %2421 = vmatpush1.bf16.msra.mxu0 %v1646
    %2422 = vmatprep.subr.bf16.mxu0 %v1649
    %2423 = vmatpush1.bf16.msra.mxu0 %v1648
    %2424 = vmatprep.subr.bf16.mxu0 %v1651
    %2425 = vmatpush1.bf16.msra.mxu0 %v1650
    %2426 = vmatprep.subr.bf16.mxu0 %v1653
    %2427 = vmatpush1.bf16.msra.mxu0 %v1652
    %2428 = vmatprep.subr.bf16.mxu0 %v1655
    %2429 = vmatpush1.bf16.msra.mxu0 %v1654
    %2430 = vmatprep.subr.bf16.mxu0 %v1657
    %2431 = vmatpush1.bf16.msra.mxu0 %v1656
    %2432 = vmatprep.mubr.bf16.mxu0 %v2399
    %2433 = vmatmul.mubr.bf16.gmra.mrb[0].mxu0 %v2120
    %v2434 = vpop.f32.mrb[0].mxu0
    %v2435 = vadd.f32 %v168, %v2434
    %v2436 = vpop.f32.mrb[0].mxu0
    %v2437 = vadd.f32 %v172, %v2436
    %v2438 = vpop.f32.mrb[0].mxu0
    %v2439 = vadd.f32 %v168, %v2438
    %v2440 = vpop.f32.mrb[0].mxu0
    %v2441 = vadd.f32 %v172, %v2440
    %2442 = vdwg.mxu0
    %v2443 = vxor.u32 %v2435, 2147483648
    %v2444 = vxor.u32 %v2439, 2147483648
    %v2445 = vmul.f32 %v2443, 1.442695
    %v2446 = vpow.pop %v2445
    %v2447 = vmul.f32 %v2444, 1.442695
    %v2448 = vpow.pop %v2447
    %v2449 = vadd.f32 %v2446, 1.0
    %v2450 = vadd.f32 %v2448, 1.0
    %v2451 = vrcp.pop %v2449
    %v2452 = vmul.f32 1.0, %v2451
    %v2453 = vrcp.pop %v2450
    %v2454 = vmul.f32 1.0, %v2453
    %v2455 = vxor.u32 %v2437, 2147483648
    %v2456 = vxor.u32 %v2441, 2147483648
    %v2457 = vmul.f32 %v2455, 1.442695
    %v2458 = vpow.pop %v2457
    %v2459 = vmul.f32 %v2456, 1.442695
    %v2460 = vpow.pop %v2459
    %v2461 = vadd.f32 %v2458, 1.0
    %v2462 = vadd.f32 %v2460, 1.0
    %v2463 = vrcp.pop %v2461
    %v2464 = vmul.f32 1.0, %v2463
    %v2465 = vrcp.pop %v2462
    %v2466 = vmul.f32 1.0, %v2465
    %v2467 = vmul.f32 %v2452, %v2114
    %v2468 = vmul.f32 %v2454, %v2115
    %v2469 = vadd.f32 %v2467, %v2396
    %v2470 = vadd.f32 %v2468, %v2398
    %v2471 = vtanh.pop %v2469
    %v2472 = vtanh.pop %v2470
    %v2473 = vmul.f32 %v2464, %v2471
    %v2474 = vmul.f32 %v2466, %v2472
    %v2475 = vpack.c.bf16 %v2474, %v2473
    %v2476 = vmul.f32 %v2365, %v632
    %v2477 = vmul.f32 %v2366, %v633
    %v2478 = vrot.slane %v2365, 4
    %v2479 = vrot.slane %v2366, 4
    %v2480 = vsel %vm650, %v2478, %v2479
    %v2481 = vsel %vm650, %v2479, %v2478
    %v2482 = vmul.f32 %v2480, %v635
    %v2483 = vmul.f32 %v2481, %v636
    %v2484 = vadd.f32 %v2476, %v2482
    %v2485 = vadd.f32 %v2477, %v2483
    %v2486 = vrot.slane %v2365, 2
    %v2487 = vrot.slane %v2366, 2
    %v2488 = vsel %vm655, %v2486, %v2487
    %v2489 = vsel %vm655, %v2487, %v2486
    %v2490 = vmul.f32 %v2488, %v638
    %v2491 = vmul.f32 %v2489, %v639
    %v2492 = vadd.f32 %v2484, %v2490
    %v2493 = vadd.f32 %v2485, %v2491
    %v2494 = vmul.f32 %v2375, %v641
    %v2495 = vmul.f32 %v2373, %v642
    %v2496 = vadd.f32 %v2492, %v2494
    %v2497 = vadd.f32 %v2493, %v2495
    %v2498 = vmul.f32 %v2481, %v644
    %v2499 = vmul.f32 %v2480, %v645
    %v2500 = vadd.f32 %v2496, %v2498
    %v2501 = vadd.f32 %v2497, %v2499
    %v2502 = vpack.c.bf16 %v2501, %v2500
    %2503 = vmatprep.subr.bf16.mxu0 %v1055
    %2504 = vmatpush1.bf16.msra.mxu0 %v1054
    %2505 = vmatprep.subr.bf16.mxu0 %v1061
    %2506 = vmatpush1.bf16.msra.mxu0 %v1060
    %2507 = vmatprep.subr.bf16.mxu0 %v1067
    %2508 = vmatpush1.bf16.msra.mxu0 %v1066
    %2509 = vmatprep.subr.bf16.mxu0 %v1073
    %2510 = vmatpush1.bf16.msra.mxu0 %v1072
    %2511 = vmatprep.subr.bf16.mxu0 %v1079
    %2512 = vmatpush1.bf16.msra.mxu0 %v1078
    %2513 = vmatprep.subr.bf16.mxu0 %v1085
    %2514 = vmatpush1.bf16.msra.mxu0 %v1084
    %2515 = vmatprep.subr.bf16.mxu0 %v1091
    %2516 = vmatpush1.bf16.msra.mxu0 %v1090
    %2517 = vmatprep.subr.bf16.mxu0 %v1097
    %2518 = vmatpush1.bf16.msra.mxu0 %v1096
    %2519 = vmatprep.subr.bf16.mxu0 %v1103
    %2520 = vmatpush1.bf16.msra.mxu0 %v1102
    %2521 = vmatprep.subr.bf16.mxu0 %v1109
    %2522 = vmatpush1.bf16.msra.mxu0 %v1108
    %2523 = vmatprep.subr.bf16.mxu0 %v1115
    %2524 = vmatpush1.bf16.msra.mxu0 %v1114
    %2525 = vmatprep.subr.bf16.mxu0 %v1121
    %2526 = vmatpush1.bf16.msra.mxu0 %v1120
    %2527 = vmatprep.subr.bf16.mxu0 %v1127
    %2528 = vmatpush1.bf16.msra.mxu0 %v1126
    %2529 = vmatprep.subr.bf16.mxu0 %v1133
    %2530 = vmatpush1.bf16.msra.mxu0 %v1132
    %2531 = vmatprep.subr.bf16.mxu0 %v1139
    %2532 = vmatpush1.bf16.msra.mxu0 %v1138
    %2533 = vmatprep.subr.bf16.mxu0 %v1145
    %2534 = vmatpush1.bf16.msra.mxu0 %v1144
    %2535 = vmatprep.mubr.bf16.mxu0 %v2475
    %2536 = vmatmul.mubr.bf16.gmra.mrb[0].mxu0 %v2502
    %v2537 = vpop.f32.mrb[0].mxu0
    %v2538 = vadd.f32 0.0, %v2537
    %v2539 = vpop.f32.mrb[0].mxu0
    %v2540 = vadd.f32 0.0, %v2539
    %v2541 = vpop.f32.mrb[0].mxu0
    %v2542 = vadd.f32 0.0, %v2541
    %v2543 = vpop.f32.mrb[0].mxu0
    %v2544 = vadd.f32 0.0, %v2543
    %2545 = vdwg.mxu0
    %2546 = vmatprep.subr.bf16.mxu0 %v1057
    %2547 = vmatpush1.bf16.msra.mxu0 %v1056
    %2548 = vmatprep.subr.bf16.mxu0 %v1063
    %2549 = vmatpush1.bf16.msra.mxu0 %v1062
    %2550 = vmatprep.subr.bf16.mxu0 %v1069
    %2551 = vmatpush1.bf16.msra.mxu0 %v1068
    %2552 = vmatprep.subr.bf16.mxu0 %v1075
    %2553 = vmatpush1.bf16.msra.mxu0 %v1074
    %2554 = vmatprep.subr.bf16.mxu0 %v1081
    %2555 = vmatpush1.bf16.msra.mxu0 %v1080
    %2556 = vmatprep.subr.bf16.mxu0 %v1087
    %2557 = vmatpush1.bf16.msra.mxu0 %v1086
    %2558 = vmatprep.subr.bf16.mxu0 %v1093
    %2559 = vmatpush1.bf16.msra.mxu0 %v1092
    %2560 = vmatprep.subr.bf16.mxu0 %v1099
    %2561 = vmatpush1.bf16.msra.mxu0 %v1098
    %2562 = vmatprep.subr.bf16.mxu0 %v1105
    %2563 = vmatpush1.bf16.msra.mxu0 %v1104
    %2564 = vmatprep.subr.bf16.mxu0 %v1111
    %2565 = vmatpush1.bf16.msra.mxu0 %v1110
    %2566 = vmatprep.subr.bf16.mxu0 %v1117
    %2567 = vmatpush1.bf16.msra.mxu0 %v1116
    %2568 = vmatprep.subr.bf16.mxu0 %v1123
    %2569 = vmatpush1.bf16.msra.mxu0 %v1122
    %2570 = vmatprep.subr.bf16.mxu0 %v1129
    %2571 = vmatpush1.bf16.msra.mxu0 %v1128
    %2572 = vmatprep.subr.bf16.mxu0 %v1135
    %2573 = vmatpush1.bf16.msra.mxu0 %v1134
    %2574 = vmatprep.subr.bf16.mxu0 %v1141
    %2575 = vmatpush1.bf16.msra.mxu0 %v1140
    %2576 = vmatprep.subr.bf16.mxu0 %v1147
    %2577 = vmatpush1.bf16.msra.mxu0 %v1146
    %2578 = vmatprep.mubr.bf16.mxu0 %v2475
    %2579 = vmatmul.mubr.bf16.gmra.mrb[0].mxu0 %v2502
    %v2580 = vpop.f32.mrb[0].mxu0
    %v2581 = vadd.f32 0.0, %v2580
    %v2582 = vpop.f32.mrb[0].mxu0
    %v2583 = vadd.f32 0.0, %v2582
    %v2584 = vpop.f32.mrb[0].mxu0
    %v2585 = vadd.f32 0.0, %v2584
    %v2586 = vpop.f32.mrb[0].mxu0
    %v2587 = vadd.f32 0.0, %v2586
    %2588 = vdwg.mxu0
    %2589 = vmatprep.subr.bf16.mxu0 %v1059
    %2590 = vmatpush1.bf16.msra.mxu0 %v1058
    %2591 = vmatprep.subr.bf16.mxu0 %v1065
    %2592 = vmatpush1.bf16.msra.mxu0 %v1064
    %2593 = vmatprep.subr.bf16.mxu0 %v1071
    %2594 = vmatpush1.bf16.msra.mxu0 %v1070
    %2595 = vmatprep.subr.bf16.mxu0 %v1077
    %2596 = vmatpush1.bf16.msra.mxu0 %v1076
    %2597 = vmatprep.subr.bf16.mxu0 %v1083
    %2598 = vmatpush1.bf16.msra.mxu0 %v1082
    %2599 = vmatprep.subr.bf16.mxu0 %v1089
    %2600 = vmatpush1.bf16.msra.mxu0 %v1088
    %2601 = vmatprep.subr.bf16.mxu0 %v1095
    %2602 = vmatpush1.bf16.msra.mxu0 %v1094
    %2603 = vmatprep.subr.bf16.mxu0 %v1101
    %2604 = vmatpush1.bf16.msra.mxu0 %v1100
    %2605 = vmatprep.subr.bf16.mxu0 %v1107
    %2606 = vmatpush1.bf16.msra.mxu0 %v1106
    %2607 = vmatprep.subr.bf16.mxu0 %v1113
    %2608 = vmatpush1.bf16.msra.mxu0 %v1112
    %2609 = vmatprep.subr.bf16.mxu0 %v1119
    %2610 = vmatpush1.bf16.msra.mxu0 %v1118
    %2611 = vmatprep.subr.bf16.mxu0 %v1125
    %2612 = vmatpush1.bf16.msra.mxu0 %v1124
    %2613 = vmatprep.subr.bf16.mxu0 %v1131
    %2614 = vmatpush1.bf16.msra.mxu0 %v1130
    %2615 = vmatprep.subr.bf16.mxu0 %v1137
    %2616 = vmatpush1.bf16.msra.mxu0 %v1136
    %2617 = vmatprep.subr.bf16.mxu0 %v1143
    %2618 = vmatpush1.bf16.msra.mxu0 %v1142
    %2619 = vmatprep.subr.bf16.mxu0 %v1149
    %2620 = vmatpush1.bf16.msra.mxu0 %v1148
    %2621 = vmatprep.mubr.bf16.mxu0 %v2475
    %2622 = vmatmul.mubr.bf16.gmra.mrb[0].mxu0 %v2502
    %v2623 = vpop.f32.mrb[0].mxu0
    %v2624 = vadd.f32 0.0, %v2623
    %v2625 = vpop.f32.mrb[0].mxu0
    %v2626 = vadd.f32 0.0, %v2625
    %v2627 = vpop.f32.mrb[0].mxu0
    %v2628 = vadd.f32 0.0, %v2627
    %v2629 = vpop.f32.mrb[0].mxu0
    %v2630 = vadd.f32 0.0, %v2629
    %2631 = vdwg.mxu0
    %v2632 = vadd.f32 %v538, %v2538
    %v2633 = vadd.f32 %v540, %v2540
    %v2634 = vadd.f32 %v581, %v2581
    %v2635 = vadd.f32 %v583, %v2583
    %v2636 = vadd.f32 %v624, %v2624
    %v2637 = vadd.f32 %v626, %v2626
    %v2638 = vadd.f32 %v542, %v2542
    %v2639 = vadd.f32 %v544, %v2544
    %v2640 = vadd.f32 %v585, %v2585
    %v2641 = vadd.f32 %v587, %v2587
    %v2642 = vadd.f32 %v628, %v2628
    %v2643 = vadd.f32 %v630, %v2630
    %v2644 = vmax.f32 %v2632, %v2633
    %v2645 = vmax.f32 %v2638, %v2639
    %v2646 = vmax.f32 %v2644, %v2634
    %v2647 = vmax.f32 %v2645, %v2640
    %v2648 = vsub.f32 %v2632, %v2646
    %v2649 = vsub.f32 %v2638, %v2647
    %v2650 = vmul.f32 %v2648, 1.442695
    %v2651 = vpow.pop %v2650
    %v2652 = vmul.f32 %v2649, 1.442695
    %v2653 = vpow.pop %v2652
    %v2654 = vsub.f32 %v2633, %v2646
    %v2655 = vsub.f32 %v2639, %v2647
    %v2656 = vmul.f32 %v2654, 1.442695
    %v2657 = vpow.pop %v2656
    %v2658 = vmul.f32 %v2655, 1.442695
    %v2659 = vpow.pop %v2658
    %v2660 = vsub.f32 %v2634, %v2646
    %v2661 = vsub.f32 %v2640, %v2647
    %v2662 = vmul.f32 %v2660, 1.442695
    %v2663 = vpow.pop %v2662
    %v2664 = vmul.f32 %v2661, 1.442695
    %v2665 = vpow.pop %v2664
    %v2666 = vadd.f32 %v2651, %v2657
    %v2667 = vadd.f32 %v2653, %v2659
    %v2668 = vadd.f32 %v2666, %v2663
    %v2669 = vadd.f32 %v2667, %v2665
    %v2670 = vrcp.pop %v2668
    %v2671 = vrcp.pop %v2669
    %v2672 = vmul.f32 %v2651, %v2670
    %v2673 = vmul.f32 %v2653, %v2671
    %v2674 = vmul.f32 %v2657, %v2670
    %v2675 = vmul.f32 %v2659, %v2671
    %v2676 = vmul.f32 %v2663, %v2670
    %v2677 = vmul.f32 %v2665, %v2671
    %v2678 = vxor.u32 %v2635, 2147483648
    %v2679 = vxor.u32 %v2641, 2147483648
    %v2680 = vmul.f32 %v2678, 1.442695
    %v2681 = vpow.pop %v2680
    %v2682 = vmul.f32 %v2679, 1.442695
    %v2683 = vpow.pop %v2682
    %v2684 = vadd.f32 %v2681, 1.0
    %v2685 = vadd.f32 %v2683, 1.0
    %v2686 = vrcp.pop %v2684
    %v2687 = vmul.f32 1.0, %v2686
    %v2688 = vrcp.pop %v2685
    %v2689 = vmul.f32 1.0, %v2688
    %v2690 = vtanh.pop %v2636
    %v2691 = vtanh.pop %v2642
    %v2692 = vxor.u32 %v2637, 2147483648
    %v2693 = vxor.u32 %v2643, 2147483648
    %v2694 = vmul.f32 %v2692, 1.442695
    %v2695 = vpow.pop %v2694
    %v2696 = vmul.f32 %v2693, 1.442695
    %v2697 = vpow.pop %v2696
    %v2698 = vadd.f32 %v2695, 1.0
    %v2699 = vadd.f32 %v2697, 1.0
    %v2700 = vrcp.pop %v2698
    %v2701 = vmul.f32 1.0, %v2700
    %v2702 = vrcp.pop %v2699
    %v2703 = vmul.f32 1.0, %v2702
    %v2704 = vmul.f32 %v2674, %v2359
    %v2705 = vmul.f32 %v2675, %v2360
    %v2706 = vmul.f32 %v2676, %v2469
    %v2707 = vmul.f32 %v2677, %v2470
    %v2708 = vadd.f32 %v2704, %v2706
    %v2709 = vadd.f32 %v2705, %v2707
    %v2710 = vmul.f32 %v2672, %v2690
    %v2711 = vmul.f32 %v2673, %v2691
    %v2712 = vadd.f32 %v2708, %v2710
    %v2713 = vadd.f32 %v2709, %v2711
    %v2714 = vmul.f32 %v2712, %v144
    %v2715 = vmul.f32 %v2713, %v149
    %v2716 = vtanh.pop %v2714
    %v2717 = vtanh.pop %v2715
    %v2718 = vmul.f32 %v2687, %v2716
    %v2719 = vmul.f32 %v2689, %v2717
    %v2720 = vmul.f32 %v2718, %v144
    %v2721 = vmul.f32 %v2719, %v149
    %v2722 = vmul.f32 %v2701, %v2714
    %v2723 = vmul.f32 %v2703, %v2715
    %v2724 = vrot.slane %v2720, 6
    %v2725 = vrot.slane %v2722, 6
    %v2726 = vrot.slane %v2721, 6
    %v2727 = vrot.slane %v2723, 6
    %v2728 = vsel %vm660, %v2724, %v2726
    %v2729 = vsel %vm660, %v2725, %v2727
    %v2730 = vsel %vm660, %v2726, %v2724
    %v2731 = vsel %vm660, %v2727, %v2725
    %v2732 = vadd.f32 %v2720, %v2730
    %v2733 = vadd.f32 %v2722, %v2731
    %v2734 = vadd.f32 %v2721, %v2728
    %v2735 = vadd.f32 %v2723, %v2729
    %v2736 = vrot.slane %v2732, 4
    %v2737 = vrot.slane %v2733, 4
    %v2738 = vrot.slane %v2734, 4
    %v2739 = vrot.slane %v2735, 4
    %v2740 = vsel %vm650, %v2736, %v2738
    %v2741 = vsel %vm650, %v2737, %v2739
    %v2742 = vsel %vm650, %v2738, %v2736
    %v2743 = vsel %vm650, %v2739, %v2737
    %v2744 = vadd.f32 %v2732, %v2742
    %v2745 = vadd.f32 %v2733, %v2743
    %v2746 = vadd.f32 %v2734, %v2740
    %v2747 = vadd.f32 %v2735, %v2741
    %v2748 = vadd.f32 %v2744, %v2746
    %v2749 = vadd.f32 %v2745, %v2747
    %v2750 = vmul.f32 %v2748, %v156
    %v2751 = vmul.f32 %v2749, %v156
    %v2752 = vmul.f32 %v2748, %v161
    %v2753 = vmul.f32 %v2749, %v161
    %v2754 = vpack.c.bf16 %v2752, %v2750
    %2755 = vmatprep.subr.bf16.mxu0 %v1627
    %2756 = vmatpush1.bf16.msra.mxu0 %v1626
    %2757 = vmatprep.subr.bf16.mxu0 %v1629
    %2758 = vmatpush1.bf16.msra.mxu0 %v1628
    %2759 = vmatprep.subr.bf16.mxu0 %v1631
    %2760 = vmatpush1.bf16.msra.mxu0 %v1630
    %2761 = vmatprep.subr.bf16.mxu0 %v1633
    %2762 = vmatpush1.bf16.msra.mxu0 %v1632
    %2763 = vmatprep.subr.bf16.mxu0 %v1635
    %2764 = vmatpush1.bf16.msra.mxu0 %v1634
    %2765 = vmatprep.subr.bf16.mxu0 %v1637
    %2766 = vmatpush1.bf16.msra.mxu0 %v1636
    %2767 = vmatprep.subr.bf16.mxu0 %v1639
    %2768 = vmatpush1.bf16.msra.mxu0 %v1638
    %2769 = vmatprep.subr.bf16.mxu0 %v1641
    %2770 = vmatpush1.bf16.msra.mxu0 %v1640
    %2771 = vmatprep.subr.bf16.mxu0 %v1643
    %2772 = vmatpush1.bf16.msra.mxu0 %v1642
    %2773 = vmatprep.subr.bf16.mxu0 %v1645
    %2774 = vmatpush1.bf16.msra.mxu0 %v1644
    %2775 = vmatprep.subr.bf16.mxu0 %v1647
    %2776 = vmatpush1.bf16.msra.mxu0 %v1646
    %2777 = vmatprep.subr.bf16.mxu0 %v1649
    %2778 = vmatpush1.bf16.msra.mxu0 %v1648
    %2779 = vmatprep.subr.bf16.mxu0 %v1651
    %2780 = vmatpush1.bf16.msra.mxu0 %v1650
    %2781 = vmatprep.subr.bf16.mxu0 %v1653
    %2782 = vmatpush1.bf16.msra.mxu0 %v1652
    %2783 = vmatprep.subr.bf16.mxu0 %v1655
    %2784 = vmatpush1.bf16.msra.mxu0 %v1654
    %2785 = vmatprep.subr.bf16.mxu0 %v1657
    %2786 = vmatpush1.bf16.msra.mxu0 %v1656
    %2787 = vmatprep.mubr.bf16.mxu0 %v2754
    %2788 = vmatmul.mubr.bf16.gmra.mrb[0].mxu0 %v2475
    %v2789 = vpop.f32.mrb[0].mxu0
    %v2790 = vadd.f32 %v168, %v2789
    %v2791 = vpop.f32.mrb[0].mxu0
    %v2792 = vadd.f32 %v172, %v2791
    %v2793 = vpop.f32.mrb[0].mxu0
    %v2794 = vadd.f32 %v168, %v2793
    %v2795 = vpop.f32.mrb[0].mxu0
    %v2796 = vadd.f32 %v172, %v2795
    %2797 = vdwg.mxu0
    %v2798 = vxor.u32 %v2790, 2147483648
    %v2799 = vxor.u32 %v2794, 2147483648
    %v2800 = vmul.f32 %v2798, 1.442695
    %v2801 = vpow.pop %v2800
    %v2802 = vmul.f32 %v2799, 1.442695
    %v2803 = vpow.pop %v2802
    %v2804 = vadd.f32 %v2801, 1.0
    %v2805 = vadd.f32 %v2803, 1.0
    %v2806 = vrcp.pop %v2804
    %v2807 = vmul.f32 1.0, %v2806
    %v2808 = vrcp.pop %v2805
    %v2809 = vmul.f32 1.0, %v2808
    %v2810 = vxor.u32 %v2792, 2147483648
    %v2811 = vxor.u32 %v2796, 2147483648
    %v2812 = vmul.f32 %v2810, 1.442695
    %v2813 = vpow.pop %v2812
    %v2814 = vmul.f32 %v2811, 1.442695
    %v2815 = vpow.pop %v2814
    %v2816 = vadd.f32 %v2813, 1.0
    %v2817 = vadd.f32 %v2815, 1.0
    %v2818 = vrcp.pop %v2816
    %v2819 = vmul.f32 1.0, %v2818
    %v2820 = vrcp.pop %v2817
    %v2821 = vmul.f32 1.0, %v2820
    %v2822 = vmul.f32 %v2807, %v2469
    %v2823 = vmul.f32 %v2809, %v2470
    %v2824 = vadd.f32 %v2822, %v2751
    %v2825 = vadd.f32 %v2823, %v2753
    %v2826 = vtanh.pop %v2824
    %v2827 = vtanh.pop %v2825
    %v2828 = vmul.f32 %v2819, %v2826
    %v2829 = vmul.f32 %v2821, %v2827
    %v2830 = vpack.c.bf16 %v2829, %v2828
    %v2831 = vmul.f32 %v2720, %v632
    %v2832 = vmul.f32 %v2721, %v633
    %v2833 = vrot.slane %v2720, 4
    %v2834 = vrot.slane %v2721, 4
    %v2835 = vsel %vm650, %v2833, %v2834
    %v2836 = vsel %vm650, %v2834, %v2833
    %v2837 = vmul.f32 %v2835, %v635
    %v2838 = vmul.f32 %v2836, %v636
    %v2839 = vadd.f32 %v2831, %v2837
    %v2840 = vadd.f32 %v2832, %v2838
    %v2841 = vrot.slane %v2720, 2
    %v2842 = vrot.slane %v2721, 2
    %v2843 = vsel %vm655, %v2841, %v2842
    %v2844 = vsel %vm655, %v2842, %v2841
    %v2845 = vmul.f32 %v2843, %v638
    %v2846 = vmul.f32 %v2844, %v639
    %v2847 = vadd.f32 %v2839, %v2845
    %v2848 = vadd.f32 %v2840, %v2846
    %v2849 = vmul.f32 %v2730, %v641
    %v2850 = vmul.f32 %v2728, %v642
    %v2851 = vadd.f32 %v2847, %v2849
    %v2852 = vadd.f32 %v2848, %v2850
    %v2853 = vmul.f32 %v2836, %v644
    %v2854 = vmul.f32 %v2835, %v645
    %v2855 = vadd.f32 %v2851, %v2853
    %v2856 = vadd.f32 %v2852, %v2854
    %v2857 = vpack.c.bf16 %v2856, %v2855
    %2858 = vmatprep.subr.bf16.mxu0 %v1055
    %2859 = vmatpush1.bf16.msra.mxu0 %v1054
    %2860 = vmatprep.subr.bf16.mxu0 %v1061
    %2861 = vmatpush1.bf16.msra.mxu0 %v1060
    %2862 = vmatprep.subr.bf16.mxu0 %v1067
    %2863 = vmatpush1.bf16.msra.mxu0 %v1066
    %2864 = vmatprep.subr.bf16.mxu0 %v1073
    %2865 = vmatpush1.bf16.msra.mxu0 %v1072
    %2866 = vmatprep.subr.bf16.mxu0 %v1079
    %2867 = vmatpush1.bf16.msra.mxu0 %v1078
    %2868 = vmatprep.subr.bf16.mxu0 %v1085
    %2869 = vmatpush1.bf16.msra.mxu0 %v1084
    %2870 = vmatprep.subr.bf16.mxu0 %v1091
    %2871 = vmatpush1.bf16.msra.mxu0 %v1090
    %2872 = vmatprep.subr.bf16.mxu0 %v1097
    %2873 = vmatpush1.bf16.msra.mxu0 %v1096
    %2874 = vmatprep.subr.bf16.mxu0 %v1103
    %2875 = vmatpush1.bf16.msra.mxu0 %v1102
    %2876 = vmatprep.subr.bf16.mxu0 %v1109
    %2877 = vmatpush1.bf16.msra.mxu0 %v1108
    %2878 = vmatprep.subr.bf16.mxu0 %v1115
    %2879 = vmatpush1.bf16.msra.mxu0 %v1114
    %2880 = vmatprep.subr.bf16.mxu0 %v1121
    %2881 = vmatpush1.bf16.msra.mxu0 %v1120
    %2882 = vmatprep.subr.bf16.mxu0 %v1127
    %2883 = vmatpush1.bf16.msra.mxu0 %v1126
    %2884 = vmatprep.subr.bf16.mxu0 %v1133
    %2885 = vmatpush1.bf16.msra.mxu0 %v1132
    %2886 = vmatprep.subr.bf16.mxu0 %v1139
    %2887 = vmatpush1.bf16.msra.mxu0 %v1138
    %2888 = vmatprep.subr.bf16.mxu0 %v1145
    %2889 = vmatpush1.bf16.msra.mxu0 %v1144
    %2890 = vmatprep.mubr.bf16.mxu0 %v2830
    %2891 = vmatmul.mubr.bf16.gmra.mrb[0].mxu0 %v2857
    %v2892 = vpop.f32.mrb[0].mxu0
    %v2893 = vadd.f32 0.0, %v2892
    %v2894 = vpop.f32.mrb[0].mxu0
    %v2895 = vadd.f32 0.0, %v2894
    %v2896 = vpop.f32.mrb[0].mxu0
    %v2897 = vadd.f32 0.0, %v2896
    %v2898 = vpop.f32.mrb[0].mxu0
    %v2899 = vadd.f32 0.0, %v2898
    %2900 = vdwg.mxu0
    %2901 = vmatprep.subr.bf16.mxu0 %v1057
    %2902 = vmatpush1.bf16.msra.mxu0 %v1056
    %2903 = vmatprep.subr.bf16.mxu0 %v1063
    %2904 = vmatpush1.bf16.msra.mxu0 %v1062
    %2905 = vmatprep.subr.bf16.mxu0 %v1069
    %2906 = vmatpush1.bf16.msra.mxu0 %v1068
    %2907 = vmatprep.subr.bf16.mxu0 %v1075
    %2908 = vmatpush1.bf16.msra.mxu0 %v1074
    %2909 = vmatprep.subr.bf16.mxu0 %v1081
    %2910 = vmatpush1.bf16.msra.mxu0 %v1080
    %2911 = vmatprep.subr.bf16.mxu0 %v1087
    %2912 = vmatpush1.bf16.msra.mxu0 %v1086
    %2913 = vmatprep.subr.bf16.mxu0 %v1093
    %2914 = vmatpush1.bf16.msra.mxu0 %v1092
    %2915 = vmatprep.subr.bf16.mxu0 %v1099
    %2916 = vmatpush1.bf16.msra.mxu0 %v1098
    %2917 = vmatprep.subr.bf16.mxu0 %v1105
    %2918 = vmatpush1.bf16.msra.mxu0 %v1104
    %2919 = vmatprep.subr.bf16.mxu0 %v1111
    %2920 = vmatpush1.bf16.msra.mxu0 %v1110
    %2921 = vmatprep.subr.bf16.mxu0 %v1117
    %2922 = vmatpush1.bf16.msra.mxu0 %v1116
    %2923 = vmatprep.subr.bf16.mxu0 %v1123
    %2924 = vmatpush1.bf16.msra.mxu0 %v1122
    %2925 = vmatprep.subr.bf16.mxu0 %v1129
    %2926 = vmatpush1.bf16.msra.mxu0 %v1128
    %2927 = vmatprep.subr.bf16.mxu0 %v1135
    %2928 = vmatpush1.bf16.msra.mxu0 %v1134
    %2929 = vmatprep.subr.bf16.mxu0 %v1141
    %2930 = vmatpush1.bf16.msra.mxu0 %v1140
    %2931 = vmatprep.subr.bf16.mxu0 %v1147
    %2932 = vmatpush1.bf16.msra.mxu0 %v1146
    %2933 = vmatprep.mubr.bf16.mxu0 %v2830
    %2934 = vmatmul.mubr.bf16.gmra.mrb[0].mxu0 %v2857
    %v2935 = vpop.f32.mrb[0].mxu0
    %v2936 = vadd.f32 0.0, %v2935
    %v2937 = vpop.f32.mrb[0].mxu0
    %v2938 = vadd.f32 0.0, %v2937
    %v2939 = vpop.f32.mrb[0].mxu0
    %v2940 = vadd.f32 0.0, %v2939
    %v2941 = vpop.f32.mrb[0].mxu0
    %v2942 = vadd.f32 0.0, %v2941
    %2943 = vdwg.mxu0
    %2944 = vmatprep.subr.bf16.mxu0 %v1059
    %2945 = vmatpush1.bf16.msra.mxu0 %v1058
    %2946 = vmatprep.subr.bf16.mxu0 %v1065
    %2947 = vmatpush1.bf16.msra.mxu0 %v1064
    %2948 = vmatprep.subr.bf16.mxu0 %v1071
    %2949 = vmatpush1.bf16.msra.mxu0 %v1070
    %2950 = vmatprep.subr.bf16.mxu0 %v1077
    %2951 = vmatpush1.bf16.msra.mxu0 %v1076
    %2952 = vmatprep.subr.bf16.mxu0 %v1083
    %2953 = vmatpush1.bf16.msra.mxu0 %v1082
    %2954 = vmatprep.subr.bf16.mxu0 %v1089
    %2955 = vmatpush1.bf16.msra.mxu0 %v1088
    %2956 = vmatprep.subr.bf16.mxu0 %v1095
    %2957 = vmatpush1.bf16.msra.mxu0 %v1094
    %2958 = vmatprep.subr.bf16.mxu0 %v1101
    %2959 = vmatpush1.bf16.msra.mxu0 %v1100
    %2960 = vmatprep.subr.bf16.mxu0 %v1107
    %2961 = vmatpush1.bf16.msra.mxu0 %v1106
    %2962 = vmatprep.subr.bf16.mxu0 %v1113
    %2963 = vmatpush1.bf16.msra.mxu0 %v1112
    %2964 = vmatprep.subr.bf16.mxu0 %v1119
    %2965 = vmatpush1.bf16.msra.mxu0 %v1118
    %2966 = vmatprep.subr.bf16.mxu0 %v1125
    %2967 = vmatpush1.bf16.msra.mxu0 %v1124
    %2968 = vmatprep.subr.bf16.mxu0 %v1131
    %2969 = vmatpush1.bf16.msra.mxu0 %v1130
    %2970 = vmatprep.subr.bf16.mxu0 %v1137
    %2971 = vmatpush1.bf16.msra.mxu0 %v1136
    %2972 = vmatprep.subr.bf16.mxu0 %v1143
    %2973 = vmatpush1.bf16.msra.mxu0 %v1142
    %2974 = vmatprep.subr.bf16.mxu0 %v1149
    %2975 = vmatpush1.bf16.msra.mxu0 %v1148
    %2976 = vmatprep.mubr.bf16.mxu0 %v2830
    %2977 = vmatmul.mubr.bf16.gmra.mrb[0].mxu0 %v2857
    %v2978 = vpop.f32.mrb[0].mxu0
    %v2979 = vadd.f32 0.0, %v2978
    %v2980 = vpop.f32.mrb[0].mxu0
    %v2981 = vadd.f32 0.0, %v2980
    %v2982 = vpop.f32.mrb[0].mxu0
    %v2983 = vadd.f32 0.0, %v2982
    %v2984 = vpop.f32.mrb[0].mxu0
    %v2985 = vadd.f32 0.0, %v2984
    %2986 = vdwg.mxu0
    %v2987 = vadd.f32 %v538, %v2893
    %v2988 = vadd.f32 %v540, %v2895
    %v2989 = vadd.f32 %v581, %v2936
    %v2990 = vadd.f32 %v583, %v2938
    %v2991 = vadd.f32 %v624, %v2979
    %v2992 = vadd.f32 %v626, %v2981
    %v2993 = vadd.f32 %v542, %v2897
    %v2994 = vadd.f32 %v544, %v2899
    %v2995 = vadd.f32 %v585, %v2940
    %v2996 = vadd.f32 %v587, %v2942
    %v2997 = vadd.f32 %v628, %v2983
    %v2998 = vadd.f32 %v630, %v2985
    %v2999 = vmax.f32 %v2987, %v2988
    %v3000 = vmax.f32 %v2993, %v2994
    %v3001 = vmax.f32 %v2999, %v2989
    %v3002 = vmax.f32 %v3000, %v2995
    %v3003 = vsub.f32 %v2987, %v3001
    %v3004 = vsub.f32 %v2993, %v3002
    %v3005 = vmul.f32 %v3003, 1.442695
    %v3006 = vpow.pop %v3005
    %v3007 = vmul.f32 %v3004, 1.442695
    %v3008 = vpow.pop %v3007
    %v3009 = vsub.f32 %v2988, %v3001
    %v3010 = vsub.f32 %v2994, %v3002
    %v3011 = vmul.f32 %v3009, 1.442695
    %v3012 = vpow.pop %v3011
    %v3013 = vmul.f32 %v3010, 1.442695
    %v3014 = vpow.pop %v3013
    %v3015 = vsub.f32 %v2989, %v3001
    %v3016 = vsub.f32 %v2995, %v3002
    %v3017 = vmul.f32 %v3015, 1.442695
    %v3018 = vpow.pop %v3017
    %v3019 = vmul.f32 %v3016, 1.442695
    %v3020 = vpow.pop %v3019
    %v3021 = vadd.f32 %v3006, %v3012
    %v3022 = vadd.f32 %v3008, %v3014
    %v3023 = vadd.f32 %v3021, %v3018
    %v3024 = vadd.f32 %v3022, %v3020
    %v3025 = vrcp.pop %v3023
    %v3026 = vrcp.pop %v3024
    %v3027 = vmul.f32 %v3006, %v3025
    %v3028 = vmul.f32 %v3008, %v3026
    %v3029 = vmul.f32 %v3012, %v3025
    %v3030 = vmul.f32 %v3014, %v3026
    %v3031 = vmul.f32 %v3018, %v3025
    %v3032 = vmul.f32 %v3020, %v3026
    %v3033 = vxor.u32 %v2990, 2147483648
    %v3034 = vxor.u32 %v2996, 2147483648
    %v3035 = vmul.f32 %v3033, 1.442695
    %v3036 = vpow.pop %v3035
    %v3037 = vmul.f32 %v3034, 1.442695
    %v3038 = vpow.pop %v3037
    %v3039 = vadd.f32 %v3036, 1.0
    %v3040 = vadd.f32 %v3038, 1.0
    %v3041 = vrcp.pop %v3039
    %v3042 = vmul.f32 1.0, %v3041
    %v3043 = vrcp.pop %v3040
    %v3044 = vmul.f32 1.0, %v3043
    %v3045 = vtanh.pop %v2991
    %v3046 = vtanh.pop %v2997
    %v3047 = vxor.u32 %v2992, 2147483648
    %v3048 = vxor.u32 %v2998, 2147483648
    %v3049 = vmul.f32 %v3047, 1.442695
    %v3050 = vpow.pop %v3049
    %v3051 = vmul.f32 %v3048, 1.442695
    %v3052 = vpow.pop %v3051
    %v3053 = vadd.f32 %v3050, 1.0
    %v3054 = vadd.f32 %v3052, 1.0
    %v3055 = vrcp.pop %v3053
    %v3056 = vmul.f32 1.0, %v3055
    %v3057 = vrcp.pop %v3054
    %v3058 = vmul.f32 1.0, %v3057
    %v3059 = vmul.f32 %v3029, %v2714
    %v3060 = vmul.f32 %v3030, %v2715
    %v3061 = vmul.f32 %v3031, %v2824
    %v3062 = vmul.f32 %v3032, %v2825
    %v3063 = vadd.f32 %v3059, %v3061
    %v3064 = vadd.f32 %v3060, %v3062
    %v3065 = vmul.f32 %v3027, %v3045
    %v3066 = vmul.f32 %v3028, %v3046
    %v3067 = vadd.f32 %v3063, %v3065
    %v3068 = vadd.f32 %v3064, %v3066
    %v3069 = vmul.f32 %v3067, %v144
    %v3070 = vmul.f32 %v3068, %v149
    %v3071 = vtanh.pop %v3069
    %v3072 = vtanh.pop %v3070
    %v3073 = vmul.f32 %v3042, %v3071
    %v3074 = vmul.f32 %v3044, %v3072
    %v3075 = vmul.f32 %v3073, %v144
    %v3076 = vmul.f32 %v3074, %v149
    %v3077 = vmul.f32 %v3056, %v3069
    %v3078 = vmul.f32 %v3058, %v3070
    %v3079 = vrot.slane %v3075, 6
    %v3080 = vrot.slane %v3077, 6
    %v3081 = vrot.slane %v3076, 6
    %v3082 = vrot.slane %v3078, 6
    %v3083 = vsel %vm660, %v3079, %v3081
    %v3084 = vsel %vm660, %v3080, %v3082
    %v3085 = vsel %vm660, %v3081, %v3079
    %v3086 = vsel %vm660, %v3082, %v3080
    %v3087 = vadd.f32 %v3075, %v3085
    %v3088 = vadd.f32 %v3077, %v3086
    %v3089 = vadd.f32 %v3076, %v3083
    %v3090 = vadd.f32 %v3078, %v3084
    %v3091 = vrot.slane %v3087, 4
    %v3092 = vrot.slane %v3088, 4
    %v3093 = vrot.slane %v3089, 4
    %v3094 = vrot.slane %v3090, 4
    %v3095 = vsel %vm650, %v3091, %v3093
    %v3096 = vsel %vm650, %v3092, %v3094
    %v3097 = vsel %vm650, %v3093, %v3091
    %v3098 = vsel %vm650, %v3094, %v3092
    %v3099 = vadd.f32 %v3087, %v3097
    %v3100 = vadd.f32 %v3088, %v3098
    %v3101 = vadd.f32 %v3089, %v3095
    %v3102 = vadd.f32 %v3090, %v3096
    %v3103 = vadd.f32 %v3099, %v3101
    %v3104 = vadd.f32 %v3100, %v3102
    %v3105 = vmul.f32 %v3103, %v156
    %v3106 = vmul.f32 %v3104, %v156
    %v3107 = vmul.f32 %v3103, %v161
    %v3108 = vmul.f32 %v3104, %v161
    %v3109 = vpack.c.bf16 %v3107, %v3105
    %3110 = vmatprep.subr.bf16.mxu0 %v1627
    %3111 = vmatpush1.bf16.msra.mxu0 %v1626
    %3112 = vmatprep.subr.bf16.mxu0 %v1629
    %3113 = vmatpush1.bf16.msra.mxu0 %v1628
    %3114 = vmatprep.subr.bf16.mxu0 %v1631
    %3115 = vmatpush1.bf16.msra.mxu0 %v1630
    %3116 = vmatprep.subr.bf16.mxu0 %v1633
    %3117 = vmatpush1.bf16.msra.mxu0 %v1632
    %3118 = vmatprep.subr.bf16.mxu0 %v1635
    %3119 = vmatpush1.bf16.msra.mxu0 %v1634
    %3120 = vmatprep.subr.bf16.mxu0 %v1637
    %3121 = vmatpush1.bf16.msra.mxu0 %v1636
    %3122 = vmatprep.subr.bf16.mxu0 %v1639
    %3123 = vmatpush1.bf16.msra.mxu0 %v1638
    %3124 = vmatprep.subr.bf16.mxu0 %v1641
    %3125 = vmatpush1.bf16.msra.mxu0 %v1640
    %3126 = vmatprep.subr.bf16.mxu0 %v1643
    %3127 = vmatpush1.bf16.msra.mxu0 %v1642
    %3128 = vmatprep.subr.bf16.mxu0 %v1645
    %3129 = vmatpush1.bf16.msra.mxu0 %v1644
    %3130 = vmatprep.subr.bf16.mxu0 %v1647
    %3131 = vmatpush1.bf16.msra.mxu0 %v1646
    %3132 = vmatprep.subr.bf16.mxu0 %v1649
    %3133 = vmatpush1.bf16.msra.mxu0 %v1648
    %3134 = vmatprep.subr.bf16.mxu0 %v1651
    %3135 = vmatpush1.bf16.msra.mxu0 %v1650
    %3136 = vmatprep.subr.bf16.mxu0 %v1653
    %3137 = vmatpush1.bf16.msra.mxu0 %v1652
    %3138 = vmatprep.subr.bf16.mxu0 %v1655
    %3139 = vmatpush1.bf16.msra.mxu0 %v1654
    %3140 = vmatprep.subr.bf16.mxu0 %v1657
    %3141 = vmatpush1.bf16.msra.mxu0 %v1656
    %3142 = vmatprep.mubr.bf16.mxu0 %v3109
    %3143 = vmatmul.mubr.bf16.gmra.mrb[0].mxu0 %v2830
    %v3144 = vpop.f32.mrb[0].mxu0
    %v3145 = vadd.f32 %v168, %v3144
    %v3146 = vpop.f32.mrb[0].mxu0
    %v3147 = vadd.f32 %v172, %v3146
    %v3148 = vpop.f32.mrb[0].mxu0
    %v3149 = vadd.f32 %v168, %v3148
    %v3150 = vpop.f32.mrb[0].mxu0
    %v3151 = vadd.f32 %v172, %v3150
    %3152 = vdwg.mxu0
    %v3153 = vxor.u32 %v3145, 2147483648
    %v3154 = vxor.u32 %v3149, 2147483648
    %v3155 = vmul.f32 %v3153, 1.442695
    %v3156 = vpow.pop %v3155
    %v3157 = vmul.f32 %v3154, 1.442695
    %v3158 = vpow.pop %v3157
    %v3159 = vadd.f32 %v3156, 1.0
    %v3160 = vadd.f32 %v3158, 1.0
    %v3161 = vrcp.pop %v3159
    %v3162 = vmul.f32 1.0, %v3161
    %v3163 = vrcp.pop %v3160
    %v3164 = vmul.f32 1.0, %v3163
    %v3165 = vxor.u32 %v3147, 2147483648
    %v3166 = vxor.u32 %v3151, 2147483648
    %v3167 = vmul.f32 %v3165, 1.442695
    %v3168 = vpow.pop %v3167
    %v3169 = vmul.f32 %v3166, 1.442695
    %v3170 = vpow.pop %v3169
    %v3171 = vadd.f32 %v3168, 1.0
    %v3172 = vadd.f32 %v3170, 1.0
    %v3173 = vrcp.pop %v3171
    %v3174 = vmul.f32 1.0, %v3173
    %v3175 = vrcp.pop %v3172
    %v3176 = vmul.f32 1.0, %v3175
    %v3177 = vmul.f32 %v3162, %v2824
    %v3178 = vmul.f32 %v3164, %v2825
    %v3179 = vadd.f32 %v3177, %v3106
    %v3180 = vadd.f32 %v3178, %v3108
    %v3181 = vtanh.pop %v3179
    %v3182 = vtanh.pop %v3180
    %v3183 = vmul.f32 %v3174, %v3181
    %v3184 = vmul.f32 %v3176, %v3182
    %v3185 = vpack.c.bf16 %v3184, %v3183
    %v3186 = vmul.f32 %v3075, %v632
    %v3187 = vmul.f32 %v3076, %v633
    %v3188 = vrot.slane %v3075, 4
    %v3189 = vrot.slane %v3076, 4
    %v3190 = vsel %vm650, %v3188, %v3189
    %v3191 = vsel %vm650, %v3189, %v3188
    %v3192 = vmul.f32 %v3190, %v635
    %v3193 = vmul.f32 %v3191, %v636
    %v3194 = vadd.f32 %v3186, %v3192
    %v3195 = vadd.f32 %v3187, %v3193
    %v3196 = vrot.slane %v3075, 2
    %v3197 = vrot.slane %v3076, 2
    %v3198 = vsel %vm655, %v3196, %v3197
    %v3199 = vsel %vm655, %v3197, %v3196
    %v3200 = vmul.f32 %v3198, %v638
    %v3201 = vmul.f32 %v3199, %v639
    %v3202 = vadd.f32 %v3194, %v3200
    %v3203 = vadd.f32 %v3195, %v3201
    %v3204 = vmul.f32 %v3085, %v641
    %v3205 = vmul.f32 %v3083, %v642
    %v3206 = vadd.f32 %v3202, %v3204
    %v3207 = vadd.f32 %v3203, %v3205
    %v3208 = vmul.f32 %v3191, %v644
    %v3209 = vmul.f32 %v3190, %v645
    %v3210 = vadd.f32 %v3206, %v3208
    %v3211 = vadd.f32 %v3207, %v3209
    %v3212 = vpack.c.bf16 %v3211, %v3210
    %3213 = vmatprep.subr.bf16.mxu0 %v1055
    %3214 = vmatpush1.bf16.msra.mxu0 %v1054
    %3215 = vmatprep.subr.bf16.mxu0 %v1061
    %3216 = vmatpush1.bf16.msra.mxu0 %v1060
    %3217 = vmatprep.subr.bf16.mxu0 %v1067
    %3218 = vmatpush1.bf16.msra.mxu0 %v1066
    %3219 = vmatprep.subr.bf16.mxu0 %v1073
    %3220 = vmatpush1.bf16.msra.mxu0 %v1072
    %3221 = vmatprep.subr.bf16.mxu0 %v1079
    %3222 = vmatpush1.bf16.msra.mxu0 %v1078
    %3223 = vmatprep.subr.bf16.mxu0 %v1085
    %3224 = vmatpush1.bf16.msra.mxu0 %v1084
    %3225 = vmatprep.subr.bf16.mxu0 %v1091
    %3226 = vmatpush1.bf16.msra.mxu0 %v1090
    %3227 = vmatprep.subr.bf16.mxu0 %v1097
    %3228 = vmatpush1.bf16.msra.mxu0 %v1096
    %3229 = vmatprep.subr.bf16.mxu0 %v1103
    %3230 = vmatpush1.bf16.msra.mxu0 %v1102
    %3231 = vmatprep.subr.bf16.mxu0 %v1109
    %3232 = vmatpush1.bf16.msra.mxu0 %v1108
    %3233 = vmatprep.subr.bf16.mxu0 %v1115
    %3234 = vmatpush1.bf16.msra.mxu0 %v1114
    %3235 = vmatprep.subr.bf16.mxu0 %v1121
    %3236 = vmatpush1.bf16.msra.mxu0 %v1120
    %3237 = vmatprep.subr.bf16.mxu0 %v1127
    %3238 = vmatpush1.bf16.msra.mxu0 %v1126
    %3239 = vmatprep.subr.bf16.mxu0 %v1133
    %3240 = vmatpush1.bf16.msra.mxu0 %v1132
    %3241 = vmatprep.subr.bf16.mxu0 %v1139
    %3242 = vmatpush1.bf16.msra.mxu0 %v1138
    %3243 = vmatprep.subr.bf16.mxu0 %v1145
    %3244 = vmatpush1.bf16.msra.mxu0 %v1144
    %3245 = vmatprep.mubr.bf16.mxu0 %v3185
    %3246 = vmatmul.mubr.bf16.gmra.mrb[0].mxu0 %v3212
    %v3247 = vpop.f32.mrb[0].mxu0
    %v3248 = vadd.f32 0.0, %v3247
    %v3249 = vpop.f32.mrb[0].mxu0
    %v3250 = vadd.f32 0.0, %v3249
    %v3251 = vpop.f32.mrb[0].mxu0
    %v3252 = vadd.f32 0.0, %v3251
    %v3253 = vpop.f32.mrb[0].mxu0
    %v3254 = vadd.f32 0.0, %v3253
    %3255 = vdwg.mxu0
    %3256 = vmatprep.subr.bf16.mxu0 %v1057
    %3257 = vmatpush1.bf16.msra.mxu0 %v1056
    %3258 = vmatprep.subr.bf16.mxu0 %v1063
    %3259 = vmatpush1.bf16.msra.mxu0 %v1062
    %3260 = vmatprep.subr.bf16.mxu0 %v1069
    %3261 = vmatpush1.bf16.msra.mxu0 %v1068
    %3262 = vmatprep.subr.bf16.mxu0 %v1075
    %3263 = vmatpush1.bf16.msra.mxu0 %v1074
    %3264 = vmatprep.subr.bf16.mxu0 %v1081
    %3265 = vmatpush1.bf16.msra.mxu0 %v1080
    %3266 = vmatprep.subr.bf16.mxu0 %v1087
    %3267 = vmatpush1.bf16.msra.mxu0 %v1086
    %3268 = vmatprep.subr.bf16.mxu0 %v1093
    %3269 = vmatpush1.bf16.msra.mxu0 %v1092
    %3270 = vmatprep.subr.bf16.mxu0 %v1099
    %3271 = vmatpush1.bf16.msra.mxu0 %v1098
    %3272 = vmatprep.subr.bf16.mxu0 %v1105
    %3273 = vmatpush1.bf16.msra.mxu0 %v1104
    %3274 = vmatprep.subr.bf16.mxu0 %v1111
    %3275 = vmatpush1.bf16.msra.mxu0 %v1110
    %3276 = vmatprep.subr.bf16.mxu0 %v1117
    %3277 = vmatpush1.bf16.msra.mxu0 %v1116
    %3278 = vmatprep.subr.bf16.mxu0 %v1123
    %3279 = vmatpush1.bf16.msra.mxu0 %v1122
    %3280 = vmatprep.subr.bf16.mxu0 %v1129
    %3281 = vmatpush1.bf16.msra.mxu0 %v1128
    %3282 = vmatprep.subr.bf16.mxu0 %v1135
    %3283 = vmatpush1.bf16.msra.mxu0 %v1134
    %3284 = vmatprep.subr.bf16.mxu0 %v1141
    %3285 = vmatpush1.bf16.msra.mxu0 %v1140
    %3286 = vmatprep.subr.bf16.mxu0 %v1147
    %3287 = vmatpush1.bf16.msra.mxu0 %v1146
    %3288 = vmatprep.mubr.bf16.mxu0 %v3185
    %3289 = vmatmul.mubr.bf16.gmra.mrb[0].mxu0 %v3212
    %v3290 = vpop.f32.mrb[0].mxu0
    %v3291 = vadd.f32 0.0, %v3290
    %v3292 = vpop.f32.mrb[0].mxu0
    %v3293 = vadd.f32 0.0, %v3292
    %v3294 = vpop.f32.mrb[0].mxu0
    %v3295 = vadd.f32 0.0, %v3294
    %v3296 = vpop.f32.mrb[0].mxu0
    %v3297 = vadd.f32 0.0, %v3296
    %3298 = vdwg.mxu0
    %3299 = vmatprep.subr.bf16.mxu0 %v1059
    %3300 = vmatpush1.bf16.msra.mxu0 %v1058
    %3301 = vmatprep.subr.bf16.mxu0 %v1065
    %3302 = vmatpush1.bf16.msra.mxu0 %v1064
    %3303 = vmatprep.subr.bf16.mxu0 %v1071
    %3304 = vmatpush1.bf16.msra.mxu0 %v1070
    %3305 = vmatprep.subr.bf16.mxu0 %v1077
    %3306 = vmatpush1.bf16.msra.mxu0 %v1076
    %3307 = vmatprep.subr.bf16.mxu0 %v1083
    %3308 = vmatpush1.bf16.msra.mxu0 %v1082
    %3309 = vmatprep.subr.bf16.mxu0 %v1089
    %3310 = vmatpush1.bf16.msra.mxu0 %v1088
    %3311 = vmatprep.subr.bf16.mxu0 %v1095
    %3312 = vmatpush1.bf16.msra.mxu0 %v1094
    %3313 = vmatprep.subr.bf16.mxu0 %v1101
    %3314 = vmatpush1.bf16.msra.mxu0 %v1100
    %3315 = vmatprep.subr.bf16.mxu0 %v1107
    %3316 = vmatpush1.bf16.msra.mxu0 %v1106
    %3317 = vmatprep.subr.bf16.mxu0 %v1113
    %3318 = vmatpush1.bf16.msra.mxu0 %v1112
    %3319 = vmatprep.subr.bf16.mxu0 %v1119
    %3320 = vmatpush1.bf16.msra.mxu0 %v1118
    %3321 = vmatprep.subr.bf16.mxu0 %v1125
    %3322 = vmatpush1.bf16.msra.mxu0 %v1124
    %3323 = vmatprep.subr.bf16.mxu0 %v1131
    %3324 = vmatpush1.bf16.msra.mxu0 %v1130
    %3325 = vmatprep.subr.bf16.mxu0 %v1137
    %3326 = vmatpush1.bf16.msra.mxu0 %v1136
    %3327 = vmatprep.subr.bf16.mxu0 %v1143
    %3328 = vmatpush1.bf16.msra.mxu0 %v1142
    %3329 = vmatprep.subr.bf16.mxu0 %v1149
    %3330 = vmatpush1.bf16.msra.mxu0 %v1148
    %3331 = vmatprep.mubr.bf16.mxu0 %v3185
    %3332 = vmatmul.mubr.bf16.gmra.mrb[0].mxu0 %v3212
    %v3333 = vpop.f32.mrb[0].mxu0
    %v3334 = vadd.f32 0.0, %v3333
    %v3335 = vpop.f32.mrb[0].mxu0
    %v3336 = vadd.f32 0.0, %v3335
    %v3337 = vpop.f32.mrb[0].mxu0
    %v3338 = vadd.f32 0.0, %v3337
    %v3339 = vpop.f32.mrb[0].mxu0
    %v3340 = vadd.f32 0.0, %v3339
    %3341 = vdwg.mxu0
    %v3342 = vadd.f32 %v538, %v3248
    %v3343 = vadd.f32 %v540, %v3250
    %v3344 = vadd.f32 %v581, %v3291
    %v3345 = vadd.f32 %v583, %v3293
    %v3346 = vadd.f32 %v624, %v3334
    %v3347 = vadd.f32 %v626, %v3336
    %v3348 = vadd.f32 %v542, %v3252
    %v3349 = vadd.f32 %v544, %v3254
    %v3350 = vadd.f32 %v585, %v3295
    %v3351 = vadd.f32 %v587, %v3297
    %v3352 = vadd.f32 %v628, %v3338
    %v3353 = vadd.f32 %v630, %v3340
    %v3354 = vmax.f32 %v3342, %v3343
    %v3355 = vmax.f32 %v3348, %v3349
    %v3356 = vmax.f32 %v3354, %v3344
    %v3357 = vmax.f32 %v3355, %v3350
    %v3358 = vsub.f32 %v3342, %v3356
    %v3359 = vsub.f32 %v3348, %v3357
    %v3360 = vmul.f32 %v3358, 1.442695
    %v3361 = vpow.pop %v3360
    %v3362 = vmul.f32 %v3359, 1.442695
    %v3363 = vpow.pop %v3362
    %v3364 = vsub.f32 %v3343, %v3356
    %v3365 = vsub.f32 %v3349, %v3357
    %v3366 = vmul.f32 %v3364, 1.442695
    %v3367 = vpow.pop %v3366
    %v3368 = vmul.f32 %v3365, 1.442695
    %v3369 = vpow.pop %v3368
    %v3370 = vsub.f32 %v3344, %v3356
    %v3371 = vsub.f32 %v3350, %v3357
    %v3372 = vmul.f32 %v3370, 1.442695
    %v3373 = vpow.pop %v3372
    %v3374 = vmul.f32 %v3371, 1.442695
    %v3375 = vpow.pop %v3374
    %v3376 = vadd.f32 %v3361, %v3367
    %v3377 = vadd.f32 %v3363, %v3369
    %v3378 = vadd.f32 %v3376, %v3373
    %v3379 = vadd.f32 %v3377, %v3375
    %v3380 = vrcp.pop %v3378
    %v3381 = vrcp.pop %v3379
    %v3382 = vmul.f32 %v3361, %v3380
    %v3383 = vmul.f32 %v3363, %v3381
    %v3384 = vmul.f32 %v3367, %v3380
    %v3385 = vmul.f32 %v3369, %v3381
    %v3386 = vmul.f32 %v3373, %v3380
    %v3387 = vmul.f32 %v3375, %v3381
    %v3388 = vxor.u32 %v3345, 2147483648
    %v3389 = vxor.u32 %v3351, 2147483648
    %v3390 = vmul.f32 %v3388, 1.442695
    %v3391 = vpow.pop %v3390
    %v3392 = vmul.f32 %v3389, 1.442695
    %v3393 = vpow.pop %v3392
    %v3394 = vadd.f32 %v3391, 1.0
    %v3395 = vadd.f32 %v3393, 1.0
    %v3396 = vrcp.pop %v3394
    %v3397 = vmul.f32 1.0, %v3396
    %v3398 = vrcp.pop %v3395
    %v3399 = vmul.f32 1.0, %v3398
    %v3400 = vtanh.pop %v3346
    %v3401 = vtanh.pop %v3352
    %v3402 = vxor.u32 %v3347, 2147483648
    %v3403 = vxor.u32 %v3353, 2147483648
    %v3404 = vmul.f32 %v3402, 1.442695
    %v3405 = vpow.pop %v3404
    %v3406 = vmul.f32 %v3403, 1.442695
    %v3407 = vpow.pop %v3406
    %v3408 = vadd.f32 %v3405, 1.0
    %v3409 = vadd.f32 %v3407, 1.0
    %v3410 = vrcp.pop %v3408
    %v3411 = vmul.f32 1.0, %v3410
    %v3412 = vrcp.pop %v3409
    %v3413 = vmul.f32 1.0, %v3412
    %v3414 = vmul.f32 %v3384, %v3069
    %v3415 = vmul.f32 %v3385, %v3070
    %v3416 = vmul.f32 %v3386, %v3179
    %v3417 = vmul.f32 %v3387, %v3180
    %v3418 = vadd.f32 %v3414, %v3416
    %v3419 = vadd.f32 %v3415, %v3417
    %v3420 = vmul.f32 %v3382, %v3400
    %v3421 = vmul.f32 %v3383, %v3401
    %v3422 = vadd.f32 %v3418, %v3420
    %v3423 = vadd.f32 %v3419, %v3421
    %v3424 = vmul.f32 %v3422, %v144
    %v3425 = vmul.f32 %v3423, %v149
    %v3426 = vtanh.pop %v3424
    %v3427 = vtanh.pop %v3425
    %v3428 = vmul.f32 %v3397, %v3426
    %v3429 = vmul.f32 %v3399, %v3427
    %v3430 = vmul.f32 %v3428, %v144
    %v3431 = vmul.f32 %v3429, %v149
    %v3432 = vmul.f32 %v3411, %v3424
    %v3433 = vmul.f32 %v3413, %v3425
    %v3434 = vrot.slane %v3430, 6
    %v3435 = vrot.slane %v3432, 6
    %v3436 = vrot.slane %v3431, 6
    %v3437 = vrot.slane %v3433, 6
    %v3438 = vsel %vm660, %v3434, %v3436
    %v3439 = vsel %vm660, %v3435, %v3437
    %v3440 = vsel %vm660, %v3436, %v3434
    %v3441 = vsel %vm660, %v3437, %v3435
    %v3442 = vadd.f32 %v3430, %v3440
    %v3443 = vadd.f32 %v3432, %v3441
    %v3444 = vadd.f32 %v3431, %v3438
    %v3445 = vadd.f32 %v3433, %v3439
    %v3446 = vrot.slane %v3442, 4
    %v3447 = vrot.slane %v3443, 4
    %v3448 = vrot.slane %v3444, 4
    %v3449 = vrot.slane %v3445, 4
    %v3450 = vsel %vm650, %v3446, %v3448
    %v3451 = vsel %vm650, %v3447, %v3449
    %v3452 = vsel %vm650, %v3448, %v3446
    %v3453 = vsel %vm650, %v3449, %v3447
    %v3454 = vadd.f32 %v3442, %v3452
    %v3455 = vadd.f32 %v3443, %v3453
    %v3456 = vadd.f32 %v3444, %v3450
    %v3457 = vadd.f32 %v3445, %v3451
    %v3458 = vadd.f32 %v3454, %v3456
    %v3459 = vadd.f32 %v3455, %v3457
    %v3460 = vmul.f32 %v3458, %v156
    %v3461 = vmul.f32 %v3459, %v156
    %v3462 = vmul.f32 %v3458, %v161
    %v3463 = vmul.f32 %v3459, %v161
    %v3464 = vpack.c.bf16 %v3462, %v3460
    %3465 = vmatprep.subr.bf16.mxu0 %v1627
    %3466 = vmatpush1.bf16.msra.mxu0 %v1626
    %3467 = vmatprep.subr.bf16.mxu0 %v1629
    %3468 = vmatpush1.bf16.msra.mxu0 %v1628
    %3469 = vmatprep.subr.bf16.mxu0 %v1631
    %3470 = vmatpush1.bf16.msra.mxu0 %v1630
    %3471 = vmatprep.subr.bf16.mxu0 %v1633
    %3472 = vmatpush1.bf16.msra.mxu0 %v1632
    %3473 = vmatprep.subr.bf16.mxu0 %v1635
    %3474 = vmatpush1.bf16.msra.mxu0 %v1634
    %3475 = vmatprep.subr.bf16.mxu0 %v1637
    %3476 = vmatpush1.bf16.msra.mxu0 %v1636
    %3477 = vmatprep.subr.bf16.mxu0 %v1639
    %3478 = vmatpush1.bf16.msra.mxu0 %v1638
    %3479 = vmatprep.subr.bf16.mxu0 %v1641
    %3480 = vmatpush1.bf16.msra.mxu0 %v1640
    %3481 = vmatprep.subr.bf16.mxu0 %v1643
    %3482 = vmatpush1.bf16.msra.mxu0 %v1642
    %3483 = vmatprep.subr.bf16.mxu0 %v1645
    %3484 = vmatpush1.bf16.msra.mxu0 %v1644
    %3485 = vmatprep.subr.bf16.mxu0 %v1647
    %3486 = vmatpush1.bf16.msra.mxu0 %v1646
    %3487 = vmatprep.subr.bf16.mxu0 %v1649
    %3488 = vmatpush1.bf16.msra.mxu0 %v1648
    %3489 = vmatprep.subr.bf16.mxu0 %v1651
    %3490 = vmatpush1.bf16.msra.mxu0 %v1650
    %3491 = vmatprep.subr.bf16.mxu0 %v1653
    %3492 = vmatpush1.bf16.msra.mxu0 %v1652
    %3493 = vmatprep.subr.bf16.mxu0 %v1655
    %3494 = vmatpush1.bf16.msra.mxu0 %v1654
    %3495 = vmatprep.subr.bf16.mxu0 %v1657
    %3496 = vmatpush1.bf16.msra.mxu0 %v1656
    %3497 = vmatprep.mubr.bf16.mxu0 %v3464
    %3498 = vmatmul.mubr.bf16.gmra.mrb[0].mxu0 %v3185
    %v3499 = vpop.f32.mrb[0].mxu0
    %v3500 = vadd.f32 %v168, %v3499
    %v3501 = vpop.f32.mrb[0].mxu0
    %v3502 = vadd.f32 %v172, %v3501
    %v3503 = vpop.f32.mrb[0].mxu0
    %v3504 = vadd.f32 %v168, %v3503
    %v3505 = vpop.f32.mrb[0].mxu0
    %v3506 = vadd.f32 %v172, %v3505
    %3507 = vdwg.mxu0
    %v3508 = vxor.u32 %v3500, 2147483648
    %v3509 = vxor.u32 %v3504, 2147483648
    %v3510 = vmul.f32 %v3508, 1.442695
    %v3511 = vpow.pop %v3510
    %v3512 = vmul.f32 %v3509, 1.442695
    %v3513 = vpow.pop %v3512
    %v3514 = vadd.f32 %v3511, 1.0
    %v3515 = vadd.f32 %v3513, 1.0
    %v3516 = vrcp.pop %v3514
    %v3517 = vmul.f32 1.0, %v3516
    %v3518 = vrcp.pop %v3515
    %v3519 = vmul.f32 1.0, %v3518
    %v3520 = vxor.u32 %v3502, 2147483648
    %v3521 = vxor.u32 %v3506, 2147483648
    %v3522 = vmul.f32 %v3520, 1.442695
    %v3523 = vpow.pop %v3522
    %v3524 = vmul.f32 %v3521, 1.442695
    %v3525 = vpow.pop %v3524
    %v3526 = vadd.f32 %v3523, 1.0
    %v3527 = vadd.f32 %v3525, 1.0
    %v3528 = vrcp.pop %v3526
    %v3529 = vmul.f32 1.0, %v3528
    %v3530 = vrcp.pop %v3527
    %v3531 = vmul.f32 1.0, %v3530
    %v3532 = vmul.f32 %v3517, %v3179
    %v3533 = vmul.f32 %v3519, %v3180
    %v3534 = vadd.f32 %v3532, %v3461
    %v3535 = vadd.f32 %v3533, %v3463
    %v3536 = vtanh.pop %v3534
    %v3537 = vtanh.pop %v3535
    %v3538 = vmul.f32 %v3529, %v3536
    %v3539 = vmul.f32 %v3531, %v3537
    %v3540 = vpack.c.bf16 %v3539, %v3538
    %v3541 = vmul.f32 %v3430, %v632
    %v3542 = vmul.f32 %v3431, %v633
    %v3543 = vrot.slane %v3430, 4
    %v3544 = vrot.slane %v3431, 4
    %v3545 = vsel %vm650, %v3543, %v3544
    %v3546 = vsel %vm650, %v3544, %v3543
    %v3547 = vmul.f32 %v3545, %v635
    %v3548 = vmul.f32 %v3546, %v636
    %v3549 = vadd.f32 %v3541, %v3547
    %v3550 = vadd.f32 %v3542, %v3548
    %v3551 = vrot.slane %v3430, 2
    %v3552 = vrot.slane %v3431, 2
    %v3553 = vsel %vm655, %v3551, %v3552
    %v3554 = vsel %vm655, %v3552, %v3551
    %v3555 = vmul.f32 %v3553, %v638
    %v3556 = vmul.f32 %v3554, %v639
    %v3557 = vadd.f32 %v3549, %v3555
    %v3558 = vadd.f32 %v3550, %v3556
    %v3559 = vmul.f32 %v3440, %v641
    %v3560 = vmul.f32 %v3438, %v642
    %v3561 = vadd.f32 %v3557, %v3559
    %v3562 = vadd.f32 %v3558, %v3560
    %v3563 = vmul.f32 %v3546, %v644
    %v3564 = vmul.f32 %v3545, %v645
    %v3565 = vadd.f32 %v3561, %v3563
    %v3566 = vadd.f32 %v3562, %v3564
    %v3567 = vpack.c.bf16 %v3566, %v3565
    %3568 = vmatprep.subr.bf16.mxu0 %v1055
    %3569 = vmatpush1.bf16.msra.mxu0 %v1054
    %3570 = vmatprep.subr.bf16.mxu0 %v1061
    %3571 = vmatpush1.bf16.msra.mxu0 %v1060
    %3572 = vmatprep.subr.bf16.mxu0 %v1067
    %3573 = vmatpush1.bf16.msra.mxu0 %v1066
    %3574 = vmatprep.subr.bf16.mxu0 %v1073
    %3575 = vmatpush1.bf16.msra.mxu0 %v1072
    %3576 = vmatprep.subr.bf16.mxu0 %v1079
    %3577 = vmatpush1.bf16.msra.mxu0 %v1078
    %3578 = vmatprep.subr.bf16.mxu0 %v1085
    %3579 = vmatpush1.bf16.msra.mxu0 %v1084
    %3580 = vmatprep.subr.bf16.mxu0 %v1091
    %3581 = vmatpush1.bf16.msra.mxu0 %v1090
    %3582 = vmatprep.subr.bf16.mxu0 %v1097
    %3583 = vmatpush1.bf16.msra.mxu0 %v1096
    %3584 = vmatprep.subr.bf16.mxu0 %v1103
    %3585 = vmatpush1.bf16.msra.mxu0 %v1102
    %3586 = vmatprep.subr.bf16.mxu0 %v1109
    %3587 = vmatpush1.bf16.msra.mxu0 %v1108
    %3588 = vmatprep.subr.bf16.mxu0 %v1115
    %3589 = vmatpush1.bf16.msra.mxu0 %v1114
    %3590 = vmatprep.subr.bf16.mxu0 %v1121
    %3591 = vmatpush1.bf16.msra.mxu0 %v1120
    %3592 = vmatprep.subr.bf16.mxu0 %v1127
    %3593 = vmatpush1.bf16.msra.mxu0 %v1126
    %3594 = vmatprep.subr.bf16.mxu0 %v1133
    %3595 = vmatpush1.bf16.msra.mxu0 %v1132
    %3596 = vmatprep.subr.bf16.mxu0 %v1139
    %3597 = vmatpush1.bf16.msra.mxu0 %v1138
    %3598 = vmatprep.subr.bf16.mxu0 %v1145
    %3599 = vmatpush1.bf16.msra.mxu0 %v1144
    %3600 = vmatprep.mubr.bf16.mxu0 %v3540
    %3601 = vmatmul.mubr.bf16.gmra.mrb[0].mxu0 %v3567
    %v3602 = vpop.f32.mrb[0].mxu0
    %v3603 = vadd.f32 0.0, %v3602
    %v3604 = vpop.f32.mrb[0].mxu0
    %v3605 = vadd.f32 0.0, %v3604
    %v3606 = vpop.f32.mrb[0].mxu0
    %v3607 = vadd.f32 0.0, %v3606
    %v3608 = vpop.f32.mrb[0].mxu0
    %v3609 = vadd.f32 0.0, %v3608
    %3610 = vdwg.mxu0
    %3611 = vmatprep.subr.bf16.mxu0 %v1057
    %3612 = vmatpush1.bf16.msra.mxu0 %v1056
    %3613 = vmatprep.subr.bf16.mxu0 %v1063
    %3614 = vmatpush1.bf16.msra.mxu0 %v1062
    %3615 = vmatprep.subr.bf16.mxu0 %v1069
    %3616 = vmatpush1.bf16.msra.mxu0 %v1068
    %3617 = vmatprep.subr.bf16.mxu0 %v1075
    %3618 = vmatpush1.bf16.msra.mxu0 %v1074
    %3619 = vmatprep.subr.bf16.mxu0 %v1081
    %3620 = vmatpush1.bf16.msra.mxu0 %v1080
    %3621 = vmatprep.subr.bf16.mxu0 %v1087
    %3622 = vmatpush1.bf16.msra.mxu0 %v1086
    %3623 = vmatprep.subr.bf16.mxu0 %v1093
    %3624 = vmatpush1.bf16.msra.mxu0 %v1092
    %3625 = vmatprep.subr.bf16.mxu0 %v1099
    %3626 = vmatpush1.bf16.msra.mxu0 %v1098
    %3627 = vmatprep.subr.bf16.mxu0 %v1105
    %3628 = vmatpush1.bf16.msra.mxu0 %v1104
    %3629 = vmatprep.subr.bf16.mxu0 %v1111
    %3630 = vmatpush1.bf16.msra.mxu0 %v1110
    %3631 = vmatprep.subr.bf16.mxu0 %v1117
    %3632 = vmatpush1.bf16.msra.mxu0 %v1116
    %3633 = vmatprep.subr.bf16.mxu0 %v1123
    %3634 = vmatpush1.bf16.msra.mxu0 %v1122
    %3635 = vmatprep.subr.bf16.mxu0 %v1129
    %3636 = vmatpush1.bf16.msra.mxu0 %v1128
    %3637 = vmatprep.subr.bf16.mxu0 %v1135
    %3638 = vmatpush1.bf16.msra.mxu0 %v1134
    %3639 = vmatprep.subr.bf16.mxu0 %v1141
    %3640 = vmatpush1.bf16.msra.mxu0 %v1140
    %3641 = vmatprep.subr.bf16.mxu0 %v1147
    %3642 = vmatpush1.bf16.msra.mxu0 %v1146
    %3643 = vmatprep.mubr.bf16.mxu0 %v3540
    %3644 = vmatmul.mubr.bf16.gmra.mrb[0].mxu0 %v3567
    %v3645 = vpop.f32.mrb[0].mxu0
    %v3646 = vadd.f32 0.0, %v3645
    %v3647 = vpop.f32.mrb[0].mxu0
    %v3648 = vadd.f32 0.0, %v3647
    %v3649 = vpop.f32.mrb[0].mxu0
    %v3650 = vadd.f32 0.0, %v3649
    %v3651 = vpop.f32.mrb[0].mxu0
    %v3652 = vadd.f32 0.0, %v3651
    %3653 = vdwg.mxu0
    %3654 = vmatprep.subr.bf16.mxu0 %v1059
    %3655 = vmatpush1.bf16.msra.mxu0 %v1058
    %3656 = vmatprep.subr.bf16.mxu0 %v1065
    %3657 = vmatpush1.bf16.msra.mxu0 %v1064
    %3658 = vmatprep.subr.bf16.mxu0 %v1071
    %3659 = vmatpush1.bf16.msra.mxu0 %v1070
    %3660 = vmatprep.subr.bf16.mxu0 %v1077
    %3661 = vmatpush1.bf16.msra.mxu0 %v1076
    %3662 = vmatprep.subr.bf16.mxu0 %v1083
    %3663 = vmatpush1.bf16.msra.mxu0 %v1082
    %3664 = vmatprep.subr.bf16.mxu0 %v1089
    %3665 = vmatpush1.bf16.msra.mxu0 %v1088
    %3666 = vmatprep.subr.bf16.mxu0 %v1095
    %3667 = vmatpush1.bf16.msra.mxu0 %v1094
    %3668 = vmatprep.subr.bf16.mxu0 %v1101
    %3669 = vmatpush1.bf16.msra.mxu0 %v1100
    %3670 = vmatprep.subr.bf16.mxu0 %v1107
    %3671 = vmatpush1.bf16.msra.mxu0 %v1106
    %3672 = vmatprep.subr.bf16.mxu0 %v1113
    %3673 = vmatpush1.bf16.msra.mxu0 %v1112
    %3674 = vmatprep.subr.bf16.mxu0 %v1119
    %3675 = vmatpush1.bf16.msra.mxu0 %v1118
    %3676 = vmatprep.subr.bf16.mxu0 %v1125
    %3677 = vmatpush1.bf16.msra.mxu0 %v1124
    %3678 = vmatprep.subr.bf16.mxu0 %v1131
    %3679 = vmatpush1.bf16.msra.mxu0 %v1130
    %3680 = vmatprep.subr.bf16.mxu0 %v1137
    %3681 = vmatpush1.bf16.msra.mxu0 %v1136
    %3682 = vmatprep.subr.bf16.mxu0 %v1143
    %3683 = vmatpush1.bf16.msra.mxu0 %v1142
    %3684 = vmatprep.subr.bf16.mxu0 %v1149
    %3685 = vmatpush1.bf16.msra.mxu0 %v1148
    %3686 = vmatprep.mubr.bf16.mxu0 %v3540
    %3687 = vmatmul.mubr.bf16.gmra.mrb[0].mxu0 %v3567
    %v3688 = vpop.f32.mrb[0].mxu0
    %v3689 = vadd.f32 0.0, %v3688
    %v3690 = vpop.f32.mrb[0].mxu0
    %v3691 = vadd.f32 0.0, %v3690
    %v3692 = vpop.f32.mrb[0].mxu0
    %v3693 = vadd.f32 0.0, %v3692
    %v3694 = vpop.f32.mrb[0].mxu0
    %v3695 = vadd.f32 0.0, %v3694
    %3696 = vdwg.mxu0
    %v3697 = vadd.f32 %v538, %v3603
    %v3698 = vadd.f32 %v540, %v3605
    %v3699 = vadd.f32 %v581, %v3646
    %v3700 = vadd.f32 %v583, %v3648
    %v3701 = vadd.f32 %v624, %v3689
    %v3702 = vadd.f32 %v626, %v3691
    %v3703 = vadd.f32 %v542, %v3607
    %v3704 = vadd.f32 %v544, %v3609
    %v3705 = vadd.f32 %v585, %v3650
    %v3706 = vadd.f32 %v587, %v3652
    %v3707 = vadd.f32 %v628, %v3693
    %v3708 = vadd.f32 %v630, %v3695
    %v3709 = vmax.f32 %v3697, %v3698
    %v3710 = vmax.f32 %v3703, %v3704
    %v3711 = vmax.f32 %v3709, %v3699
    %v3712 = vmax.f32 %v3710, %v3705
    %v3713 = vsub.f32 %v3697, %v3711
    %v3714 = vsub.f32 %v3703, %v3712
    %v3715 = vmul.f32 %v3713, 1.442695
    %v3716 = vpow.pop %v3715
    %v3717 = vmul.f32 %v3714, 1.442695
    %v3718 = vpow.pop %v3717
    %v3719 = vsub.f32 %v3698, %v3711
    %v3720 = vsub.f32 %v3704, %v3712
    %v3721 = vmul.f32 %v3719, 1.442695
    %v3722 = vpow.pop %v3721
    %v3723 = vmul.f32 %v3720, 1.442695
    %v3724 = vpow.pop %v3723
    %v3725 = vsub.f32 %v3699, %v3711
    %v3726 = vsub.f32 %v3705, %v3712
    %v3727 = vmul.f32 %v3725, 1.442695
    %v3728 = vpow.pop %v3727
    %v3729 = vmul.f32 %v3726, 1.442695
    %v3730 = vpow.pop %v3729
    %v3731 = vadd.f32 %v3716, %v3722
    %v3732 = vadd.f32 %v3718, %v3724
    %v3733 = vadd.f32 %v3731, %v3728
    %v3734 = vadd.f32 %v3732, %v3730
    %v3735 = vrcp.pop %v3733
    %v3736 = vrcp.pop %v3734
    %v3737 = vmul.f32 %v3716, %v3735
    %v3738 = vmul.f32 %v3718, %v3736
    %v3739 = vmul.f32 %v3722, %v3735
    %v3740 = vmul.f32 %v3724, %v3736
    %v3741 = vmul.f32 %v3728, %v3735
    %v3742 = vmul.f32 %v3730, %v3736
    %v3743 = vxor.u32 %v3700, 2147483648
    %v3744 = vxor.u32 %v3706, 2147483648
    %v3745 = vmul.f32 %v3743, 1.442695
    %v3746 = vpow.pop %v3745
    %v3747 = vmul.f32 %v3744, 1.442695
    %v3748 = vpow.pop %v3747
    %v3749 = vadd.f32 %v3746, 1.0
    %v3750 = vadd.f32 %v3748, 1.0
    %v3751 = vrcp.pop %v3749
    %v3752 = vmul.f32 1.0, %v3751
    %v3753 = vrcp.pop %v3750
    %v3754 = vmul.f32 1.0, %v3753
    %v3755 = vtanh.pop %v3701
    %v3756 = vtanh.pop %v3707
    %v3757 = vxor.u32 %v3702, 2147483648
    %v3758 = vxor.u32 %v3708, 2147483648
    %v3759 = vmul.f32 %v3757, 1.442695
    %v3760 = vpow.pop %v3759
    %v3761 = vmul.f32 %v3758, 1.442695
    %v3762 = vpow.pop %v3761
    %v3763 = vadd.f32 %v3760, 1.0
    %v3764 = vadd.f32 %v3762, 1.0
    %v3765 = vrcp.pop %v3763
    %v3766 = vmul.f32 1.0, %v3765
    %v3767 = vrcp.pop %v3764
    %v3768 = vmul.f32 1.0, %v3767
    %v3769 = vmul.f32 %v3739, %v3424
    %v3770 = vmul.f32 %v3740, %v3425
    %v3771 = vmul.f32 %v3741, %v3534
    %v3772 = vmul.f32 %v3742, %v3535
    %v3773 = vadd.f32 %v3769, %v3771
    %v3774 = vadd.f32 %v3770, %v3772
    %v3775 = vmul.f32 %v3737, %v3755
    %v3776 = vmul.f32 %v3738, %v3756
    %v3777 = vadd.f32 %v3773, %v3775
    %v3778 = vadd.f32 %v3774, %v3776
    %v3779 = vmul.f32 %v3777, %v144
    %v3780 = vmul.f32 %v3778, %v149
    %v3781 = vtanh.pop %v3779
    %v3782 = vtanh.pop %v3780
    %v3783 = vmul.f32 %v3752, %v3781
    %v3784 = vmul.f32 %v3754, %v3782
    %v3785 = vmul.f32 %v3783, %v144
    %v3786 = vmul.f32 %v3784, %v149
    %v3787 = vmul.f32 %v3766, %v3779
    %v3788 = vmul.f32 %v3768, %v3780
    %v3789 = vrot.slane %v3785, 6
    %v3790 = vrot.slane %v3787, 6
    %v3791 = vrot.slane %v3786, 6
    %v3792 = vrot.slane %v3788, 6
    %v3793 = vsel %vm660, %v3789, %v3791
    %v3794 = vsel %vm660, %v3790, %v3792
    %v3795 = vsel %vm660, %v3791, %v3789
    %v3796 = vsel %vm660, %v3792, %v3790
    %v3797 = vadd.f32 %v3785, %v3795
    %v3798 = vadd.f32 %v3787, %v3796
    %v3799 = vadd.f32 %v3786, %v3793
    %v3800 = vadd.f32 %v3788, %v3794
    %v3801 = vrot.slane %v3797, 4
    %v3802 = vrot.slane %v3798, 4
    %v3803 = vrot.slane %v3799, 4
    %v3804 = vrot.slane %v3800, 4
    %v3805 = vsel %vm650, %v3801, %v3803
    %v3806 = vsel %vm650, %v3802, %v3804
    %v3807 = vsel %vm650, %v3803, %v3801
    %v3808 = vsel %vm650, %v3804, %v3802
    %v3809 = vadd.f32 %v3797, %v3807
    %v3810 = vadd.f32 %v3798, %v3808
    %v3811 = vadd.f32 %v3799, %v3805
    %v3812 = vadd.f32 %v3800, %v3806
    %v3813 = vadd.f32 %v3809, %v3811
    %v3814 = vadd.f32 %v3810, %v3812
    %v3815 = vmul.f32 %v3813, %v156
    %v3816 = vmul.f32 %v3814, %v156
    %v3817 = vmul.f32 %v3813, %v161
    %v3818 = vmul.f32 %v3814, %v161
    %v3819 = vpack.c.bf16 %v3817, %v3815
    %3820 = vmatprep.subr.bf16.mxu0 %v1627
    %3821 = vmatpush1.bf16.msra.mxu0 %v1626
    %3822 = vmatprep.subr.bf16.mxu0 %v1629
    %3823 = vmatpush1.bf16.msra.mxu0 %v1628
    %3824 = vmatprep.subr.bf16.mxu0 %v1631
    %3825 = vmatpush1.bf16.msra.mxu0 %v1630
    %3826 = vmatprep.subr.bf16.mxu0 %v1633
    %3827 = vmatpush1.bf16.msra.mxu0 %v1632
    %3828 = vmatprep.subr.bf16.mxu0 %v1635
    %3829 = vmatpush1.bf16.msra.mxu0 %v1634
    %3830 = vmatprep.subr.bf16.mxu0 %v1637
    %3831 = vmatpush1.bf16.msra.mxu0 %v1636
    %3832 = vmatprep.subr.bf16.mxu0 %v1639
    %3833 = vmatpush1.bf16.msra.mxu0 %v1638
    %3834 = vmatprep.subr.bf16.mxu0 %v1641
    %3835 = vmatpush1.bf16.msra.mxu0 %v1640
    %3836 = vmatprep.subr.bf16.mxu0 %v1643
    %3837 = vmatpush1.bf16.msra.mxu0 %v1642
    %3838 = vmatprep.subr.bf16.mxu0 %v1645
    %3839 = vmatpush1.bf16.msra.mxu0 %v1644
    %3840 = vmatprep.subr.bf16.mxu0 %v1647
    %3841 = vmatpush1.bf16.msra.mxu0 %v1646
    %3842 = vmatprep.subr.bf16.mxu0 %v1649
    %3843 = vmatpush1.bf16.msra.mxu0 %v1648
    %3844 = vmatprep.subr.bf16.mxu0 %v1651
    %3845 = vmatpush1.bf16.msra.mxu0 %v1650
    %3846 = vmatprep.subr.bf16.mxu0 %v1653
    %3847 = vmatpush1.bf16.msra.mxu0 %v1652
    %3848 = vmatprep.subr.bf16.mxu0 %v1655
    %3849 = vmatpush1.bf16.msra.mxu0 %v1654
    %3850 = vmatprep.subr.bf16.mxu0 %v1657
    %3851 = vmatpush1.bf16.msra.mxu0 %v1656
    %3852 = vmatprep.mubr.bf16.mxu0 %v3819
    %3853 = vmatmul.mubr.bf16.gmra.mrb[0].mxu0 %v3540
    %v3854 = vpop.f32.mrb[0].mxu0
    %v3855 = vadd.f32 %v168, %v3854
    %v3856 = vpop.f32.mrb[0].mxu0
    %v3857 = vadd.f32 %v172, %v3856
    %v3858 = vpop.f32.mrb[0].mxu0
    %v3859 = vadd.f32 %v168, %v3858
    %v3860 = vpop.f32.mrb[0].mxu0
    %v3861 = vadd.f32 %v172, %v3860
    %3862 = vdwg.mxu0
    %v3863 = vxor.u32 %v3855, 2147483648
    %v3864 = vxor.u32 %v3859, 2147483648
    %v3865 = vmul.f32 %v3863, 1.442695
    %v3866 = vpow.pop %v3865
    %v3867 = vmul.f32 %v3864, 1.442695
    %v3868 = vpow.pop %v3867
    %v3869 = vadd.f32 %v3866, 1.0
    %v3870 = vadd.f32 %v3868, 1.0
    %v3871 = vrcp.pop %v3869
    %v3872 = vmul.f32 1.0, %v3871
    %v3873 = vrcp.pop %v3870
    %v3874 = vmul.f32 1.0, %v3873
    %v3875 = vxor.u32 %v3857, 2147483648
    %v3876 = vxor.u32 %v3861, 2147483648
    %v3877 = vmul.f32 %v3875, 1.442695
    %v3878 = vpow.pop %v3877
    %v3879 = vmul.f32 %v3876, 1.442695
    %v3880 = vpow.pop %v3879
    %v3881 = vadd.f32 %v3878, 1.0
    %v3882 = vadd.f32 %v3880, 1.0
    %v3883 = vrcp.pop %v3881
    %v3884 = vmul.f32 1.0, %v3883
    %v3885 = vrcp.pop %v3882
    %v3886 = vmul.f32 1.0, %v3885
    %v3887 = vmul.f32 %v3872, %v3534
    %v3888 = vmul.f32 %v3874, %v3535
    %v3889 = vadd.f32 %v3887, %v3816
    %v3890 = vadd.f32 %v3888, %v3818
    %v3891 = vtanh.pop %v3889
    %v3892 = vtanh.pop %v3890
    %v3893 = vmul.f32 %v3884, %v3891
    %v3894 = vmul.f32 %v3886, %v3892
    %v3895 = vpack.c.bf16 %v3894, %v3893
    %v3896 = vmul.f32 %v3785, %v632
    %v3897 = vmul.f32 %v3786, %v633
    %v3898 = vrot.slane %v3785, 4
    %v3899 = vrot.slane %v3786, 4
    %v3900 = vsel %vm650, %v3898, %v3899
    %v3901 = vsel %vm650, %v3899, %v3898
    %v3902 = vmul.f32 %v3900, %v635
    %v3903 = vmul.f32 %v3901, %v636
    %v3904 = vadd.f32 %v3896, %v3902
    %v3905 = vadd.f32 %v3897, %v3903
    %v3906 = vrot.slane %v3785, 2
    %v3907 = vrot.slane %v3786, 2
    %v3908 = vsel %vm655, %v3906, %v3907
    %v3909 = vsel %vm655, %v3907, %v3906
    %v3910 = vmul.f32 %v3908, %v638
    %v3911 = vmul.f32 %v3909, %v639
    %v3912 = vadd.f32 %v3904, %v3910
    %v3913 = vadd.f32 %v3905, %v3911
    %v3914 = vmul.f32 %v3795, %v641
    %v3915 = vmul.f32 %v3793, %v642
    %v3916 = vadd.f32 %v3912, %v3914
    %v3917 = vadd.f32 %v3913, %v3915
    %v3918 = vmul.f32 %v3901, %v644
    %v3919 = vmul.f32 %v3900, %v645
    %v3920 = vadd.f32 %v3916, %v3918
    %v3921 = vadd.f32 %v3917, %v3919
    %v3922 = vpack.c.bf16 %v3921, %v3920
    %3923 = vmatprep.subr.bf16.mxu0 %v1055
    %3924 = vmatpush1.bf16.msra.mxu0 %v1054
    %3925 = vmatprep.subr.bf16.mxu0 %v1061
    %3926 = vmatpush1.bf16.msra.mxu0 %v1060
    %3927 = vmatprep.subr.bf16.mxu0 %v1067
    %3928 = vmatpush1.bf16.msra.mxu0 %v1066
    %3929 = vmatprep.subr.bf16.mxu0 %v1073
    %3930 = vmatpush1.bf16.msra.mxu0 %v1072
    %3931 = vmatprep.subr.bf16.mxu0 %v1079
    %3932 = vmatpush1.bf16.msra.mxu0 %v1078
    %3933 = vmatprep.subr.bf16.mxu0 %v1085
    %3934 = vmatpush1.bf16.msra.mxu0 %v1084
    %3935 = vmatprep.subr.bf16.mxu0 %v1091
    %3936 = vmatpush1.bf16.msra.mxu0 %v1090
    %3937 = vmatprep.subr.bf16.mxu0 %v1097
    %3938 = vmatpush1.bf16.msra.mxu0 %v1096
    %3939 = vmatprep.subr.bf16.mxu0 %v1103
    %3940 = vmatpush1.bf16.msra.mxu0 %v1102
    %3941 = vmatprep.subr.bf16.mxu0 %v1109
    %3942 = vmatpush1.bf16.msra.mxu0 %v1108
    %3943 = vmatprep.subr.bf16.mxu0 %v1115
    %3944 = vmatpush1.bf16.msra.mxu0 %v1114
    %3945 = vmatprep.subr.bf16.mxu0 %v1121
    %3946 = vmatpush1.bf16.msra.mxu0 %v1120
    %3947 = vmatprep.subr.bf16.mxu0 %v1127
    %3948 = vmatpush1.bf16.msra.mxu0 %v1126
    %3949 = vmatprep.subr.bf16.mxu0 %v1133
    %3950 = vmatpush1.bf16.msra.mxu0 %v1132
    %3951 = vmatprep.subr.bf16.mxu0 %v1139
    %3952 = vmatpush1.bf16.msra.mxu0 %v1138
    %3953 = vmatprep.subr.bf16.mxu0 %v1145
    %3954 = vmatpush1.bf16.msra.mxu0 %v1144
    %3955 = vmatprep.mubr.bf16.mxu0 %v3895
    %3956 = vmatmul.mubr.bf16.gmra.mrb[0].mxu0 %v3922
    %v3957 = vpop.f32.mrb[0].mxu0
    %v3958 = vadd.f32 0.0, %v3957
    %v3959 = vpop.f32.mrb[0].mxu0
    %v3960 = vadd.f32 0.0, %v3959
    %v3961 = vpop.f32.mrb[0].mxu0
    %v3962 = vadd.f32 0.0, %v3961
    %v3963 = vpop.f32.mrb[0].mxu0
    %v3964 = vadd.f32 0.0, %v3963
    %3965 = vdwg.mxu0
    %3966 = vmatprep.subr.bf16.mxu0 %v1057
    %3967 = vmatpush1.bf16.msra.mxu0 %v1056
    %3968 = vmatprep.subr.bf16.mxu0 %v1063
    %3969 = vmatpush1.bf16.msra.mxu0 %v1062
    %3970 = vmatprep.subr.bf16.mxu0 %v1069
    %3971 = vmatpush1.bf16.msra.mxu0 %v1068
    %3972 = vmatprep.subr.bf16.mxu0 %v1075
    %3973 = vmatpush1.bf16.msra.mxu0 %v1074
    %3974 = vmatprep.subr.bf16.mxu0 %v1081
    %3975 = vmatpush1.bf16.msra.mxu0 %v1080
    %3976 = vmatprep.subr.bf16.mxu0 %v1087
    %3977 = vmatpush1.bf16.msra.mxu0 %v1086
    %3978 = vmatprep.subr.bf16.mxu0 %v1093
    %3979 = vmatpush1.bf16.msra.mxu0 %v1092
    %3980 = vmatprep.subr.bf16.mxu0 %v1099
    %3981 = vmatpush1.bf16.msra.mxu0 %v1098
    %3982 = vmatprep.subr.bf16.mxu0 %v1105
    %3983 = vmatpush1.bf16.msra.mxu0 %v1104
    %3984 = vmatprep.subr.bf16.mxu0 %v1111
    %3985 = vmatpush1.bf16.msra.mxu0 %v1110
    %3986 = vmatprep.subr.bf16.mxu0 %v1117
    %3987 = vmatpush1.bf16.msra.mxu0 %v1116
    %3988 = vmatprep.subr.bf16.mxu0 %v1123
    %3989 = vmatpush1.bf16.msra.mxu0 %v1122
    %3990 = vmatprep.subr.bf16.mxu0 %v1129
    %3991 = vmatpush1.bf16.msra.mxu0 %v1128
    %3992 = vmatprep.subr.bf16.mxu0 %v1135
    %3993 = vmatpush1.bf16.msra.mxu0 %v1134
    %3994 = vmatprep.subr.bf16.mxu0 %v1141
    %3995 = vmatpush1.bf16.msra.mxu0 %v1140
    %3996 = vmatprep.subr.bf16.mxu0 %v1147
    %3997 = vmatpush1.bf16.msra.mxu0 %v1146
    %3998 = vmatprep.mubr.bf16.mxu0 %v3895
    %3999 = vmatmul.mubr.bf16.gmra.mrb[0].mxu0 %v3922
    %v4000 = vpop.f32.mrb[0].mxu0
    %v4001 = vadd.f32 0.0, %v4000
    %v4002 = vpop.f32.mrb[0].mxu0
    %v4003 = vadd.f32 0.0, %v4002
    %v4004 = vpop.f32.mrb[0].mxu0
    %v4005 = vadd.f32 0.0, %v4004
    %v4006 = vpop.f32.mrb[0].mxu0
    %v4007 = vadd.f32 0.0, %v4006
    %4008 = vdwg.mxu0
    %4009 = vmatprep.subr.bf16.mxu0 %v1059
    %4010 = vmatpush1.bf16.msra.mxu0 %v1058
    %4011 = vmatprep.subr.bf16.mxu0 %v1065
    %4012 = vmatpush1.bf16.msra.mxu0 %v1064
    %4013 = vmatprep.subr.bf16.mxu0 %v1071
    %4014 = vmatpush1.bf16.msra.mxu0 %v1070
    %4015 = vmatprep.subr.bf16.mxu0 %v1077
    %4016 = vmatpush1.bf16.msra.mxu0 %v1076
    %4017 = vmatprep.subr.bf16.mxu0 %v1083
    %4018 = vmatpush1.bf16.msra.mxu0 %v1082
    %4019 = vmatprep.subr.bf16.mxu0 %v1089
    %4020 = vmatpush1.bf16.msra.mxu0 %v1088
    %4021 = vmatprep.subr.bf16.mxu0 %v1095
    %4022 = vmatpush1.bf16.msra.mxu0 %v1094
    %4023 = vmatprep.subr.bf16.mxu0 %v1101
    %4024 = vmatpush1.bf16.msra.mxu0 %v1100
    %4025 = vmatprep.subr.bf16.mxu0 %v1107
    %4026 = vmatpush1.bf16.msra.mxu0 %v1106
    %4027 = vmatprep.subr.bf16.mxu0 %v1113
    %4028 = vmatpush1.bf16.msra.mxu0 %v1112
    %4029 = vmatprep.subr.bf16.mxu0 %v1119
    %4030 = vmatpush1.bf16.msra.mxu0 %v1118
    %4031 = vmatprep.subr.bf16.mxu0 %v1125
    %4032 = vmatpush1.bf16.msra.mxu0 %v1124
    %4033 = vmatprep.subr.bf16.mxu0 %v1131
    %4034 = vmatpush1.bf16.msra.mxu0 %v1130
    %4035 = vmatprep.subr.bf16.mxu0 %v1137
    %4036 = vmatpush1.bf16.msra.mxu0 %v1136
    %4037 = vmatprep.subr.bf16.mxu0 %v1143
    %4038 = vmatpush1.bf16.msra.mxu0 %v1142
    %4039 = vmatprep.subr.bf16.mxu0 %v1149
    %4040 = vmatpush1.bf16.msra.mxu0 %v1148
    %4041 = vmatprep.mubr.bf16.mxu0 %v3895
    %4042 = vmatmul.mubr.bf16.gmra.mrb[0].mxu0 %v3922
    %v4043 = vpop.f32.mrb[0].mxu0
    %v4044 = vadd.f32 0.0, %v4043
    %v4045 = vpop.f32.mrb[0].mxu0
    %v4046 = vadd.f32 0.0, %v4045
    %v4047 = vpop.f32.mrb[0].mxu0
    %v4048 = vadd.f32 0.0, %v4047
    %v4049 = vpop.f32.mrb[0].mxu0
    %v4050 = vadd.f32 0.0, %v4049
    %4051 = vdwg.mxu0
    %v4052 = vadd.f32 %v538, %v3958
    %v4053 = vadd.f32 %v540, %v3960
    %v4054 = vadd.f32 %v581, %v4001
    %v4055 = vadd.f32 %v583, %v4003
    %v4056 = vadd.f32 %v624, %v4044
    %v4057 = vadd.f32 %v626, %v4046
    %v4058 = vadd.f32 %v542, %v3962
    %v4059 = vadd.f32 %v544, %v3964
    %v4060 = vadd.f32 %v585, %v4005
    %v4061 = vadd.f32 %v587, %v4007
    %v4062 = vadd.f32 %v628, %v4048
    %v4063 = vadd.f32 %v630, %v4050
    %v4064 = vmax.f32 %v4052, %v4053
    %v4065 = vmax.f32 %v4058, %v4059
    %v4066 = vmax.f32 %v4064, %v4054
    %v4067 = vmax.f32 %v4065, %v4060
    %v4068 = vsub.f32 %v4052, %v4066
    %v4069 = vsub.f32 %v4058, %v4067
    %v4070 = vmul.f32 %v4068, 1.442695
    %v4071 = vpow.pop %v4070
    %v4072 = vmul.f32 %v4069, 1.442695
    %v4073 = vpow.pop %v4072
    %v4074 = vsub.f32 %v4053, %v4066
    %v4075 = vsub.f32 %v4059, %v4067
    %v4076 = vmul.f32 %v4074, 1.442695
    %v4077 = vpow.pop %v4076
    %v4078 = vmul.f32 %v4075, 1.442695
    %v4079 = vpow.pop %v4078
    %v4080 = vsub.f32 %v4054, %v4066
    %v4081 = vsub.f32 %v4060, %v4067
    %v4082 = vmul.f32 %v4080, 1.442695
    %v4083 = vpow.pop %v4082
    %v4084 = vmul.f32 %v4081, 1.442695
    %v4085 = vpow.pop %v4084
    %v4086 = vadd.f32 %v4071, %v4077
    %v4087 = vadd.f32 %v4073, %v4079
    %v4088 = vadd.f32 %v4086, %v4083
    %v4089 = vadd.f32 %v4087, %v4085
    %v4090 = vrcp.pop %v4088
    %v4091 = vrcp.pop %v4089
    %v4092 = vmul.f32 %v4071, %v4090
    %v4093 = vmul.f32 %v4073, %v4091
    %v4094 = vmul.f32 %v4077, %v4090
    %v4095 = vmul.f32 %v4079, %v4091
    %v4096 = vmul.f32 %v4083, %v4090
    %v4097 = vmul.f32 %v4085, %v4091
    %v4098 = vxor.u32 %v4055, 2147483648
    %v4099 = vxor.u32 %v4061, 2147483648
    %v4100 = vmul.f32 %v4098, 1.442695
    %v4101 = vpow.pop %v4100
    %v4102 = vmul.f32 %v4099, 1.442695
    %v4103 = vpow.pop %v4102
    %v4104 = vadd.f32 %v4101, 1.0
    %v4105 = vadd.f32 %v4103, 1.0
    %v4106 = vrcp.pop %v4104
    %v4107 = vmul.f32 1.0, %v4106
    %v4108 = vrcp.pop %v4105
    %v4109 = vmul.f32 1.0, %v4108
    %v4110 = vtanh.pop %v4056
    %v4111 = vtanh.pop %v4062
    %v4112 = vxor.u32 %v4057, 2147483648
    %v4113 = vxor.u32 %v4063, 2147483648
    %v4114 = vmul.f32 %v4112, 1.442695
    %v4115 = vpow.pop %v4114
    %v4116 = vmul.f32 %v4113, 1.442695
    %v4117 = vpow.pop %v4116
    %v4118 = vadd.f32 %v4115, 1.0
    %v4119 = vadd.f32 %v4117, 1.0
    %v4120 = vrcp.pop %v4118
    %v4121 = vmul.f32 1.0, %v4120
    %v4122 = vrcp.pop %v4119
    %v4123 = vmul.f32 1.0, %v4122
    %v4124 = vmul.f32 %v4094, %v3779
    %v4125 = vmul.f32 %v4095, %v3780
    %v4126 = vmul.f32 %v4096, %v3889
    %v4127 = vmul.f32 %v4097, %v3890
    %v4128 = vadd.f32 %v4124, %v4126
    %v4129 = vadd.f32 %v4125, %v4127
    %v4130 = vmul.f32 %v4092, %v4110
    %v4131 = vmul.f32 %v4093, %v4111
    %v4132 = vadd.f32 %v4128, %v4130
    %v4133 = vadd.f32 %v4129, %v4131
    %v4134 = vmul.f32 %v4132, %v144
    %v4135 = vmul.f32 %v4133, %v149
    %v4136 = vtanh.pop %v4134
    %v4137 = vtanh.pop %v4135
    %v4138 = vmul.f32 %v4107, %v4136
    %v4139 = vmul.f32 %v4109, %v4137
    %v4140 = vmul.f32 %v4138, %v144
    %v4141 = vmul.f32 %v4139, %v149
    %v4142 = vmul.f32 %v4121, %v4134
    %v4143 = vmul.f32 %v4123, %v4135
    %v4144 = vrot.slane %v4140, 6
    %v4145 = vrot.slane %v4142, 6
    %v4146 = vrot.slane %v4141, 6
    %v4147 = vrot.slane %v4143, 6
    %v4148 = vsel %vm660, %v4144, %v4146
    %v4149 = vsel %vm660, %v4145, %v4147
    %v4150 = vsel %vm660, %v4146, %v4144
    %v4151 = vsel %vm660, %v4147, %v4145
    %v4152 = vadd.f32 %v4140, %v4150
    %v4153 = vadd.f32 %v4142, %v4151
    %v4154 = vadd.f32 %v4141, %v4148
    %v4155 = vadd.f32 %v4143, %v4149
    %v4156 = vrot.slane %v4152, 4
    %v4157 = vrot.slane %v4153, 4
    %v4158 = vrot.slane %v4154, 4
    %v4159 = vrot.slane %v4155, 4
    %v4160 = vsel %vm650, %v4156, %v4158
    %v4161 = vsel %vm650, %v4157, %v4159
    %v4162 = vsel %vm650, %v4158, %v4156
    %v4163 = vsel %vm650, %v4159, %v4157
    %v4164 = vadd.f32 %v4152, %v4162
    %v4165 = vadd.f32 %v4153, %v4163
    %v4166 = vadd.f32 %v4154, %v4160
    %v4167 = vadd.f32 %v4155, %v4161
    %v4168 = vadd.f32 %v4164, %v4166
    %v4169 = vadd.f32 %v4165, %v4167
    %v4170 = vmul.f32 %v4168, %v156
    %v4171 = vmul.f32 %v4169, %v156
    %v4172 = vmul.f32 %v4168, %v161
    %v4173 = vpack.c.bf16 %v4172, %v4170
    %4174 = vmatprep.subr.bf16.mxu0 %v1627
    %4175 = vmatpush1.bf16.msra.mxu0 %v1626
    %4176 = vmatprep.subr.bf16.mxu0 %v1629
    %4177 = vmatpush1.bf16.msra.mxu0 %v1628
    %4178 = vmatprep.subr.bf16.mxu0 %v1631
    %4179 = vmatpush1.bf16.msra.mxu0 %v1630
    %4180 = vmatprep.subr.bf16.mxu0 %v1633
    %4181 = vmatpush1.bf16.msra.mxu0 %v1632
    %4182 = vmatprep.subr.bf16.mxu0 %v1635
    %4183 = vmatpush1.bf16.msra.mxu0 %v1634
    %4184 = vmatprep.subr.bf16.mxu0 %v1637
    %4185 = vmatpush1.bf16.msra.mxu0 %v1636
    %4186 = vmatprep.subr.bf16.mxu0 %v1639
    %4187 = vmatpush1.bf16.msra.mxu0 %v1638
    %4188 = vmatprep.subr.bf16.mxu0 %v1641
    %4189 = vmatpush1.bf16.msra.mxu0 %v1640
    %4190 = vmatprep.subr.bf16.mxu0 %v1643
    %4191 = vmatpush1.bf16.msra.mxu0 %v1642
    %4192 = vmatprep.subr.bf16.mxu0 %v1645
    %4193 = vmatpush1.bf16.msra.mxu0 %v1644
    %4194 = vmatprep.subr.bf16.mxu0 %v1647
    %4195 = vmatpush1.bf16.msra.mxu0 %v1646
    %4196 = vmatprep.subr.bf16.mxu0 %v1649
    %4197 = vmatpush1.bf16.msra.mxu0 %v1648
    %4198 = vmatprep.subr.bf16.mxu0 %v1651
    %4199 = vmatpush1.bf16.msra.mxu0 %v1650
    %4200 = vmatprep.subr.bf16.mxu0 %v1653
    %4201 = vmatpush1.bf16.msra.mxu0 %v1652
    %4202 = vmatprep.subr.bf16.mxu0 %v1655
    %4203 = vmatpush1.bf16.msra.mxu0 %v1654
    %4204 = vmatprep.subr.bf16.mxu0 %v1657
    %4205 = vmatpush1.bf16.msra.mxu0 %v1656
    %4206 = vmatprep.mubr.bf16.mxu0 %v4173
    %4207 = vmatmul.mubr.bf16.gmra.mrb[0].mxu0 %v3895
    %v4208 = vpop.f32.mrb[0].mxu0
    %v4209 = vadd.f32 %v168, %v4208
    %v4210 = vpop.f32.mrb[0].mxu0
    %v4211 = vadd.f32 %v172, %v4210
    %v4212 = vpop.f32.mrb[0].mxu0
    %v4213 = vpop.f32.mrb[0].mxu0
    %4214 = vdwg.mxu0
    %v4215 = vxor.u32 %v4209, 2147483648
    %v4216 = vmul.f32 %v4215, 1.442695
    %v4217 = vpow.pop %v4216
    %v4218 = vadd.f32 %v4217, 1.0
    %v4219 = vrcp.pop %v4218
    %v4220 = vmul.f32 1.0, %v4219
    %v4221 = vxor.u32 %v4211, 2147483648
    %v4222 = vmul.f32 %v4221, 1.442695
    %v4223 = vpow.pop %v4222
    %v4224 = vadd.f32 %v4223, 1.0
    %v4225 = vrcp.pop %v4224
    %v4226 = vmul.f32 1.0, %v4225
    %v4227 = vmul.f32 %v4220, %v3889
    %v4228 = vadd.f32 %v4227, %v4171
    %v4229 = vtanh.pop %v4228
    %v4230 = vmul.f32 %v4226, %v4229
    %v4231 = vpack.c.bf16 %v4230, %v4230
    %v4232 = vld [vmem:[%s9] sm:$0xf]
    %v4233 = vld [vmem:[%s9 + $0x4] sm:$0xf]
    %v4234 = vld [vmem:[%s9 + $0x8] sm:$0xf]
    %v4235 = vld [vmem:[%s9 + $0xc] sm:$0xf]
    %v4236 = vld [vmem:[%s9 + $0x10] sm:$0xf]
    %v4237 = vld [vmem:[%s9 + $0x14] sm:$0xf]
    %v4238 = vld [vmem:[%s9 + $0x18] sm:$0xf]
    %v4239 = vld [vmem:[%s9 + $0x1c] sm:$0xf]
    %v4240 = vld [vmem:[%s9 + $0x20] sm:$0xf]
    %v4241 = vld [vmem:[%s9 + $0x24] sm:$0xf]
    %v4242 = vld [vmem:[%s9 + $0x28] sm:$0xf]
    %v4243 = vld [vmem:[%s9 + $0x2c] sm:$0xf]
    %v4244 = vld [vmem:[%s9 + $0x30] sm:$0xf]
    %v4245 = vld [vmem:[%s9 + $0x34] sm:$0xf]
    %v4246 = vld [vmem:[%s9 + $0x38] sm:$0xf]
    %v4247 = vld [vmem:[%s9 + $0x3c] sm:$0xf]
    %v4248 = vld [vmem:[%s10] sm:$0x1]
    %v4250 = vlaneseq
    %v4251 = vshrl.u32 %v4250, 7
    %v4252 = vsub.s32 0, %v4251
    %v4253 = vrot.slane %v4248, %v4252
    %v4271 = vunpack.c.l.b16 %v4232
    %v4272 = vunpack.c.l.b16 %v4233
    %v4273 = vunpack.c.l.b16 %v4234
    %v4274 = vunpack.c.l.b16 %v4235
    %v4275 = vunpack.c.l.b16 %v4236
    %v4276 = vunpack.c.l.b16 %v4237
    %v4277 = vunpack.c.l.b16 %v4238
    %v4278 = vunpack.c.l.b16 %v4239
    %v4279 = vunpack.c.l.b16 %v4240
    %v4280 = vunpack.c.l.b16 %v4241
    %v4281 = vunpack.c.l.b16 %v4242
    %v4282 = vunpack.c.l.b16 %v4243
    %v4283 = vunpack.c.l.b16 %v4244
    %v4284 = vunpack.c.l.b16 %v4245
    %v4285 = vunpack.c.l.b16 %v4246
    %v4286 = vunpack.c.l.b16 %v4247
    %v4287 = vpack.c.b16 %v4272, %v4271
    %v4288 = vpack.c.b16 %v4274, %v4273
    %v4289 = vpack.c.b16 %v4276, %v4275
    %v4290 = vpack.c.b16 %v4278, %v4277
    %v4291 = vpack.c.b16 %v4280, %v4279
    %v4292 = vpack.c.b16 %v4282, %v4281
    %v4293 = vpack.c.b16 %v4284, %v4283
    %v4294 = vpack.c.b16 %v4286, %v4285
    %4303 = vmatprep.subr.bf16.mxu0 0
    %4304 = vmatpush1.bf16.msra.mxu0 %v4287
    %4305 = vmatprep.subr.bf16.mxu0 0
    %4306 = vmatpush1.bf16.msra.mxu0 %v4288
    %4307 = vmatprep.subr.bf16.mxu0 0
    %4308 = vmatpush1.bf16.msra.mxu0 %v4289
    %4309 = vmatprep.subr.bf16.mxu0 0
    %4310 = vmatpush1.bf16.msra.mxu0 %v4290
    %4311 = vmatprep.subr.bf16.mxu0 0
    %4312 = vmatpush1.bf16.msra.mxu0 %v4291
    %4313 = vmatprep.subr.bf16.mxu0 0
    %4314 = vmatpush1.bf16.msra.mxu0 %v4292
    %4315 = vmatprep.subr.bf16.mxu0 0
    %4316 = vmatpush1.bf16.msra.mxu0 %v4293
    %4317 = vmatprep.subr.bf16.mxu0 0
    %4318 = vmatpush1.bf16.msra.mxu0 %v4294
    %4319 = vmatprep.subr.bf16.mxu0 0
    %4320 = vmatpush1.bf16.msra.mxu0 0
    %4321 = vmatprep.subr.bf16.mxu0 0
    %4322 = vmatpush1.bf16.msra.mxu0 0
    %4323 = vmatprep.subr.bf16.mxu0 0
    %4324 = vmatpush1.bf16.msra.mxu0 0
    %4325 = vmatprep.subr.bf16.mxu0 0
    %4326 = vmatpush1.bf16.msra.mxu0 0
    %4327 = vmatprep.subr.bf16.mxu0 0
    %4328 = vmatpush1.bf16.msra.mxu0 0
    %4329 = vmatprep.subr.bf16.mxu0 0
    %4330 = vmatpush1.bf16.msra.mxu0 0
    %4331 = vmatprep.subr.bf16.mxu0 0
    %4332 = vmatpush1.bf16.msra.mxu0 0
    %4333 = vmatprep.subr.bf16.mxu0 0
    %4334 = vmatpush1.bf16.msra.mxu0 0
    %4335 = vmatprep.mubr.bf16.mxu0 0
    %4336 = vmatmul.mubr.bf16.gmra.mrb[0].mxu0 %v4231
    %v4337 = vpop.f32.mrb[0].mxu0
    %v4338 = vadd.f32 %v4253, %v4337
    %v4339 = vpop.f32.mrb[0].mxu0
    %v4340 = vpop.f32.mrb[0].mxu0
    %v4341 = vpop.f32.mrb[0].mxu0
    %4342 = vdwg.mxu0
    %v4343 = vtanh.pop %v4338
    %v4344 = vpack.c.bf16 %v4343, %v4343
    %v4345 = vld [vmem:[#allocation13] sm:$0xf]
    %v4346 = vld [vmem:[#allocation13 + $0x4] sm:$0xf]
    %v4347 = vld [vmem:[#allocation13 + $0x8] sm:$0xf]
    %v4348 = vld [vmem:[#allocation13 + $0xc] sm:$0xf]
    %v4349 = vld [vmem:[#allocation13 + $0x10] sm:$0xf]
    %v4350 = vld [vmem:[#allocation13 + $0x14] sm:$0xf]
    %v4351 = vld [vmem:[#allocation13 + $0x18] sm:$0xf]
    %v4352 = vld [vmem:[#allocation13 + $0x1c] sm:$0xf]
    %v4353 = vld [vmem:[#allocation13 + $0x20] sm:$0xf]
    %v4354 = vld [vmem:[#allocation13 + $0x24] sm:$0xf]
    %v4355 = vld [vmem:[#allocation13 + $0x28] sm:$0xf]
    %v4356 = vld [vmem:[#allocation13 + $0x2c] sm:$0xf]
    %v4357 = vld [vmem:[#allocation13 + $0x30] sm:$0xf]
    %v4358 = vld [vmem:[#allocation13 + $0x34] sm:$0xf]
    %v4359 = vld [vmem:[#allocation13 + $0x38] sm:$0xf]
    %v4360 = vld [vmem:[#allocation13 + $0x3c] sm:$0xf]
    %v4361 = vld [vmem:[%s12] sm:$0x1]
    %v4363 = vlaneseq
    %v4364 = vshrl.u32 %v4363, 7
    %v4365 = vsub.s32 0, %v4364
    %v4366 = vrot.slane %v4361, %v4365
    %v4384 = vunpack.c.l.b16 %v4345
    %v4385 = vunpack.c.l.b16 %v4346
    %v4386 = vunpack.c.l.b16 %v4347
    %v4387 = vunpack.c.l.b16 %v4348
    %v4388 = vunpack.c.l.b16 %v4349
    %v4389 = vunpack.c.l.b16 %v4350
    %v4390 = vunpack.c.l.b16 %v4351
    %v4391 = vunpack.c.l.b16 %v4352
    %v4392 = vunpack.c.l.b16 %v4353
    %v4393 = vunpack.c.l.b16 %v4354
    %v4394 = vunpack.c.l.b16 %v4355
    %v4395 = vunpack.c.l.b16 %v4356
    %v4396 = vunpack.c.l.b16 %v4357
    %v4397 = vunpack.c.l.b16 %v4358
    %v4398 = vunpack.c.l.b16 %v4359
    %v4399 = vunpack.c.l.b16 %v4360
    %v4400 = vpack.c.b16 %v4385, %v4384
    %v4401 = vpack.c.b16 %v4387, %v4386
    %v4402 = vpack.c.b16 %v4389, %v4388
    %v4403 = vpack.c.b16 %v4391, %v4390
    %v4404 = vpack.c.b16 %v4393, %v4392
    %v4405 = vpack.c.b16 %v4395, %v4394
    %v4406 = vpack.c.b16 %v4397, %v4396
    %v4407 = vpack.c.b16 %v4399, %v4398
    %4416 = vmatprep.subr.bf16.mxu0 0
    %4417 = vmatpush1.bf16.msra.mxu0 %v4400
    %4418 = vmatprep.subr.bf16.mxu0 0
    %4419 = vmatpush1.bf16.msra.mxu0 %v4401
    %4420 = vmatprep.subr.bf16.mxu0 0
    %4421 = vmatpush1.bf16.msra.mxu0 %v4402
    %4422 = vmatprep.subr.bf16.mxu0 0
    %4423 = vmatpush1.bf16.msra.mxu0 %v4403
    %4424 = vmatprep.subr.bf16.mxu0 0
    %4425 = vmatpush1.bf16.msra.mxu0 %v4404
    %4426 = vmatprep.subr.bf16.mxu0 0
    %4427 = vmatpush1.bf16.msra.mxu0 %v4405
    %4428 = vmatprep.subr.bf16.mxu0 0
    %4429 = vmatpush1.bf16.msra.mxu0 %v4406
    %4430 = vmatprep.subr.bf16.mxu0 0
    %4431 = vmatpush1.bf16.msra.mxu0 %v4407
    %4432 = vmatprep.subr.bf16.mxu0 0
    %4433 = vmatpush1.bf16.msra.mxu0 0
    %4434 = vmatprep.subr.bf16.mxu0 0
    %4435 = vmatpush1.bf16.msra.mxu0 0
    %4436 = vmatprep.subr.bf16.mxu0 0
    %4437 = vmatpush1.bf16.msra.mxu0 0
    %4438 = vmatprep.subr.bf16.mxu0 0
    %4439 = vmatpush1.bf16.msra.mxu0 0
    %4440 = vmatprep.subr.bf16.mxu0 0
    %4441 = vmatpush1.bf16.msra.mxu0 0
    %4442 = vmatprep.subr.bf16.mxu0 0
    %4443 = vmatpush1.bf16.msra.mxu0 0
    %4444 = vmatprep.subr.bf16.mxu0 0
    %4445 = vmatpush1.bf16.msra.mxu0 0
    %4446 = vmatprep.subr.bf16.mxu0 0
    %4447 = vmatpush1.bf16.msra.mxu0 0
    %4448 = vmatprep.mubr.bf16.mxu0 0
    %4449 = vmatmul.mubr.bf16.gmra.mrb[0].mxu0 %v4344
    %v4450 = vpop.f32.mrb[0].mxu0
    %v4451 = vadd.f32 %v4366, %v4450
    %v4452 = vpop.f32.mrb[0].mxu0
    %v4453 = vpop.f32.mrb[0].mxu0
    %v4454 = vpop.f32.mrb[0].mxu0
    %4455 = vdwg.mxu0
    %vm4456 = vcmask 1041408
    %v4457 = vsel %vm4456, %v4451, -inf
    %4458 = vmax.xlane.f32.xlu0 %v4457
    %v4459 = vpop.xlane.xlu0 %4458
    %v4460 = vsub.f32 %v4451, %v4459
    %v4461 = vmul.f32 %v4460, 1.442695
    %v4462 = vpow.pop %v4461
    %v4463 = vsel %vm4456, %v4462, 0.0
    %4464 = vadd.xlane.f32.xlu0 %v4463
    %v4465 = vpop.xlane.xlu0 %4464
    %v4466 = vlog2.pop %v4465
    %v4467 = vmul.f32 %v4466, 0.6931472
    %v4468 = vsub.f32 %v4460, %v4467
    %4469 = vst [vmem:[#allocation14] sm:$0x3] %v4468
    // Predicated region
    $region82: #{tpu_custom_call.1} parent=1 // pred_check
      _
    $region83: #{tpu_custom_call.1} parent=1 // pred_check_branch
      %4471 = sbr.rel (0) target = $region85
    $region84: #{tpu_custom_call.1} parent=1 // pred_region
      %s4473 = ssub.s32 32, 32
      %4474 = vsyncadd [#allocation4], %s4473
      %s4476 = sshll.u32 [#allocation14], 4
      %s4477 = int_to_ptr.vmem [resolvable:$true] %s4476
      %4479 = dma.vmem_to_hbm [thread:$0]  %s4477, 32, %s13, [#allocation4]
    $region85: #{tpu_custom_call.1} parent=1 // pred_fallthru
      _
    // Predicated region
    $region86: #{tpu_custom_call.1} parent=1 // pred_check
      _
    $region87: #{tpu_custom_call.1} parent=1 // pred_check_branch
      %4481 = sbr.rel (0) target = $region89
    $region88: #{tpu_custom_call.1} parent=1 // pred_region
      %4482 = dma.done [#allocation4], 32
    $region89: #{tpu_custom_call.1} parent=1 // pred_fallthru
      _
    %4483 = vsyncpa [#allocation3], 1
    %4484 = vsyncpa [#allocation6], 1
    %4485 = vsyncpa [#allocation9], 1
    %4486 = vsyncpa [#allocation12], 1
    %4487 = vsyncpa [#allocation4], 1

</llo_original>
